<compile_context>
chip_gen: v6e
topology: v6e:2x2x1
jax: 0.10.0
libtpu: 0.0.40
codegen_flags: <defaults>
</compile_context>

<pallas_src>
import functools

import jax
import jax.numpy as jnp
from jax.experimental import pallas as pl
from jax.experimental.pallas import tpu as pltpu

K = 5                          # conv kernel size
PAD = 2                        # 'same' padding for k=5
C_IN, C_MID, C_OUT = 3, 10, 5
C_IN_PAD, C_MID_PAD, C_OUT_PAD = 8, 16, 8   # sublane-padded channel counts
LANE = 128
TAPS = K * K                   # 25
TAPS_PER_CHUNK = 5             # 5 taps/chunk -> 40 (conv1) / 80 (conv2) contraction rows
N_CHUNKS = TAPS // TAPS_PER_CHUNK
B_MAX = 4                      # images per grid step (VMEM + unroll-size hygiene)
NEG_BIG = -1e30                # bias of padded output channels -> vanish from softmax


def _dummynet_kernel(x_ref, w1_ref, b1_ref, w2_ref, b2_ref, mask_ref, o_ref,
                     xcol_ref, *, offsets, center, s_len, batch):
    # x_ref   : (C_IN_PAD, batch*S)  zero-padded images, channel-major, 512-lane sub-slab/img
    # w1_ref  : (N_CHUNKS, C_MID_PAD, TAPS_PER_CHUNK*C_IN_PAD)   chunked im2col conv1 weights
    # b1_ref  : (C_MID_PAD, 1)
    # w2_ref  : (N_CHUNKS, C_OUT_PAD, TAPS_PER_CHUNK*C_MID_PAD)  chunked im2col conv2 weights
    # b2_ref  : (C_OUT_PAD, 1)       rows >= C_OUT hold NEG_BIG
    # mask_ref: (1, S)               1.0 where lane s = y*Wp + x is a real output pixel
    # o_ref   : (C_OUT_PAD, batch*S) lane-dense softmax output (padded-flat coords)
    # xcol_ref: (TAPS*C_MID_PAD, batch*S) im2col scratch; conv1 aliases its first
    #           TAPS*C_IN_PAD rows (dead once conv1's partial dots consumed them)
    mask = mask_ref[...]                                              # (1, S)

    for b in range(batch):              # static unroll; per-image work stays at 512 lanes
        lo = b * s_len
        xb = x_ref[:, lo:lo + s_len]                                  # (C_IN_PAD, S)

        # ---- conv1: roll-staged im2col, chunked so the MXU overlaps later staging ----
        acc1 = None
        for c in range(N_CHUNKS):
            for j in range(TAPS_PER_CHUNK):
                t = c * TAPS_PER_CHUNK + j
                off = offsets[t]
                xcol_ref[t * C_IN_PAD:(t + 1) * C_IN_PAD, lo:lo + s_len] = pltpu.roll(
                    xb, shift=(s_len - off) % s_len, axis=1)          # rolled[s] = x[s + off]
            r0 = c * TAPS_PER_CHUNK * C_IN_PAD
            r1 = r0 + TAPS_PER_CHUNK * C_IN_PAD
            part = jnp.dot(w1_ref[c], xcol_ref[r0:r1, lo:lo + s_len],
                           preferred_element_type=jnp.float32)        # (C_MID_PAD, S)
            acc1 = part if acc1 is None else acc1 + part

        # bias + ReLU; mask zeroes non-output lanes so they act as conv2's zero padding.
        h1 = jnp.maximum(acc1 + b1_ref[...], 0.0) * mask              # (C_MID_PAD, S), in vregs

        # ---- conv2: roll by (center - off) maps top-left coords -> padded coords ----
        acc2 = None
        for c in range(N_CHUNKS):
            for j in range(TAPS_PER_CHUNK):
                t = c * TAPS_PER_CHUNK + j
                off = offsets[t]
                xcol_ref[t * C_MID_PAD:(t + 1) * C_MID_PAD, lo:lo + s_len] = pltpu.roll(
                    h1, shift=(center - off) % s_len, axis=1)
            r0 = c * TAPS_PER_CHUNK * C_MID_PAD
            r1 = r0 + TAPS_PER_CHUNK * C_MID_PAD
            part = jnp.dot(w2_ref[c], xcol_ref[r0:r1, lo:lo + s_len],
                           preferred_element_type=jnp.float32)        # (C_OUT_PAD, S)
            acc2 = part if acc2 is None else acc2 + part

        logits = acc2 + b2_ref[...]          # padded channel rows become -1e30

        # ---- Softmax2d == softmax over the channel (sublane) axis at each spatial lane ----
        m = jnp.max(logits, axis=0, keepdims=True)
        e = jnp.exp(logits - m)              # pad rows: exp(-1e30 - m) == 0 exactly
        denom = jnp.sum(e, axis=0, keepdims=True)
        # exact divide: approx reciprocal (~2^-12 rel err) could violate the 1e-4 check
        o_ref[:, lo:lo + s_len] = e / denom


def dummynet_forward(x_nchw, params, *, batch_per_step=None):
    w1, b1, w2, b2 = params    # PyTorch layouts: (10,3,5,5), (10,), (5,10,5,5), (5,)
    x = x_nchw.astype(jnp.float32)
    N, _, H, W = x.shape
    Hp, Wp = H + 2 * PAD, W + 2 * PAD
    S = ((Hp * Wp + LANE - 1) // LANE) * LANE       # flattened padded spatial, lane multiple
    offsets = [dy * Wp + dx for dy in range(K) for dx in range(K)]
    center = PAD * Wp + PAD

    # Grid policy: amortize per-step overhead over B images/step, but keep >= 2 "parallel"
    # steps when N >= 2 so both v7x TensorCores get work (v5e/v6e are indifferent).
    if batch_per_step is None:
        min_steps = 2 if N >= 2 else 1
        num_steps = max(min_steps, -(-N // B_MAX))
        B = -(-N // num_steps)
    else:
        B = max(1, min(batch_per_step, N))
        num_steps = -(-N // B)
    N_pad = num_steps * B

    # NCHW is already channel-major: pad spatially, flatten, lane-pad, sublane-pad channels,
    # batch-pad, then lay images side-by-side on the lane axis (one 512-lane sub-slab each).
    xp = jnp.pad(x, ((0, N_pad - N), (0, 0), (PAD, PAD), (PAD, PAD)))
    xf = jnp.pad(xp.reshape(N_pad, C_IN, Hp * Wp),
                 ((0, 0), (0, C_IN_PAD - C_IN), (0, S - Hp * Wp)))
    x_slab = jnp.transpose(xf, (1, 0, 2)).reshape(C_IN_PAD, N_pad * S)

    # Conv weights in chunked im2col matmul form (zero pad rows/cols are inert).
    w1p = jnp.pad(w1, ((0, C_MID_PAD - C_MID), (0, C_IN_PAD - C_IN), (0, 0), (0, 0)))
    w1m = jnp.transpose(w1p, (0, 2, 3, 1)).reshape(C_MID_PAD, TAPS * C_IN_PAD)
    w1c = jnp.transpose(w1m.reshape(C_MID_PAD, N_CHUNKS, TAPS_PER_CHUNK * C_IN_PAD),
                        (1, 0, 2))                                    # (5, 16, 40)
    b1c = jnp.pad(b1, (0, C_MID_PAD - C_MID)).reshape(C_MID_PAD, 1)

    w2p = jnp.pad(w2, ((0, C_OUT_PAD - C_OUT), (0, C_MID_PAD - C_MID), (0, 0), (0, 0)))
    w2m = jnp.transpose(w2p, (0, 2, 3, 1)).reshape(C_OUT_PAD, TAPS * C_MID_PAD)
    w2c = jnp.transpose(w2m.reshape(C_OUT_PAD, N_CHUNKS, TAPS_PER_CHUNK * C_MID_PAD),
                        (1, 0, 2))                                    # (5, 8, 80)
    # Padded output-channel bias rows get NEG_BIG so they vanish from the softmax.
    b2c = jnp.pad(b2, (0, C_OUT_PAD - C_OUT), constant_values=NEG_BIG).reshape(C_OUT_PAD, 1)

    # Spatial validity mask over flattened padded coords (top-left convention).
    s_idx = jnp.arange(S)
    mask = (((s_idx % Wp) < W) & ((s_idx // Wp) < H)).astype(jnp.float32).reshape(1, S)

    kernel = functools.partial(_dummynet_kernel, offsets=offsets, center=center,
                               s_len=S, batch=B)

    out_slab = pl.pallas_call(
        kernel,
        out_shape=jax.ShapeDtypeStruct((C_OUT_PAD, N_pad * S), jnp.float32),
        grid_spec=pltpu.PrefetchScalarGridSpec(
            num_scalar_prefetch=0,
            grid=(num_steps,),
            in_specs=[
                pl.BlockSpec((C_IN_PAD, B * S), lambda n: (0, n)),
                pl.BlockSpec((N_CHUNKS, C_MID_PAD, TAPS_PER_CHUNK * C_IN_PAD),
                             lambda n: (0, 0, 0)),
                pl.BlockSpec((C_MID_PAD, 1), lambda n: (0, 0)),
                pl.BlockSpec((N_CHUNKS, C_OUT_PAD, TAPS_PER_CHUNK * C_MID_PAD),
                             lambda n: (0, 0, 0)),
                pl.BlockSpec((C_OUT_PAD, 1), lambda n: (0, 0)),
                pl.BlockSpec((1, S), lambda n: (0, 0)),
            ],
            out_specs=pl.BlockSpec((C_OUT_PAD, B * S), lambda n: (0, n)),
            scratch_shapes=[
                # single im2col scratch; conv1 reuses its first TAPS*C_IN_PAD rows
                pltpu.VMEM((TAPS * C_MID_PAD, B * S), jnp.float32),
            ],
        ),
        compiler_params=pltpu.CompilerParams(dimension_semantics=("parallel",)),
        # VMEM/step at B=4, 16x16 images: scratch ~3.3 MiB + double-buffered in/out blocks
        # < 4 MiB -> fits v5e's 16 MiB scoped default and v7x's 32 MiB default / 64 MiB
        # physical.  For large H/W switch to row-band tiling with a 2-row halo and
        # re-derive the band size against the v7x budget (half of a v6e-tuned setting).
    )(x_slab, w1c, b1c, w2c, b2c, mask)

    # Lane-dense kernel output is in padded-flat coords; compact extraction is cheap XLA.
    out = jnp.transpose(out_slab.reshape(C_OUT_PAD, N_pad, S), (1, 0, 2))
    out = out[:N, :C_OUT, :Hp * Wp].reshape(N, C_OUT, Hp, Wp)[:, :, :H, :W]
    return out


def reference(x_nchw, params):
    # pure-JAX reference of the PyTorch forward (for correctness checking)
    w1, b1, w2, b2 = params
    dn = ('NCHW', 'OIHW', 'NCHW')
    y = jax.lax.conv_general_dilated(x_nchw, w1, (1, 1), ((PAD, PAD), (PAD, PAD)),
                                     dimension_numbers=dn)
    y = jax.nn.relu(y + b1.reshape(1, C_MID, 1, 1))
    y = jax.lax.conv_general_dilated(y, w2, (1, 1), ((PAD, PAD), (PAD, PAD)),
                                     dimension_numbers=dn)
    y = y + b2.reshape(1, C_OUT, 1, 1)
    return jax.nn.softmax(y, axis=1)


if __name__ == "__main__":
    key = jax.random.PRNGKey(0)
    kx, k1, k2, k3, k4 = jax.random.split(key, 5)

    N, H, W = 2, 16, 16
    x = jax.random.normal(kx, (N, C_IN, H, W), jnp.float32)        # NCHW, like PyTorch

    # deterministic synthetic parameters in PyTorch layouts (OIHW weights)
    w1 = 0.1 * jax.random.normal(k1, (C_MID, C_IN, K, K), jnp.float32)
    b1 = 0.1 * jax.random.normal(k2, (C_MID,), jnp.float32)
    w2 = 0.1 * jax.random.normal(k3, (C_OUT, C_MID, K, K), jnp.float32)
    b2 = 0.1 * jax.random.normal(k4, (C_OUT,), jnp.float32)
    params = (w1, b1, w2, b2)

    out = jax.block_until_ready(dummynet_forward(x, params))

    ref = reference(x, params)
    assert out.shape == (N, C_OUT, H, W), out.shape
    max_err = float(jnp.max(jnp.abs(out - ref)))
    assert jnp.allclose(out, ref, atol=1e-4, rtol=1e-4), max_err

    print("KERNEL_OK")
</pallas_src>

<mosaic_0001>
module attributes {stable_mosaic.version = 11 : i64} {
  func.func @_dummynet_kernel(%arg0: i32, %arg1: memref<8x512xf32, #tpu.memory_space<vmem>>, %arg2: memref<5x16x40xf32, #tpu.memory_space<vmem>>, %arg3: memref<16x1xf32, #tpu.memory_space<vmem>>, %arg4: memref<5x8x80xf32, #tpu.memory_space<vmem>>, %arg5: memref<8x1xf32, #tpu.memory_space<vmem>>, %arg6: memref<1x512xf32, #tpu.memory_space<vmem>>, %arg7: memref<8x512xf32, #tpu.memory_space<vmem>>, %arg8: memref<400x512xf32, #tpu.memory_space<vmem>>) attributes {dimension_semantics = [#tpu.dimension_semantics<parallel>], iteration_bounds = array<i64: 2>, scalar_prefetch = 0 : i64, scratch_operands = 1 : i64, tpu.core_type = #tpu.core_type<tc>, window_params = [{transform_indices = @transform_0, window_bounds = array<i64: 8, 512>}, {pipeline_mode = #tpu.pipeline_mode<synchronous>, transform_indices = @transform_1, window_bounds = array<i64: 5, 16, 40>}, {pipeline_mode = #tpu.pipeline_mode<synchronous>, transform_indices = @transform_2, window_bounds = array<i64: 16, 1>}, {pipeline_mode = #tpu.pipeline_mode<synchronous>, transform_indices = @transform_3, window_bounds = array<i64: 5, 8, 80>}, {pipeline_mode = #tpu.pipeline_mode<synchronous>, transform_indices = @transform_4, window_bounds = array<i64: 8, 1>}, {pipeline_mode = #tpu.pipeline_mode<synchronous>, transform_indices = @transform_5, window_bounds = array<i64: 1, 512>}, {transform_indices = @transform_6, window_bounds = array<i64: 8, 512>}]} {
    %c0 = arith.constant 0 : index
    %c0_0 = arith.constant 0 : index
    %0 = vector.load %arg6[%c0, %c0_0] : memref<1x512xf32, #tpu.memory_space<vmem>>, vector<1x512xf32>
    %c0_1 = arith.constant 0 : index
    %c0_2 = arith.constant 0 : index
    %1 = vector.load %arg1[%c0_1, %c0_2] : memref<8x512xf32, #tpu.memory_space<vmem>>, vector<8x512xf32>
    %c0_i32 = arith.constant 0 : i32
    %2 = tpu.dynamic_rotate %1 by %c0_i32 dim 1 : vector<8x512xf32>, i32 -> vector<8x512xf32>
    %c0_3 = arith.constant 0 : index
    %c0_4 = arith.constant 0 : index
    %3 = vector.load %arg8[%c0_3, %c0_4] : memref<400x512xf32, #tpu.memory_space<vmem>>, vector<8x512xf32>
    tpu.vector_store %arg8[%c0_3, %c0_4], %2 {strides = array<i32>} : memref<400x512xf32, #tpu.memory_space<vmem>>, vector<8x512xf32>,
    %c511_i32 = arith.constant 511 : i32
    %4 = tpu.dynamic_rotate %1 by %c511_i32 dim 1 : vector<8x512xf32>, i32 -> vector<8x512xf32>
    %c8 = arith.constant 8 : index
    %c0_5 = arith.constant 0 : index
    %5 = vector.load %arg8[%c8, %c0_5] : memref<400x512xf32, #tpu.memory_space<vmem>>, vector<8x512xf32>
    tpu.vector_store %arg8[%c8, %c0_5], %4 {strides = array<i32>} : memref<400x512xf32, #tpu.memory_space<vmem>>, vector<8x512xf32>,
    %c510_i32 = arith.constant 510 : i32
    %6 = tpu.dynamic_rotate %1 by %c510_i32 dim 1 : vector<8x512xf32>, i32 -> vector<8x512xf32>
    %c16 = arith.constant 16 : index
    %c0_6 = arith.constant 0 : index
    %7 = vector.load %arg8[%c16, %c0_6] : memref<400x512xf32, #tpu.memory_space<vmem>>, vector<8x512xf32>
    tpu.vector_store %arg8[%c16, %c0_6], %6 {strides = array<i32>} : memref<400x512xf32, #tpu.memory_space<vmem>>, vector<8x512xf32>,
    %c509_i32 = arith.constant 509 : i32
    %8 = tpu.dynamic_rotate %1 by %c509_i32 dim 1 : vector<8x512xf32>, i32 -> vector<8x512xf32>
    %c24 = arith.constant 24 : index
    %c0_7 = arith.constant 0 : index
    %9 = vector.load %arg8[%c24, %c0_7] : memref<400x512xf32, #tpu.memory_space<vmem>>, vector<8x512xf32>
    tpu.vector_store %arg8[%c24, %c0_7], %8 {strides = array<i32>} : memref<400x512xf32, #tpu.memory_space<vmem>>, vector<8x512xf32>,
    %c508_i32 = arith.constant 508 : i32
    %10 = tpu.dynamic_rotate %1 by %c508_i32 dim 1 : vector<8x512xf32>, i32 -> vector<8x512xf32>
    %c32 = arith.constant 32 : index
    %c0_8 = arith.constant 0 : index
    %11 = vector.load %arg8[%c32, %c0_8] : memref<400x512xf32, #tpu.memory_space<vmem>>, vector<8x512xf32>
    tpu.vector_store %arg8[%c32, %c0_8], %10 {strides = array<i32>} : memref<400x512xf32, #tpu.memory_space<vmem>>, vector<8x512xf32>,
    %c0_9 = arith.constant 0 : index
    %c0_10 = arith.constant 0 : index
    %c0_11 = arith.constant 0 : index
    %12 = vector.load %arg2[%c0_9, %c0_10, %c0_11] : memref<5x16x40xf32, #tpu.memory_space<vmem>>, vector<1x16x40xf32>
    %13 = vector.shape_cast %12 : vector<1x16x40xf32> to vector<16x40xf32>
    %c0_12 = arith.constant 0 : index
    %c0_13 = arith.constant 0 : index
    %14 = vector.load %arg8[%c0_12, %c0_13] : memref<400x512xf32, #tpu.memory_space<vmem>>, vector<40x512xf32>
    %cst = arith.constant dense<0.000000e+00> : vector<16x512xf32>
    %15 = tpu.matmul %13, %14, %cst {dimension_numbers = #tpu.dot_dimension_numbers<[1], [0], [0], [1], [0, 0, 1, 1], [], []>} : vector<16x40xf32>, vector<40x512xf32>, vector<16x512xf32> -> vector<16x512xf32>
    %c492_i32 = arith.constant 492 : i32
    %16 = tpu.dynamic_rotate %1 by %c492_i32 dim 1 : vector<8x512xf32>, i32 -> vector<8x512xf32>
    %c40 = arith.constant 40 : index
    %c0_14 = arith.constant 0 : index
    %17 = vector.load %arg8[%c40, %c0_14] : memref<400x512xf32, #tpu.memory_space<vmem>>, vector<8x512xf32>
    tpu.vector_store %arg8[%c40, %c0_14], %16 {strides = array<i32>} : memref<400x512xf32, #tpu.memory_space<vmem>>, vector<8x512xf32>,
    %c491_i32 = arith.constant 491 : i32
    %18 = tpu.dynamic_rotate %1 by %c491_i32 dim 1 : vector<8x512xf32>, i32 -> vector<8x512xf32>
    %c48 = arith.constant 48 : index
    %c0_15 = arith.constant 0 : index
    %19 = vector.load %arg8[%c48, %c0_15] : memref<400x512xf32, #tpu.memory_space<vmem>>, vector<8x512xf32>
    tpu.vector_store %arg8[%c48, %c0_15], %18 {strides = array<i32>} : memref<400x512xf32, #tpu.memory_space<vmem>>, vector<8x512xf32>,
    %c490_i32 = arith.constant 490 : i32
    %20 = tpu.dynamic_rotate %1 by %c490_i32 dim 1 : vector<8x512xf32>, i32 -> vector<8x512xf32>
    %c56 = arith.constant 56 : index
    %c0_16 = arith.constant 0 : index
    %21 = vector.load %arg8[%c56, %c0_16] : memref<400x512xf32, #tpu.memory_space<vmem>>, vector<8x512xf32>
    tpu.vector_store %arg8[%c56, %c0_16], %20 {strides = array<i32>} : memref<400x512xf32, #tpu.memory_space<vmem>>, vector<8x512xf32>,
    %c489_i32 = arith.constant 489 : i32
    %22 = tpu.dynamic_rotate %1 by %c489_i32 dim 1 : vector<8x512xf32>, i32 -> vector<8x512xf32>
    %c64 = arith.constant 64 : index
    %c0_17 = arith.constant 0 : index
    %23 = vector.load %arg8[%c64, %c0_17] : memref<400x512xf32, #tpu.memory_space<vmem>>, vector<8x512xf32>
    tpu.vector_store %arg8[%c64, %c0_17], %22 {strides = array<i32>} : memref<400x512xf32, #tpu.memory_space<vmem>>, vector<8x512xf32>,
    %c488_i32 = arith.constant 488 : i32
    %24 = tpu.dynamic_rotate %1 by %c488_i32 dim 1 : vector<8x512xf32>, i32 -> vector<8x512xf32>
    %c72 = arith.constant 72 : index
    %c0_18 = arith.constant 0 : index
    %25 = vector.load %arg8[%c72, %c0_18] : memref<400x512xf32, #tpu.memory_space<vmem>>, vector<8x512xf32>
    tpu.vector_store %arg8[%c72, %c0_18], %24 {strides = array<i32>} : memref<400x512xf32, #tpu.memory_space<vmem>>, vector<8x512xf32>,
    %c1 = arith.constant 1 : index
    %c0_19 = arith.constant 0 : index
    %c0_20 = arith.constant 0 : index
    %26 = vector.load %arg2[%c1, %c0_19, %c0_20] : memref<5x16x40xf32, #tpu.memory_space<vmem>>, vector<1x16x40xf32>
    %27 = vector.shape_cast %26 : vector<1x16x40xf32> to vector<16x40xf32>
    %c40_21 = arith.constant 40 : index
    %c0_22 = arith.constant 0 : index
    %28 = vector.load %arg8[%c40_21, %c0_22] : memref<400x512xf32, #tpu.memory_space<vmem>>, vector<40x512xf32>
    %cst_23 = arith.constant dense<0.000000e+00> : vector<16x512xf32>
    %29 = tpu.matmul %27, %28, %cst_23 {dimension_numbers = #tpu.dot_dimension_numbers<[1], [0], [0], [1], [0, 0, 1, 1], [], []>} : vector<16x40xf32>, vector<40x512xf32>, vector<16x512xf32> -> vector<16x512xf32>
    %30 = arith.addf %15, %29 : vector<16x512xf32>
    %c472_i32 = arith.constant 472 : i32
    %31 = tpu.dynamic_rotate %1 by %c472_i32 dim 1 : vector<8x512xf32>, i32 -> vector<8x512xf32>
    %c80 = arith.constant 80 : index
    %c0_24 = arith.constant 0 : index
    %32 = vector.load %arg8[%c80, %c0_24] : memref<400x512xf32, #tpu.memory_space<vmem>>, vector<8x512xf32>
    tpu.vector_store %arg8[%c80, %c0_24], %31 {strides = array<i32>} : memref<400x512xf32, #tpu.memory_space<vmem>>, vector<8x512xf32>,
    %c471_i32 = arith.constant 471 : i32
    %33 = tpu.dynamic_rotate %1 by %c471_i32 dim 1 : vector<8x512xf32>, i32 -> vector<8x512xf32>
    %c88 = arith.constant 88 : index
    %c0_25 = arith.constant 0 : index
    %34 = vector.load %arg8[%c88, %c0_25] : memref<400x512xf32, #tpu.memory_space<vmem>>, vector<8x512xf32>
    tpu.vector_store %arg8[%c88, %c0_25], %33 {strides = array<i32>} : memref<400x512xf32, #tpu.memory_space<vmem>>, vector<8x512xf32>,
    %c470_i32 = arith.constant 470 : i32
    %35 = tpu.dynamic_rotate %1 by %c470_i32 dim 1 : vector<8x512xf32>, i32 -> vector<8x512xf32>
    %c96 = arith.constant 96 : index
    %c0_26 = arith.constant 0 : index
    %36 = vector.load %arg8[%c96, %c0_26] : memref<400x512xf32, #tpu.memory_space<vmem>>, vector<8x512xf32>
    tpu.vector_store %arg8[%c96, %c0_26], %35 {strides = array<i32>} : memref<400x512xf32, #tpu.memory_space<vmem>>, vector<8x512xf32>,
    %c469_i32 = arith.constant 469 : i32
    %37 = tpu.dynamic_rotate %1 by %c469_i32 dim 1 : vector<8x512xf32>, i32 -> vector<8x512xf32>
    %c104 = arith.constant 104 : index
    %c0_27 = arith.constant 0 : index
    %38 = vector.load %arg8[%c104, %c0_27] : memref<400x512xf32, #tpu.memory_space<vmem>>, vector<8x512xf32>
    tpu.vector_store %arg8[%c104, %c0_27], %37 {strides = array<i32>} : memref<400x512xf32, #tpu.memory_space<vmem>>, vector<8x512xf32>,
    %c468_i32 = arith.constant 468 : i32
    %39 = tpu.dynamic_rotate %1 by %c468_i32 dim 1 : vector<8x512xf32>, i32 -> vector<8x512xf32>
    %c112 = arith.constant 112 : index
    %c0_28 = arith.constant 0 : index
    %40 = vector.load %arg8[%c112, %c0_28] : memref<400x512xf32, #tpu.memory_space<vmem>>, vector<8x512xf32>
    tpu.vector_store %arg8[%c112, %c0_28], %39 {strides = array<i32>} : memref<400x512xf32, #tpu.memory_space<vmem>>, vector<8x512xf32>,
    %c2 = arith.constant 2 : index
    %c0_29 = arith.constant 0 : index
    %c0_30 = arith.constant 0 : index
    %41 = vector.load %arg2[%c2, %c0_29, %c0_30] : memref<5x16x40xf32, #tpu.memory_space<vmem>>, vector<1x16x40xf32>
    %42 = vector.shape_cast %41 : vector<1x16x40xf32> to vector<16x40xf32>
    %c80_31 = arith.constant 80 : index
    %c0_32 = arith.constant 0 : index
    %43 = vector.load %arg8[%c80_31, %c0_32] : memref<400x512xf32, #tpu.memory_space<vmem>>, vector<40x512xf32>
    %cst_33 = arith.constant dense<0.000000e+00> : vector<16x512xf32>
    %44 = tpu.matmul %42, %43, %cst_33 {dimension_numbers = #tpu.dot_dimension_numbers<[1], [0], [0], [1], [0, 0, 1, 1], [], []>} : vector<16x40xf32>, vector<40x512xf32>, vector<16x512xf32> -> vector<16x512xf32>
    %45 = arith.addf %30, %44 : vector<16x512xf32>
    %c452_i32 = arith.constant 452 : i32
    %46 = tpu.dynamic_rotate %1 by %c452_i32 dim 1 : vector<8x512xf32>, i32 -> vector<8x512xf32>
    %c120 = arith.constant 120 : index
    %c0_34 = arith.constant 0 : index
    %47 = vector.load %arg8[%c120, %c0_34] : memref<400x512xf32, #tpu.memory_space<vmem>>, vector<8x512xf32>
    tpu.vector_store %arg8[%c120, %c0_34], %46 {strides = array<i32>} : memref<400x512xf32, #tpu.memory_space<vmem>>, vector<8x512xf32>,
    %c451_i32 = arith.constant 451 : i32
    %48 = tpu.dynamic_rotate %1 by %c451_i32 dim 1 : vector<8x512xf32>, i32 -> vector<8x512xf32>
    %c128 = arith.constant 128 : index
    %c0_35 = arith.constant 0 : index
    %49 = vector.load %arg8[%c128, %c0_35] : memref<400x512xf32, #tpu.memory_space<vmem>>, vector<8x512xf32>
    tpu.vector_store %arg8[%c128, %c0_35], %48 {strides = array<i32>} : memref<400x512xf32, #tpu.memory_space<vmem>>, vector<8x512xf32>,
    %c450_i32 = arith.constant 450 : i32
    %50 = tpu.dynamic_rotate %1 by %c450_i32 dim 1 : vector<8x512xf32>, i32 -> vector<8x512xf32>
    %c136 = arith.constant 136 : index
    %c0_36 = arith.constant 0 : index
    %51 = vector.load %arg8[%c136, %c0_36] : memref<400x512xf32, #tpu.memory_space<vmem>>, vector<8x512xf32>
    tpu.vector_store %arg8[%c136, %c0_36], %50 {strides = array<i32>} : memref<400x512xf32, #tpu.memory_space<vmem>>, vector<8x512xf32>,
    %c449_i32 = arith.constant 449 : i32
    %52 = tpu.dynamic_rotate %1 by %c449_i32 dim 1 : vector<8x512xf32>, i32 -> vector<8x512xf32>
    %c144 = arith.constant 144 : index
    %c0_37 = arith.constant 0 : index
    %53 = vector.load %arg8[%c144, %c0_37] : memref<400x512xf32, #tpu.memory_space<vmem>>, vector<8x512xf32>
    tpu.vector_store %arg8[%c144, %c0_37], %52 {strides = array<i32>} : memref<400x512xf32, #tpu.memory_space<vmem>>, vector<8x512xf32>,
    %c448_i32 = arith.constant 448 : i32
    %54 = tpu.dynamic_rotate %1 by %c448_i32 dim 1 : vector<8x512xf32>, i32 -> vector<8x512xf32>
    %c152 = arith.constant 152 : index
    %c0_38 = arith.constant 0 : index
    %55 = vector.load %arg8[%c152, %c0_38] : memref<400x512xf32, #tpu.memory_space<vmem>>, vector<8x512xf32>
    tpu.vector_store %arg8[%c152, %c0_38], %54 {strides = array<i32>} : memref<400x512xf32, #tpu.memory_space<vmem>>, vector<8x512xf32>,
    %c3 = arith.constant 3 : index
    %c0_39 = arith.constant 0 : index
    %c0_40 = arith.constant 0 : index
    %56 = vector.load %arg2[%c3, %c0_39, %c0_40] : memref<5x16x40xf32, #tpu.memory_space<vmem>>, vector<1x16x40xf32>
    %57 = vector.shape_cast %56 : vector<1x16x40xf32> to vector<16x40xf32>
    %c120_41 = arith.constant 120 : index
    %c0_42 = arith.constant 0 : index
    %58 = vector.load %arg8[%c120_41, %c0_42] : memref<400x512xf32, #tpu.memory_space<vmem>>, vector<40x512xf32>
    %cst_43 = arith.constant dense<0.000000e+00> : vector<16x512xf32>
    %59 = tpu.matmul %57, %58, %cst_43 {dimension_numbers = #tpu.dot_dimension_numbers<[1], [0], [0], [1], [0, 0, 1, 1], [], []>} : vector<16x40xf32>, vector<40x512xf32>, vector<16x512xf32> -> vector<16x512xf32>
    %60 = arith.addf %45, %59 : vector<16x512xf32>
    %c432_i32 = arith.constant 432 : i32
    %61 = tpu.dynamic_rotate %1 by %c432_i32 dim 1 : vector<8x512xf32>, i32 -> vector<8x512xf32>
    %c160 = arith.constant 160 : index
    %c0_44 = arith.constant 0 : index
    %62 = vector.load %arg8[%c160, %c0_44] : memref<400x512xf32, #tpu.memory_space<vmem>>, vector<8x512xf32>
    tpu.vector_store %arg8[%c160, %c0_44], %61 {strides = array<i32>} : memref<400x512xf32, #tpu.memory_space<vmem>>, vector<8x512xf32>,
    %c431_i32 = arith.constant 431 : i32
    %63 = tpu.dynamic_rotate %1 by %c431_i32 dim 1 : vector<8x512xf32>, i32 -> vector<8x512xf32>
    %c168 = arith.constant 168 : index
    %c0_45 = arith.constant 0 : index
    %64 = vector.load %arg8[%c168, %c0_45] : memref<400x512xf32, #tpu.memory_space<vmem>>, vector<8x512xf32>
    tpu.vector_store %arg8[%c168, %c0_45], %63 {strides = array<i32>} : memref<400x512xf32, #tpu.memory_space<vmem>>, vector<8x512xf32>,
    %c430_i32 = arith.constant 430 : i32
    %65 = tpu.dynamic_rotate %1 by %c430_i32 dim 1 : vector<8x512xf32>, i32 -> vector<8x512xf32>
    %c176 = arith.constant 176 : index
    %c0_46 = arith.constant 0 : index
    %66 = vector.load %arg8[%c176, %c0_46] : memref<400x512xf32, #tpu.memory_space<vmem>>, vector<8x512xf32>
    tpu.vector_store %arg8[%c176, %c0_46], %65 {strides = array<i32>} : memref<400x512xf32, #tpu.memory_space<vmem>>, vector<8x512xf32>,
    %c429_i32 = arith.constant 429 : i32
    %67 = tpu.dynamic_rotate %1 by %c429_i32 dim 1 : vector<8x512xf32>, i32 -> vector<8x512xf32>
    %c184 = arith.constant 184 : index
    %c0_47 = arith.constant 0 : index
    %68 = vector.load %arg8[%c184, %c0_47] : memref<400x512xf32, #tpu.memory_space<vmem>>, vector<8x512xf32>
    tpu.vector_store %arg8[%c184, %c0_47], %67 {strides = array<i32>} : memref<400x512xf32, #tpu.memory_space<vmem>>, vector<8x512xf32>,
    %c428_i32 = arith.constant 428 : i32
    %69 = tpu.dynamic_rotate %1 by %c428_i32 dim 1 : vector<8x512xf32>, i32 -> vector<8x512xf32>
    %c192 = arith.constant 192 : index
    %c0_48 = arith.constant 0 : index
    %70 = vector.load %arg8[%c192, %c0_48] : memref<400x512xf32, #tpu.memory_space<vmem>>, vector<8x512xf32>
    tpu.vector_store %arg8[%c192, %c0_48], %69 {strides = array<i32>} : memref<400x512xf32, #tpu.memory_space<vmem>>, vector<8x512xf32>,
    %c4 = arith.constant 4 : index
    %c0_49 = arith.constant 0 : index
    %c0_50 = arith.constant 0 : index
    %71 = vector.load %arg2[%c4, %c0_49, %c0_50] : memref<5x16x40xf32, #tpu.memory_space<vmem>>, vector<1x16x40xf32>
    %72 = vector.shape_cast %71 : vector<1x16x40xf32> to vector<16x40xf32>
    %c160_51 = arith.constant 160 : index
    %c0_52 = arith.constant 0 : index
    %73 = vector.load %arg8[%c160_51, %c0_52] : memref<400x512xf32, #tpu.memory_space<vmem>>, vector<40x512xf32>
    %cst_53 = arith.constant dense<0.000000e+00> : vector<16x512xf32>
    %74 = tpu.matmul %72, %73, %cst_53 {dimension_numbers = #tpu.dot_dimension_numbers<[1], [0], [0], [1], [0, 0, 1, 1], [], []>} : vector<16x40xf32>, vector<40x512xf32>, vector<16x512xf32> -> vector<16x512xf32>
    %75 = arith.addf %60, %74 : vector<16x512xf32>
    %c0_54 = arith.constant 0 : index
    %c0_55 = arith.constant 0 : index
    %76 = vector.load %arg3[%c0_54, %c0_55] : memref<16x1xf32, #tpu.memory_space<vmem>>, vector<16x1xf32>
    %77 = vector.broadcast %76 : vector<16x1xf32> to vector<16x512xf32>
    %78 = arith.addf %75, %77 : vector<16x512xf32>
    %cst_56 = arith.constant 0.000000e+00 : f32
    %79 = vector.broadcast %cst_56 : f32 to vector<16x512xf32>
    %80 = arith.maximumf %78, %79 : vector<16x512xf32>
    %81 = vector.broadcast %0 : vector<1x512xf32> to vector<16x512xf32>
    %82 = arith.mulf %80, %81 : vector<16x512xf32>
    %c42_i32 = arith.constant 42 : i32
    %83 = tpu.dynamic_rotate %82 by %c42_i32 dim 1 : vector<16x512xf32>, i32 -> vector<16x512xf32>
    %c0_57 = arith.constant 0 : index
    %c0_58 = arith.constant 0 : index
    %84 = vector.load %arg8[%c0_57, %c0_58] : memref<400x512xf32, #tpu.memory_space<vmem>>, vector<16x512xf32>
    tpu.vector_store %arg8[%c0_57, %c0_58], %83 {strides = array<i32>} : memref<400x512xf32, #tpu.memory_space<vmem>>, vector<16x512xf32>,
    %c41_i32 = arith.constant 41 : i32
    %85 = tpu.dynamic_rotate %82 by %c41_i32 dim 1 : vector<16x512xf32>, i32 -> vector<16x512xf32>
    %c16_59 = arith.constant 16 : index
    %c0_60 = arith.constant 0 : index
    %86 = vector.load %arg8[%c16_59, %c0_60] : memref<400x512xf32, #tpu.memory_space<vmem>>, vector<16x512xf32>
    tpu.vector_store %arg8[%c16_59, %c0_60], %85 {strides = array<i32>} : memref<400x512xf32, #tpu.memory_space<vmem>>, vector<16x512xf32>,
    %c40_i32 = arith.constant 40 : i32
    %87 = tpu.dynamic_rotate %82 by %c40_i32 dim 1 : vector<16x512xf32>, i32 -> vector<16x512xf32>
    %c32_61 = arith.constant 32 : index
    %c0_62 = arith.constant 0 : index
    %88 = vector.load %arg8[%c32_61, %c0_62] : memref<400x512xf32, #tpu.memory_space<vmem>>, vector<16x512xf32>
    tpu.vector_store %arg8[%c32_61, %c0_62], %87 {strides = array<i32>} : memref<400x512xf32, #tpu.memory_space<vmem>>, vector<16x512xf32>,
    %c39_i32 = arith.constant 39 : i32
    %89 = tpu.dynamic_rotate %82 by %c39_i32 dim 1 : vector<16x512xf32>, i32 -> vector<16x512xf32>
    %c48_63 = arith.constant 48 : index
    %c0_64 = arith.constant 0 : index
    %90 = vector.load %arg8[%c48_63, %c0_64] : memref<400x512xf32, #tpu.memory_space<vmem>>, vector<16x512xf32>
    tpu.vector_store %arg8[%c48_63, %c0_64], %89 {strides = array<i32>} : memref<400x512xf32, #tpu.memory_space<vmem>>, vector<16x512xf32>,
    %c38_i32 = arith.constant 38 : i32
    %91 = tpu.dynamic_rotate %82 by %c38_i32 dim 1 : vector<16x512xf32>, i32 -> vector<16x512xf32>
    %c64_65 = arith.constant 64 : index
    %c0_66 = arith.constant 0 : index
    %92 = vector.load %arg8[%c64_65, %c0_66] : memref<400x512xf32, #tpu.memory_space<vmem>>, vector<16x512xf32>
    tpu.vector_store %arg8[%c64_65, %c0_66], %91 {strides = array<i32>} : memref<400x512xf32, #tpu.memory_space<vmem>>, vector<16x512xf32>,
    %c0_67 = arith.constant 0 : index
    %c0_68 = arith.constant 0 : index
    %c0_69 = arith.constant 0 : index
    %93 = vector.load %arg4[%c0_67, %c0_68, %c0_69] : memref<5x8x80xf32, #tpu.memory_space<vmem>>, vector<1x8x80xf32>
    %94 = vector.shape_cast %93 : vector<1x8x80xf32> to vector<8x80xf32>
    %c0_70 = arith.constant 0 : index
    %c0_71 = arith.constant 0 : index
    %95 = vector.load %arg8[%c0_70, %c0_71] : memref<400x512xf32, #tpu.memory_space<vmem>>, vector<80x512xf32>
    %cst_72 = arith.constant dense<0.000000e+00> : vector<8x512xf32>
    %96 = tpu.matmul %94, %95, %cst_72 {dimension_numbers = #tpu.dot_dimension_numbers<[1], [0], [0], [1], [0, 0, 1, 1], [], []>} : vector<8x80xf32>, vector<80x512xf32>, vector<8x512xf32> -> vector<8x512xf32>
    %c22_i32 = arith.constant 22 : i32
    %97 = tpu.dynamic_rotate %82 by %c22_i32 dim 1 : vector<16x512xf32>, i32 -> vector<16x512xf32>
    %c80_73 = arith.constant 80 : index
    %c0_74 = arith.constant 0 : index
    %98 = vector.load %arg8[%c80_73, %c0_74] : memref<400x512xf32, #tpu.memory_space<vmem>>, vector<16x512xf32>
    tpu.vector_store %arg8[%c80_73, %c0_74], %97 {strides = array<i32>} : memref<400x512xf32, #tpu.memory_space<vmem>>, vector<16x512xf32>,
    %c21_i32 = arith.constant 21 : i32
    %99 = tpu.dynamic_rotate %82 by %c21_i32 dim 1 : vector<16x512xf32>, i32 -> vector<16x512xf32>
    %c96_75 = arith.constant 96 : index
    %c0_76 = arith.constant 0 : index
    %100 = vector.load %arg8[%c96_75, %c0_76] : memref<400x512xf32, #tpu.memory_space<vmem>>, vector<16x512xf32>
    tpu.vector_store %arg8[%c96_75, %c0_76], %99 {strides = array<i32>} : memref<400x512xf32, #tpu.memory_space<vmem>>, vector<16x512xf32>,
    %c20_i32 = arith.constant 20 : i32
    %101 = tpu.dynamic_rotate %82 by %c20_i32 dim 1 : vector<16x512xf32>, i32 -> vector<16x512xf32>
    %c112_77 = arith.constant 112 : index
    %c0_78 = arith.constant 0 : index
    %102 = vector.load %arg8[%c112_77, %c0_78] : memref<400x512xf32, #tpu.memory_space<vmem>>, vector<16x512xf32>
    tpu.vector_store %arg8[%c112_77, %c0_78], %101 {strides = array<i32>} : memref<400x512xf32, #tpu.memory_space<vmem>>, vector<16x512xf32>,
    %c19_i32 = arith.constant 19 : i32
    %103 = tpu.dynamic_rotate %82 by %c19_i32 dim 1 : vector<16x512xf32>, i32 -> vector<16x512xf32>
    %c128_79 = arith.constant 128 : index
    %c0_80 = arith.constant 0 : index
    %104 = vector.load %arg8[%c128_79, %c0_80] : memref<400x512xf32, #tpu.memory_space<vmem>>, vector<16x512xf32>
    tpu.vector_store %arg8[%c128_79, %c0_80], %103 {strides = array<i32>} : memref<400x512xf32, #tpu.memory_space<vmem>>, vector<16x512xf32>,
    %c18_i32 = arith.constant 18 : i32
    %105 = tpu.dynamic_rotate %82 by %c18_i32 dim 1 : vector<16x512xf32>, i32 -> vector<16x512xf32>
    %c144_81 = arith.constant 144 : index
    %c0_82 = arith.constant 0 : index
    %106 = vector.load %arg8[%c144_81, %c0_82] : memref<400x512xf32, #tpu.memory_space<vmem>>, vector<16x512xf32>
    tpu.vector_store %arg8[%c144_81, %c0_82], %105 {strides = array<i32>} : memref<400x512xf32, #tpu.memory_space<vmem>>, vector<16x512xf32>,
    %c1_83 = arith.constant 1 : index
    %c0_84 = arith.constant 0 : index
    %c0_85 = arith.constant 0 : index
    %107 = vector.load %arg4[%c1_83, %c0_84, %c0_85] : memref<5x8x80xf32, #tpu.memory_space<vmem>>, vector<1x8x80xf32>
    %108 = vector.shape_cast %107 : vector<1x8x80xf32> to vector<8x80xf32>
    %c80_86 = arith.constant 80 : index
    %c0_87 = arith.constant 0 : index
    %109 = vector.load %arg8[%c80_86, %c0_87] : memref<400x512xf32, #tpu.memory_space<vmem>>, vector<80x512xf32>
    %cst_88 = arith.constant dense<0.000000e+00> : vector<8x512xf32>
    %110 = tpu.matmul %108, %109, %cst_88 {dimension_numbers = #tpu.dot_dimension_numbers<[1], [0], [0], [1], [0, 0, 1, 1], [], []>} : vector<8x80xf32>, vector<80x512xf32>, vector<8x512xf32> -> vector<8x512xf32>
    %111 = arith.addf %96, %110 : vector<8x512xf32>
    %c2_i32 = arith.constant 2 : i32
    %112 = tpu.dynamic_rotate %82 by %c2_i32 dim 1 : vector<16x512xf32>, i32 -> vector<16x512xf32>
    %c160_89 = arith.constant 160 : index
    %c0_90 = arith.constant 0 : index
    %113 = vector.load %arg8[%c160_89, %c0_90] : memref<400x512xf32, #tpu.memory_space<vmem>>, vector<16x512xf32>
    tpu.vector_store %arg8[%c160_89, %c0_90], %112 {strides = array<i32>} : memref<400x512xf32, #tpu.memory_space<vmem>>, vector<16x512xf32>,
    %c1_i32 = arith.constant 1 : i32
    %114 = tpu.dynamic_rotate %82 by %c1_i32 dim 1 : vector<16x512xf32>, i32 -> vector<16x512xf32>
    %c176_91 = arith.constant 176 : index
    %c0_92 = arith.constant 0 : index
    %115 = vector.load %arg8[%c176_91, %c0_92] : memref<400x512xf32, #tpu.memory_space<vmem>>, vector<16x512xf32>
    tpu.vector_store %arg8[%c176_91, %c0_92], %114 {strides = array<i32>} : memref<400x512xf32, #tpu.memory_space<vmem>>, vector<16x512xf32>,
    %c0_i32_93 = arith.constant 0 : i32
    %116 = tpu.dynamic_rotate %82 by %c0_i32_93 dim 1 : vector<16x512xf32>, i32 -> vector<16x512xf32>
    %c192_94 = arith.constant 192 : index
    %c0_95 = arith.constant 0 : index
    %117 = vector.load %arg8[%c192_94, %c0_95] : memref<400x512xf32, #tpu.memory_space<vmem>>, vector<16x512xf32>
    tpu.vector_store %arg8[%c192_94, %c0_95], %116 {strides = array<i32>} : memref<400x512xf32, #tpu.memory_space<vmem>>, vector<16x512xf32>,
    %c511_i32_96 = arith.constant 511 : i32
    %118 = tpu.dynamic_rotate %82 by %c511_i32_96 dim 1 : vector<16x512xf32>, i32 -> vector<16x512xf32>
    %c208 = arith.constant 208 : index
    %c0_97 = arith.constant 0 : index
    %119 = vector.load %arg8[%c208, %c0_97] : memref<400x512xf32, #tpu.memory_space<vmem>>, vector<16x512xf32>
    tpu.vector_store %arg8[%c208, %c0_97], %118 {strides = array<i32>} : memref<400x512xf32, #tpu.memory_space<vmem>>, vector<16x512xf32>,
    %c510_i32_98 = arith.constant 510 : i32
    %120 = tpu.dynamic_rotate %82 by %c510_i32_98 dim 1 : vector<16x512xf32>, i32 -> vector<16x512xf32>
    %c224 = arith.constant 224 : index
    %c0_99 = arith.constant 0 : index
    %121 = vector.load %arg8[%c224, %c0_99] : memref<400x512xf32, #tpu.memory_space<vmem>>, vector<16x512xf32>
    tpu.vector_store %arg8[%c224, %c0_99], %120 {strides = array<i32>} : memref<400x512xf32, #tpu.memory_space<vmem>>, vector<16x512xf32>,
    %c2_100 = arith.constant 2 : index
    %c0_101 = arith.constant 0 : index
    %c0_102 = arith.constant 0 : index
    %122 = vector.load %arg4[%c2_100, %c0_101, %c0_102] : memref<5x8x80xf32, #tpu.memory_space<vmem>>, vector<1x8x80xf32>
    %123 = vector.shape_cast %122 : vector<1x8x80xf32> to vector<8x80xf32>
    %c160_103 = arith.constant 160 : index
    %c0_104 = arith.constant 0 : index
    %124 = vector.load %arg8[%c160_103, %c0_104] : memref<400x512xf32, #tpu.memory_space<vmem>>, vector<80x512xf32>
    %cst_105 = arith.constant dense<0.000000e+00> : vector<8x512xf32>
    %125 = tpu.matmul %123, %124, %cst_105 {dimension_numbers = #tpu.dot_dimension_numbers<[1], [0], [0], [1], [0, 0, 1, 1], [], []>} : vector<8x80xf32>, vector<80x512xf32>, vector<8x512xf32> -> vector<8x512xf32>
    %126 = arith.addf %111, %125 : vector<8x512xf32>
    %c494_i32 = arith.constant 494 : i32
    %127 = tpu.dynamic_rotate %82 by %c494_i32 dim 1 : vector<16x512xf32>, i32 -> vector<16x512xf32>
    %c240 = arith.constant 240 : index
    %c0_106 = arith.constant 0 : index
    %128 = vector.load %arg8[%c240, %c0_106] : memref<400x512xf32, #tpu.memory_space<vmem>>, vector<16x512xf32>
    tpu.vector_store %arg8[%c240, %c0_106], %127 {strides = array<i32>} : memref<400x512xf32, #tpu.memory_space<vmem>>, vector<16x512xf32>,
    %c493_i32 = arith.constant 493 : i32
    %129 = tpu.dynamic_rotate %82 by %c493_i32 dim 1 : vector<16x512xf32>, i32 -> vector<16x512xf32>
    %c256 = arith.constant 256 : index
    %c0_107 = arith.constant 0 : index
    %130 = vector.load %arg8[%c256, %c0_107] : memref<400x512xf32, #tpu.memory_space<vmem>>, vector<16x512xf32>
    tpu.vector_store %arg8[%c256, %c0_107], %129 {strides = array<i32>} : memref<400x512xf32, #tpu.memory_space<vmem>>, vector<16x512xf32>,
    %c492_i32_108 = arith.constant 492 : i32
    %131 = tpu.dynamic_rotate %82 by %c492_i32_108 dim 1 : vector<16x512xf32>, i32 -> vector<16x512xf32>
    %c272 = arith.constant 272 : index
    %c0_109 = arith.constant 0 : index
    %132 = vector.load %arg8[%c272, %c0_109] : memref<400x512xf32, #tpu.memory_space<vmem>>, vector<16x512xf32>
    tpu.vector_store %arg8[%c272, %c0_109], %131 {strides = array<i32>} : memref<400x512xf32, #tpu.memory_space<vmem>>, vector<16x512xf32>,
    %c491_i32_110 = arith.constant 491 : i32
    %133 = tpu.dynamic_rotate %82 by %c491_i32_110 dim 1 : vector<16x512xf32>, i32 -> vector<16x512xf32>
    %c288 = arith.constant 288 : index
    %c0_111 = arith.constant 0 : index
    %134 = vector.load %arg8[%c288, %c0_111] : memref<400x512xf32, #tpu.memory_space<vmem>>, vector<16x512xf32>
    tpu.vector_store %arg8[%c288, %c0_111], %133 {strides = array<i32>} : memref<400x512xf32, #tpu.memory_space<vmem>>, vector<16x512xf32>,
    %c490_i32_112 = arith.constant 490 : i32
    %135 = tpu.dynamic_rotate %82 by %c490_i32_112 dim 1 : vector<16x512xf32>, i32 -> vector<16x512xf32>
    %c304 = arith.constant 304 : index
    %c0_113 = arith.constant 0 : index
    %136 = vector.load %arg8[%c304, %c0_113] : memref<400x512xf32, #tpu.memory_space<vmem>>, vector<16x512xf32>
    tpu.vector_store %arg8[%c304, %c0_113], %135 {strides = array<i32>} : memref<400x512xf32, #tpu.memory_space<vmem>>, vector<16x512xf32>,
    %c3_114 = arith.constant 3 : index
    %c0_115 = arith.constant 0 : index
    %c0_116 = arith.constant 0 : index
    %137 = vector.load %arg4[%c3_114, %c0_115, %c0_116] : memref<5x8x80xf32, #tpu.memory_space<vmem>>, vector<1x8x80xf32>
    %138 = vector.shape_cast %137 : vector<1x8x80xf32> to vector<8x80xf32>
    %c240_117 = arith.constant 240 : index
    %c0_118 = arith.constant 0 : index
    %139 = vector.load %arg8[%c240_117, %c0_118] : memref<400x512xf32, #tpu.memory_space<vmem>>, vector<80x512xf32>
    %cst_119 = arith.constant dense<0.000000e+00> : vector<8x512xf32>
    %140 = tpu.matmul %138, %139, %cst_119 {dimension_numbers = #tpu.dot_dimension_numbers<[1], [0], [0], [1], [0, 0, 1, 1], [], []>} : vector<8x80xf32>, vector<80x512xf32>, vector<8x512xf32> -> vector<8x512xf32>
    %141 = arith.addf %126, %140 : vector<8x512xf32>
    %c474_i32 = arith.constant 474 : i32
    %142 = tpu.dynamic_rotate %82 by %c474_i32 dim 1 : vector<16x512xf32>, i32 -> vector<16x512xf32>
    %c320 = arith.constant 320 : index
    %c0_120 = arith.constant 0 : index
    %143 = vector.load %arg8[%c320, %c0_120] : memref<400x512xf32, #tpu.memory_space<vmem>>, vector<16x512xf32>
    tpu.vector_store %arg8[%c320, %c0_120], %142 {strides = array<i32>} : memref<400x512xf32, #tpu.memory_space<vmem>>, vector<16x512xf32>,
    %c473_i32 = arith.constant 473 : i32
    %144 = tpu.dynamic_rotate %82 by %c473_i32 dim 1 : vector<16x512xf32>, i32 -> vector<16x512xf32>
    %c336 = arith.constant 336 : index
    %c0_121 = arith.constant 0 : index
    %145 = vector.load %arg8[%c336, %c0_121] : memref<400x512xf32, #tpu.memory_space<vmem>>, vector<16x512xf32>
    tpu.vector_store %arg8[%c336, %c0_121], %144 {strides = array<i32>} : memref<400x512xf32, #tpu.memory_space<vmem>>, vector<16x512xf32>,
    %c472_i32_122 = arith.constant 472 : i32
    %146 = tpu.dynamic_rotate %82 by %c472_i32_122 dim 1 : vector<16x512xf32>, i32 -> vector<16x512xf32>
    %c352 = arith.constant 352 : index
    %c0_123 = arith.constant 0 : index
    %147 = vector.load %arg8[%c352, %c0_123] : memref<400x512xf32, #tpu.memory_space<vmem>>, vector<16x512xf32>
    tpu.vector_store %arg8[%c352, %c0_123], %146 {strides = array<i32>} : memref<400x512xf32, #tpu.memory_space<vmem>>, vector<16x512xf32>,
    %c471_i32_124 = arith.constant 471 : i32
    %148 = tpu.dynamic_rotate %82 by %c471_i32_124 dim 1 : vector<16x512xf32>, i32 -> vector<16x512xf32>
    %c368 = arith.constant 368 : index
    %c0_125 = arith.constant 0 : index
    %149 = vector.load %arg8[%c368, %c0_125] : memref<400x512xf32, #tpu.memory_space<vmem>>, vector<16x512xf32>
    tpu.vector_store %arg8[%c368, %c0_125], %148 {strides = array<i32>} : memref<400x512xf32, #tpu.memory_space<vmem>>, vector<16x512xf32>,
    %c470_i32_126 = arith.constant 470 : i32
    %150 = tpu.dynamic_rotate %82 by %c470_i32_126 dim 1 : vector<16x512xf32>, i32 -> vector<16x512xf32>
    %c384 = arith.constant 384 : index
    %c0_127 = arith.constant 0 : index
    %151 = vector.load %arg8[%c384, %c0_127] : memref<400x512xf32, #tpu.memory_space<vmem>>, vector<16x512xf32>
    tpu.vector_store %arg8[%c384, %c0_127], %150 {strides = array<i32>} : memref<400x512xf32, #tpu.memory_space<vmem>>, vector<16x512xf32>,
    %c4_128 = arith.constant 4 : index
    %c0_129 = arith.constant 0 : index
    %c0_130 = arith.constant 0 : index
    %152 = vector.load %arg4[%c4_128, %c0_129, %c0_130] : memref<5x8x80xf32, #tpu.memory_space<vmem>>, vector<1x8x80xf32>
    %153 = vector.shape_cast %152 : vector<1x8x80xf32> to vector<8x80xf32>
    %c320_131 = arith.constant 320 : index
    %c0_132 = arith.constant 0 : index
    %154 = vector.load %arg8[%c320_131, %c0_132] : memref<400x512xf32, #tpu.memory_space<vmem>>, vector<80x512xf32>
    %cst_133 = arith.constant dense<0.000000e+00> : vector<8x512xf32>
    %155 = tpu.matmul %153, %154, %cst_133 {dimension_numbers = #tpu.dot_dimension_numbers<[1], [0], [0], [1], [0, 0, 1, 1], [], []>} : vector<8x80xf32>, vector<80x512xf32>, vector<8x512xf32> -> vector<8x512xf32>
    %156 = arith.addf %141, %155 : vector<8x512xf32>
    %c0_134 = arith.constant 0 : index
    %c0_135 = arith.constant 0 : index
    %157 = vector.load %arg5[%c0_134, %c0_135] : memref<8x1xf32, #tpu.memory_space<vmem>>, vector<8x1xf32>
    %158 = vector.broadcast %157 : vector<8x1xf32> to vector<8x512xf32>
    %159 = arith.addf %156, %158 : vector<8x512xf32>
    %cst_136 = arith.constant dense<0xFF800000> : vector<512xf32>
    %160 = vector.multi_reduction <maximumf>, %159, %cst_136 [0] : vector<8x512xf32> to vector<512xf32>
    %161 = vector.shape_cast %160 : vector<512xf32> to vector<1x512xf32>
    %162 = vector.broadcast %161 : vector<1x512xf32> to vector<8x512xf32>
    %163 = arith.subf %159, %162 : vector<8x512xf32>
    %164 = math.exp %163 : vector<8x512xf32>
    %cst_137 = arith.constant dense<0.000000e+00> : vector<512xf32>
    %165 = vector.multi_reduction <add>, %164, %cst_137 [0] : vector<8x512xf32> to vector<512xf32>
    %166 = vector.shape_cast %165 : vector<512xf32> to vector<1x512xf32>
    %167 = vector.broadcast %166 : vector<1x512xf32> to vector<8x512xf32>
    %168 = arith.divf %164, %167 : vector<8x512xf32>
    %c0_138 = arith.constant 0 : index
    %c0_139 = arith.constant 0 : index
    %169 = vector.load %arg7[%c0_138, %c0_139] : memref<8x512xf32, #tpu.memory_space<vmem>>, vector<8x512xf32>
    tpu.vector_store %arg7[%c0_138, %c0_139], %168 {strides = array<i32>} : memref<8x512xf32, #tpu.memory_space<vmem>>, vector<8x512xf32>,
    return
  }
  func.func @transform_0(%arg0: i32) -> (i32, i32) {
    %c0_i32 = arith.constant 0 : i32
    %c0_i32_0 = arith.constant 0 : i32
    return %c0_i32, %arg0 : i32, i32
  }
  func.func @transform_1(%arg0: i32) -> (i32, i32, i32) {
    %c0_i32 = arith.constant 0 : i32
    %c0_i32_0 = arith.constant 0 : i32
    %c0_i32_1 = arith.constant 0 : i32
    %c0_i32_2 = arith.constant 0 : i32
    return %c0_i32, %c0_i32_0, %c0_i32_1 : i32, i32, i32
  }
  func.func @transform_2(%arg0: i32) -> (i32, i32) {
    %c0_i32 = arith.constant 0 : i32
    %c0_i32_0 = arith.constant 0 : i32
    %c0_i32_1 = arith.constant 0 : i32
    return %c0_i32, %c0_i32_0 : i32, i32
  }
  func.func @transform_3(%arg0: i32) -> (i32, i32, i32) {
    %c0_i32 = arith.constant 0 : i32
    %c0_i32_0 = arith.constant 0 : i32
    %c0_i32_1 = arith.constant 0 : i32
    %c0_i32_2 = arith.constant 0 : i32
    return %c0_i32, %c0_i32_0, %c0_i32_1 : i32, i32, i32
  }
  func.func @transform_4(%arg0: i32) -> (i32, i32) {
    %c0_i32 = arith.constant 0 : i32
    %c0_i32_0 = arith.constant 0 : i32
    %c0_i32_1 = arith.constant 0 : i32
    return %c0_i32, %c0_i32_0 : i32, i32
  }
  func.func @transform_5(%arg0: i32) -> (i32, i32) {
    %c0_i32 = arith.constant 0 : i32
    %c0_i32_0 = arith.constant 0 : i32
    %c0_i32_1 = arith.constant 0 : i32
    return %c0_i32, %c0_i32_0 : i32, i32
  }
  func.func @transform_6(%arg0: i32) -> (i32, i32) {
    %c0_i32 = arith.constant 0 : i32
    %c0_i32_0 = arith.constant 0 : i32
    return %c0_i32, %arg0 : i32, i32
  }
}

</mosaic_0001>

<llo_original>
// kernel: tpu_custom_call.1
$region0: #{tpu_custom_call.1}
  #allocation0 [shape = 'u32[]', space=smem, size = 0x4, offset = 0x4, fixed_abs, tag = 'smem constant byte address 0x4 - core index']
  #allocation1 [shape = 'u32[144,128]{1,0:T(1,128)}', space=vmem, size = 0x12000, scoped, tag = 'internal scratch']
  #allocation2 [shape = 'f32[400,512]{1,0:T(8,128)}', space=vmem, size = 0xc8000, scoped, tag = 'scratch operand']
  %s0 = inlined_call_operand.hbm [shape: f32[8,1024], index: 0, kind: input, shape index: {}]
  %s1 = inlined_call_operand.hbm [shape: f32[5,16,40], index: 1, kind: input, shape index: {}]
  %s2 = inlined_call_operand.vmem [shape: f32[16,1], index: 2, kind: input, shape index: {}]
  %s3 = inlined_call_operand.hbm [shape: f32[5,8,80], index: 3, kind: input, shape index: {}]
  %s4 = inlined_call_operand.vmem [shape: f32[8,1], index: 4, kind: input, shape index: {}]
  %s5 = inlined_call_operand.vmem [shape: f32[1,512], index: 5, kind: input, shape index: {}]
  %s6 = inlined_call_operand.hbm [shape: f32[8,1024], index: 6, kind: output, shape index: {}]
  %s7 = sld [smem:[#allocation0]]
  $region69: #{tpu_custom_call.1} parent=0
    _
  %s9 = ssub.s32 1, %s7
  %s10 = scalar_select 0, %s9, %s7
  $region1: #{tpu_custom_call.1} parent=0
    #allocation3 [shape = 'u8[32768]{0}', space=vmem, size = 0x8000, scoped, tag = 'input window, operand 0']
    #allocation4 [shape = 's32[2]{0}', space=sflag, size = 0x8, scoped, tag = 'scoped memory for tpu_custom_call.1']
    #allocation5 [shape = 's32[2]{0}', space=sflag, size = 0x8, scoped, tag = 'scoped memory for tpu_custom_call.1']
    #allocation6 [shape = 'u8[40960]{0}', space=vmem, size = 0xa000, scoped, tag = 'input window, operand 1, single buffered']
    #allocation7 [shape = 's32[1]{0}', space=sflag, size = 0x4, scoped, tag = 'scoped memory for tpu_custom_call.1']
    #allocation8 [shape = 'u8[20480]{0}', space=vmem, size = 0x5000, scoped, tag = 'input window, operand 3, single buffered']
    #allocation9 [shape = 'u8[32768]{0}', space=vmem, size = 0x8000, scoped, tag = 'output window, operand 0']
    %11 = vsyncpa [#allocation4], 0
    %s12 = scalar_lea.sflag [#allocation4], 1
    %13 = vsyncpa %s12, 0
    %14 = vsyncpa [#allocation7], 0
    %15 = vsyncpa [#allocation5], 0
    %s16 = scalar_lea.sflag [#allocation5], 1
    %17 = vsyncpa %s16, 0
    loop: start=0, step=1, limit=4
    $region2: #{tpu_custom_call.1} parent=1 // loop_pre_header
      _
    $region3: #{tpu_custom_call.1} parent=1 // loop_header
      %s19 = sphi 0, %s23
      %p20 = scmp.ge.s32.totalorder %s19, 4
      %s29 = sphi 0, %s31
      %s32 = sphi 0, %s29
      %s33 = sphi 0, %s32
      %s49 = sphi 0, %s33
      %s53 = sphi 0, %s53
      %s55 = sphi 0, %s53
      %s56 = sphi 0, %s55
      %s70 = sphi 0, %s56
      %s74 = sphi 0, %s74
      %s76 = sphi 0, %s74
      %s77 = sphi 0, %s76
      %s91 = sphi 0, %s77
      %s95 = sphi 0, %s95
      %s97 = sphi 0, %s95
      %s98 = sphi 0, %s97
      %s112 = sphi 0, %s98
      %s116 = sphi 0, %s116
      %s118 = sphi 0, %s116
      %s119 = sphi 0, %s118
      %s133 = sphi 0, %s119
      %s137 = sphi 0, %s137
      %s139 = sphi 0, %s137
      %s140 = sphi 0, %s139
      %s154 = sphi 0, %s140
      %s160 = sphi 0, %s162
      %s163 = sphi 0, %s160
      %s164 = sphi 0, %s163
      %s180 = sphi 0, %s164
    $region4: #{tpu_custom_call.1} parent=1 // loop_header_branch
      %22 = sbr.rel (%p20) target = $region8
    $region5: #{tpu_custom_call.1} parent=1 // loop_body
      %s24 = ssub.s32 %s19, 1
      %s25 = ssub.s32 %s19, 2
      %s26 = sadd.s32 %s19, 1
      %s27 = ssub.s32 %s19, %s26
      %p28 = scmp.eq.s32.totalorder %s27, 0
      %s30 = sadd.s32 %s29, 1
      %s31 = scalar_select %p28, %s29, %s30
      %p34 = pneg %p28
      %p35 = scmp.eq.s32.totalorder %s19, 1
      %p36 = por %p34, %p35
      %p37 = scmp.ne.s32.totalorder %s29, %s32
      %p38 = scmp.eq.s32.totalorder %s19, 0
      %p39 = por %p37, %p38
      %p40 = scmp.ne.s32.totalorder %s29, %s32
      %p41 = scmp.eq.s32.totalorder %s24, 1
      %p42 = por %p40, %p41
      %p43 = scmp.ne.s32.totalorder %s32, %s33
      %p44 = scmp.eq.s32.totalorder %s24, 0
      %p45 = por %p43, %p44
      %p46 = scmp.ne.s32.totalorder %s32, %s33
      %p47 = scmp.eq.s32.totalorder %s25, 1
      %p48 = por %p46, %p47
      %p50 = scmp.ne.s32.totalorder %s33, %s49
      %p51 = scmp.eq.s32.totalorder %s25, 0
      %p52 = por %p50, %p51
      %s54 = sadd.s32 %s53, 1
      %p57 = scmp.eq.s32.totalorder %s19, 1
      %p58 = scmp.ne.s32.totalorder %s53, %s55
      %p59 = scmp.eq.s32.totalorder %s19, 0
      %p60 = por %p58, %p59
      %p61 = scmp.ne.s32.totalorder %s53, %s55
      %p62 = scmp.eq.s32.totalorder %s24, 1
      %p63 = por %p61, %p62
      %p64 = scmp.ne.s32.totalorder %s55, %s56
      %p65 = scmp.eq.s32.totalorder %s24, 0
      %p66 = por %p64, %p65
      %p67 = scmp.ne.s32.totalorder %s55, %s56
      %p68 = scmp.eq.s32.totalorder %s25, 1
      %p69 = por %p67, %p68
      %p71 = scmp.ne.s32.totalorder %s56, %s70
      %p72 = scmp.eq.s32.totalorder %s25, 0
      %p73 = por %p71, %p72
      %s75 = sadd.s32 %s74, 1
      %p78 = scmp.eq.s32.totalorder %s19, 1
      %p79 = scmp.ne.s32.totalorder %s74, %s76
      %p80 = scmp.eq.s32.totalorder %s19, 0
      %p81 = por %p79, %p80
      %p82 = scmp.ne.s32.totalorder %s74, %s76
      %p83 = scmp.eq.s32.totalorder %s24, 1
      %p84 = por %p82, %p83
      %p85 = scmp.ne.s32.totalorder %s76, %s77
      %p86 = scmp.eq.s32.totalorder %s24, 0
      %p87 = por %p85, %p86
      %p88 = scmp.ne.s32.totalorder %s76, %s77
      %p89 = scmp.eq.s32.totalorder %s25, 1
      %p90 = por %p88, %p89
      %p92 = scmp.ne.s32.totalorder %s77, %s91
      %p93 = scmp.eq.s32.totalorder %s25, 0
      %p94 = por %p92, %p93
      %s96 = sadd.s32 %s95, 1
      %p99 = scmp.eq.s32.totalorder %s19, 1
      %p100 = scmp.ne.s32.totalorder %s95, %s97
      %p101 = scmp.eq.s32.totalorder %s19, 0
      %p102 = por %p100, %p101
      %p103 = scmp.ne.s32.totalorder %s95, %s97
      %p104 = scmp.eq.s32.totalorder %s24, 1
      %p105 = por %p103, %p104
      %p106 = scmp.ne.s32.totalorder %s97, %s98
      %p107 = scmp.eq.s32.totalorder %s24, 0
      %p108 = por %p106, %p107
      %p109 = scmp.ne.s32.totalorder %s97, %s98
      %p110 = scmp.eq.s32.totalorder %s25, 1
      %p111 = por %p109, %p110
      %p113 = scmp.ne.s32.totalorder %s98, %s112
      %p114 = scmp.eq.s32.totalorder %s25, 0
      %p115 = por %p113, %p114
      %s117 = sadd.s32 %s116, 1
      %p120 = scmp.eq.s32.totalorder %s19, 1
      %p121 = scmp.ne.s32.totalorder %s116, %s118
      %p122 = scmp.eq.s32.totalorder %s19, 0
      %p123 = por %p121, %p122
      %p124 = scmp.ne.s32.totalorder %s116, %s118
      %p125 = scmp.eq.s32.totalorder %s24, 1
      %p126 = por %p124, %p125
      %p127 = scmp.ne.s32.totalorder %s118, %s119
      %p128 = scmp.eq.s32.totalorder %s24, 0
      %p129 = por %p127, %p128
      %p130 = scmp.ne.s32.totalorder %s118, %s119
      %p131 = scmp.eq.s32.totalorder %s25, 1
      %p132 = por %p130, %p131
      %p134 = scmp.ne.s32.totalorder %s119, %s133
      %p135 = scmp.eq.s32.totalorder %s25, 0
      %p136 = por %p134, %p135
      %s138 = sadd.s32 %s137, 1
      %p141 = scmp.eq.s32.totalorder %s19, 1
      %p142 = scmp.ne.s32.totalorder %s137, %s139
      %p143 = scmp.eq.s32.totalorder %s19, 0
      %p144 = por %p142, %p143
      %p145 = scmp.ne.s32.totalorder %s137, %s139
      %p146 = scmp.eq.s32.totalorder %s24, 1
      %p147 = por %p145, %p146
      %p148 = scmp.ne.s32.totalorder %s139, %s140
      %p149 = scmp.eq.s32.totalorder %s24, 0
      %p150 = por %p148, %p149
      %p151 = scmp.ne.s32.totalorder %s139, %s140
      %p152 = scmp.eq.s32.totalorder %s25, 1
      %p153 = por %p151, %p152
      %p155 = scmp.ne.s32.totalorder %s140, %s154
      %p156 = scmp.eq.s32.totalorder %s25, 0
      %p157 = por %p155, %p156
      %s158 = ssub.s32 %s19, %s26
      %p159 = scmp.eq.s32.totalorder %s158, 0
      %s161 = sadd.s32 %s160, 1
      %s162 = scalar_select %p159, %s160, %s161
      %p165 = pneg %p159
      %p166 = scmp.eq.s32.totalorder %s19, 1
      %p167 = por %p165, %p166
      %p168 = scmp.ne.s32.totalorder %s160, %s163
      %p169 = scmp.eq.s32.totalorder %s19, 0
      %p170 = por %p168, %p169
      %p171 = scmp.ne.s32.totalorder %s160, %s163
      %p172 = scmp.eq.s32.totalorder %s24, 1
      %p173 = por %p171, %p172
      %p174 = scmp.ne.s32.totalorder %s163, %s164
      %p175 = scmp.eq.s32.totalorder %s24, 0
      %p176 = por %p174, %p175
      %p177 = scmp.ne.s32.totalorder %s163, %s164
      %p178 = scmp.eq.s32.totalorder %s25, 1
      %p179 = por %p177, %p178
      %p181 = scmp.ne.s32.totalorder %s164, %s180
      %p182 = scmp.eq.s32.totalorder %s25, 0
      %p183 = por %p181, %p182
      %p184 = scmp.le.s32.totalorder 1, %s19
      %p185 = scmp.lt.s32.totalorder %s19, 3
      %p186 = pnand %p184, %p185
      %p187 = pneg %p186
      // Predicated region
      $region9: #{tpu_custom_call.1} parent=5 // pred_check
        _
      $region10: #{tpu_custom_call.1} parent=5 // pred_check_branch
        %189 = sbr.rel (%p186) target = $region12
      $region11: #{tpu_custom_call.1} parent=5 // pred_region
        %s190 = ssub.s32 %s19, 1
        // Predicated region
        $region13: #{tpu_custom_call.1} parent=11 // pred_check
          %p191 = pneg %p66
        $region14: #{tpu_custom_call.1} parent=11 // pred_check_branch
          %193 = sbr.rel (%p191) target = $region16
        $region15: #{tpu_custom_call.1} parent=11 // pred_region
          %s195 = ssub.s32 1280, 1280
          %196 = vsyncadd [#allocation7], %s195
          %s197 = sshll.u32 [#allocation6], 4
          %s198 = int_to_ptr.vmem [resolvable:$true] %s197
          %203 = dma.hbm_to_vmem [thread:$0]  %s1, 1280, %s198, [#allocation7], 128, 128, 8
        $region16: #{tpu_custom_call.1} parent=11 // pred_fallthru
          _
        // Predicated region
        $region17: #{tpu_custom_call.1} parent=11 // pred_check
          %p204 = pneg %p87
        $region18: #{tpu_custom_call.1} parent=11 // pred_check_branch
          %206 = sbr.rel (%p204) target = $region20
        $region19: #{tpu_custom_call.1} parent=11 // pred_region
          _
        $region20: #{tpu_custom_call.1} parent=11 // pred_fallthru
          _
        // Predicated region
        $region21: #{tpu_custom_call.1} parent=11 // pred_check
          %p207 = pneg %p108
        $region22: #{tpu_custom_call.1} parent=11 // pred_check_branch
          %209 = sbr.rel (%p207) target = $region24
        $region23: #{tpu_custom_call.1} parent=11 // pred_region
          %s211 = ssub.s32 640, 640
          %212 = vsyncadd [#allocation7], %s211
          %s213 = sshll.u32 [#allocation8], 4
          %s214 = int_to_ptr.vmem [resolvable:$true] %s213
          %219 = dma.hbm_to_vmem [thread:$0]  %s3, 640, %s214, [#allocation7], 128, 128, 8
        $region24: #{tpu_custom_call.1} parent=11 // pred_fallthru
          _
        // Predicated region
        $region25: #{tpu_custom_call.1} parent=11 // pred_check
          %p220 = pneg %p129
        $region26: #{tpu_custom_call.1} parent=11 // pred_check_branch
          %222 = sbr.rel (%p220) target = $region28
        $region27: #{tpu_custom_call.1} parent=11 // pred_region
          _
        $region28: #{tpu_custom_call.1} parent=11 // pred_fallthru
          _
        // Predicated region
        $region29: #{tpu_custom_call.1} parent=11 // pred_check
          %p223 = pneg %p150
        $region30: #{tpu_custom_call.1} parent=11 // pred_check_branch
          %225 = sbr.rel (%p223) target = $region32
        $region31: #{tpu_custom_call.1} parent=11 // pred_region
          _
        $region32: #{tpu_custom_call.1} parent=11 // pred_fallthru
          _
      $region12: #{tpu_custom_call.1} parent=5 // pred_fallthru
        _
      %p226 = scmp.lt.s32.totalorder %s19, 2
      // Predicated region
      $region33: #{tpu_custom_call.1} parent=5 // pred_check
        %p227 = pneg %p226
      $region34: #{tpu_custom_call.1} parent=5 // pred_check_branch
        %229 = sbr.rel (%p227) target = $region36
      $region35: #{tpu_custom_call.1} parent=5 // pred_region
        // Predicated region
        $region37: #{tpu_custom_call.1} parent=35 // pred_check
          %p230 = pneg %p39
        $region38: #{tpu_custom_call.1} parent=35 // pred_check_branch
          %232 = sbr.rel (%p230) target = $region40
        $region39: #{tpu_custom_call.1} parent=35 // pred_region
          %s233 = sand.u32 %s29, 1
          %s234 = scalar_lea.sflag [#allocation4], %s233
          %s235 = sand.u32 %s29, 1
          %s236 = smul.addr %s235, 32
          %s237 = scalar_lea.vmem [#allocation3], %s236
          %s238 = smul.u32 4, %s19
          %s240 = ssub.s32 512, 512
          %241 = vsyncadd %s234, %s240
          %s242 = smul.addr %s238, 128
          %s243 = scalar_lea.hbm %s0, %s242
          %s245 = sshll.u32 %s237, 4
          %s246 = int_to_ptr.vmem [resolvable:$true] %s245
          %248 = dma.hbm_to_vmem [thread:$0]  %s243, 512, %s246, %s234
        $region40: #{tpu_custom_call.1} parent=35 // pred_fallthru
          _
      $region36: #{tpu_custom_call.1} parent=5 // pred_fallthru
        _
      %p249 = scmp.le.s32.totalorder 1, %s19
      %p250 = scmp.lt.s32.totalorder %s19, 3
      %p251 = pnand %p249, %p250
      %p252 = pneg %p251
      // Predicated region
      $region41: #{tpu_custom_call.1} parent=5 // pred_check
        _
      $region42: #{tpu_custom_call.1} parent=5 // pred_check_branch
        %254 = sbr.rel (%p251) target = $region44
      $region43: #{tpu_custom_call.1} parent=5 // pred_region
        %s255 = ssub.s32 %s19, 1
        %s256 = sand.u32 %s32, 1
        %s257 = scalar_lea.sflag [#allocation4], %s256
        %s258 = sand.u32 %s32, 1
        %s259 = smul.addr %s258, 32
        %s260 = scalar_lea.vmem [#allocation3], %s259
        // Predicated region
        $region45: #{tpu_custom_call.1} parent=43 // pred_check
          %p261 = pneg %p45
        $region46: #{tpu_custom_call.1} parent=43 // pred_check_branch
          %263 = sbr.rel (%p261) target = $region48
        $region47: #{tpu_custom_call.1} parent=43 // pred_region
          %264 = dma.done %s257, 512
        $region48: #{tpu_custom_call.1} parent=43 // pred_fallthru
          _
        // Predicated region
        $region49: #{tpu_custom_call.1} parent=43 // pred_check
          %p265 = pneg %p66
        $region50: #{tpu_custom_call.1} parent=43 // pred_check_branch
          %267 = sbr.rel (%p265) target = $region52
        $region51: #{tpu_custom_call.1} parent=43 // pred_region
          %268 = dma.done [#allocation7], 1280
        $region52: #{tpu_custom_call.1} parent=43 // pred_fallthru
          _
        // Predicated region
        $region53: #{tpu_custom_call.1} parent=43 // pred_check
          %p269 = pneg %p108
        $region54: #{tpu_custom_call.1} parent=43 // pred_check_branch
          %271 = sbr.rel (%p269) target = $region56
        $region55: #{tpu_custom_call.1} parent=43 // pred_region
          %272 = dma.done [#allocation7], 640
        $region56: #{tpu_custom_call.1} parent=43 // pred_fallthru
          _
        %s273 = sand.u32 %s32, 1
        %s274 = scalar_lea.sflag [#allocation4], %s273
        %s275 = sand.u32 %s32, 1
        %s276 = smul.addr %s275, 32
        %s277 = scalar_lea.vmem [#allocation3], %s276
        %p278 = pneg %p45
        %p279 = pneg %p42
        %p280 = pneg %p66
        %p281 = pneg %p63
        %p282 = pneg %p87
        %p283 = pneg %p84
        %p284 = pneg %p108
        %p285 = pneg %p105
        %p286 = pneg %p129
        %p287 = pneg %p126
        %p288 = pneg %p150
        %p289 = pneg %p147
        %p290 = pneg %p176
        %p291 = pneg %p173
        %s292 = sand.u32 %s163, 1
        %s293 = scalar_lea.sflag [#allocation5], %s292
        %s294 = sand.u32 %s163, 1
        %s295 = smul.addr %s294, 32
        %s296 = scalar_lea.vmem [#allocation9], %s295
        %s297 = smul.u32 4, %s24
        %s298 = smul.u32 4, %s24
        %v299 = vld [vmem:[%s5] sm:$0xf]
        %v300 = vld [vmem:[%s260] sm:$0xff]
        %v301 = vld [vmem:[%s260 + $0x8] sm:$0xff]
        %v302 = vld [vmem:[%s260 + $0x10] sm:$0xff]
        %v303 = vld [vmem:[%s260 + $0x18] sm:$0xff]
        %304 = vst [vmem:[#allocation2] sm:$0xff] %v300
        %305 = vst [vmem:[#allocation2 + $0x8] sm:$0xff] %v301
        %306 = vst [vmem:[#allocation2 + $0x10] sm:$0xff] %v302
        %307 = vst [vmem:[#allocation2 + $0x18] sm:$0xff] %v303
        %308 = vrot.lane.b32.xlu0 %v300, 127
        %v309 = vpop.permute.xlu0 %308
        %310 = vrot.lane.b32.xlu0 %v301, 127
        %v311 = vpop.permute.xlu0 %310
        %312 = vrot.lane.b32.xlu0 %v302, 127
        %v313 = vpop.permute.xlu0 %312
        %314 = vrot.lane.b32.xlu0 %v303, 127
        %v315 = vpop.permute.xlu0 %314
        %v316 = vlaneseq
        %v317 = vand.u32 %v316, 127
        %vm318 = vcmp.lt.s32.totalorder %v317, 127
        %v319 = vsel %vm318, %v313, %v315
        %v320 = vsel %vm318, %v311, %v313
        %v321 = vsel %vm318, %v309, %v311
        %v322 = vsel %vm318, %v315, %v309
        %323 = vst [vmem:[#allocation2 + $0x20] sm:$0xff] %v321
        %324 = vst [vmem:[#allocation2 + $0x28] sm:$0xff] %v320
        %325 = vst [vmem:[#allocation2 + $0x30] sm:$0xff] %v319
        %326 = vst [vmem:[#allocation2 + $0x38] sm:$0xff] %v322
        %327 = vrot.lane.b32.xlu0 %v300, 126
        %v328 = vpop.permute.xlu0 %327
        %329 = vrot.lane.b32.xlu0 %v301, 126
        %v330 = vpop.permute.xlu0 %329
        %331 = vrot.lane.b32.xlu0 %v302, 126
        %v332 = vpop.permute.xlu0 %331
        %333 = vrot.lane.b32.xlu0 %v303, 126
        %v334 = vpop.permute.xlu0 %333
        %vm335 = vcmp.lt.s32.totalorder %v317, 126
        %v336 = vsel %vm335, %v332, %v334
        %v337 = vsel %vm335, %v330, %v332
        %v338 = vsel %vm335, %v328, %v330
        %v339 = vsel %vm335, %v334, %v328
        %340 = vst [vmem:[#allocation2 + $0x40] sm:$0xff] %v338
        %341 = vst [vmem:[#allocation2 + $0x48] sm:$0xff] %v337
        %342 = vst [vmem:[#allocation2 + $0x50] sm:$0xff] %v336
        %343 = vst [vmem:[#allocation2 + $0x58] sm:$0xff] %v339
        %344 = vrot.lane.b32.xlu0 %v300, 125
        %v345 = vpop.permute.xlu0 %344
        %346 = vrot.lane.b32.xlu0 %v301, 125
        %v347 = vpop.permute.xlu0 %346
        %348 = vrot.lane.b32.xlu0 %v302, 125
        %v349 = vpop.permute.xlu0 %348
        %350 = vrot.lane.b32.xlu0 %v303, 125
        %v351 = vpop.permute.xlu0 %350
        %vm352 = vcmp.lt.s32.totalorder %v317, 125
        %v353 = vsel %vm352, %v349, %v351
        %v354 = vsel %vm352, %v347, %v349
        %v355 = vsel %vm352, %v345, %v347
        %v356 = vsel %vm352, %v351, %v345
        %357 = vst [vmem:[#allocation2 + $0x60] sm:$0xff] %v355
        %358 = vst [vmem:[#allocation2 + $0x68] sm:$0xff] %v354
        %359 = vst [vmem:[#allocation2 + $0x70] sm:$0xff] %v353
        %360 = vst [vmem:[#allocation2 + $0x78] sm:$0xff] %v356
        %361 = vrot.lane.b32.xlu0 %v300, 124
        %v362 = vpop.permute.xlu0 %361
        %363 = vrot.lane.b32.xlu0 %v301, 124
        %v364 = vpop.permute.xlu0 %363
        %365 = vrot.lane.b32.xlu0 %v302, 124
        %v366 = vpop.permute.xlu0 %365
        %367 = vrot.lane.b32.xlu0 %v303, 124
        %v368 = vpop.permute.xlu0 %367
        %vm369 = vcmp.lt.s32.totalorder %v317, 124
        %v370 = vsel %vm369, %v366, %v368
        %v371 = vsel %vm369, %v364, %v366
        %v372 = vsel %vm369, %v362, %v364
        %v373 = vsel %vm369, %v368, %v362
        %374 = vst [vmem:[#allocation2 + $0x80] sm:$0xff] %v372
        %375 = vst [vmem:[#allocation2 + $0x88] sm:$0xff] %v371
        %376 = vst [vmem:[#allocation2 + $0x90] sm:$0xff] %v370
        %377 = vst [vmem:[#allocation2 + $0x98] sm:$0xff] %v373
        %v378 = vld [vmem:[#allocation6] sm:$0xff]
        %v379 = vld [vmem:[#allocation6 + $0x8] sm:$0xff]
        %v380 = vld [vmem:[#allocation2] sm:$0xff]
        %v381 = vld [vmem:[#allocation2 + $0x8] sm:$0xff]
        %v382 = vld [vmem:[#allocation2 + $0x10] sm:$0xff]
        %v383 = vld [vmem:[#allocation2 + $0x18] sm:$0xff]
        %v384 = vld [vmem:[#allocation2 + $0x20] sm:$0xff]
        %v385 = vld [vmem:[#allocation2 + $0x28] sm:$0xff]
        %v386 = vld [vmem:[#allocation2 + $0x30] sm:$0xff]
        %v387 = vld [vmem:[#allocation2 + $0x38] sm:$0xff]
        %v388 = vld [vmem:[#allocation2 + $0x40] sm:$0xff]
        %v389 = vld [vmem:[#allocation2 + $0x48] sm:$0xff]
        %v390 = vld [vmem:[#allocation2 + $0x50] sm:$0xff]
        %v391 = vld [vmem:[#allocation2 + $0x58] sm:$0xff]
        %v392 = vld [vmem:[#allocation2 + $0x60] sm:$0xff]
        %v393 = vld [vmem:[#allocation2 + $0x68] sm:$0xff]
        %v394 = vld [vmem:[#allocation2 + $0x70] sm:$0xff]
        %v395 = vld [vmem:[#allocation2 + $0x78] sm:$0xff]
        %v396 = vld [vmem:[#allocation2 + $0x80] sm:$0xff]
        %v397 = vld [vmem:[#allocation2 + $0x88] sm:$0xff]
        %v398 = vld [vmem:[#allocation2 + $0x90] sm:$0xff]
        %v399 = vld [vmem:[#allocation2 + $0x98] sm:$0xff]
        %400 = vrot.lane.b32.xlu0 %v300, 108
        %v401 = vpop.permute.xlu0 %400
        %402 = vrot.lane.b32.xlu0 %v301, 108
        %v403 = vpop.permute.xlu0 %402
        %404 = vrot.lane.b32.xlu0 %v302, 108
        %v405 = vpop.permute.xlu0 %404
        %406 = vrot.lane.b32.xlu0 %v303, 108
        %v407 = vpop.permute.xlu0 %406
        %vm408 = vcmp.lt.s32.totalorder %v317, 108
        %v409 = vsel %vm408, %v405, %v407
        %v410 = vsel %vm408, %v403, %v405
        %v411 = vsel %vm408, %v401, %v403
        %v412 = vsel %vm408, %v407, %v401
        %413 = vst [vmem:[#allocation2 + $0xa0] sm:$0xff] %v411
        %414 = vst [vmem:[#allocation2 + $0xa8] sm:$0xff] %v410
        %415 = vst [vmem:[#allocation2 + $0xb0] sm:$0xff] %v409
        %416 = vst [vmem:[#allocation2 + $0xb8] sm:$0xff] %v412
        %417 = vrot.lane.b32.xlu0 %v300, 107
        %v418 = vpop.permute.xlu0 %417
        %419 = vrot.lane.b32.xlu0 %v301, 107
        %v420 = vpop.permute.xlu0 %419
        %421 = vrot.lane.b32.xlu0 %v302, 107
        %v422 = vpop.permute.xlu0 %421
        %423 = vrot.lane.b32.xlu0 %v303, 107
        %v424 = vpop.permute.xlu0 %423
        %vm425 = vcmp.lt.s32.totalorder %v317, 107
        %v426 = vsel %vm425, %v422, %v424
        %v427 = vsel %vm425, %v420, %v422
        %v428 = vsel %vm425, %v418, %v420
        %v429 = vsel %vm425, %v424, %v418
        %430 = vst [vmem:[#allocation2 + $0xc0] sm:$0xff] %v428
        %431 = vst [vmem:[#allocation2 + $0xc8] sm:$0xff] %v427
        %432 = vst [vmem:[#allocation2 + $0xd0] sm:$0xff] %v426
        %433 = vst [vmem:[#allocation2 + $0xd8] sm:$0xff] %v429
        %434 = vrot.lane.b32.xlu0 %v300, 106
        %v435 = vpop.permute.xlu0 %434
        %436 = vrot.lane.b32.xlu0 %v301, 106
        %v437 = vpop.permute.xlu0 %436
        %438 = vrot.lane.b32.xlu0 %v302, 106
        %v439 = vpop.permute.xlu0 %438
        %440 = vrot.lane.b32.xlu0 %v303, 106
        %v441 = vpop.permute.xlu0 %440
        %vm442 = vcmp.lt.s32.totalorder %v317, 106
        %v443 = vsel %vm442, %v439, %v441
        %v444 = vsel %vm442, %v437, %v439
        %v445 = vsel %vm442, %v435, %v437
        %v446 = vsel %vm442, %v441, %v435
        %447 = vst [vmem:[#allocation2 + $0xe0] sm:$0xff] %v445
        %448 = vst [vmem:[#allocation2 + $0xe8] sm:$0xff] %v444
        %449 = vst [vmem:[#allocation2 + $0xf0] sm:$0xff] %v443
        %450 = vst [vmem:[#allocation2 + $0xf8] sm:$0xff] %v446
        %451 = vrot.lane.b32.xlu0 %v300, 105
        %v452 = vpop.permute.xlu0 %451
        %453 = vrot.lane.b32.xlu0 %v301, 105
        %v454 = vpop.permute.xlu0 %453
        %455 = vrot.lane.b32.xlu0 %v302, 105
        %v456 = vpop.permute.xlu0 %455
        %457 = vrot.lane.b32.xlu0 %v303, 105
        %v458 = vpop.permute.xlu0 %457
        %vm459 = vcmp.lt.s32.totalorder %v317, 105
        %v460 = vsel %vm459, %v456, %v458
        %v461 = vsel %vm459, %v454, %v456
        %v462 = vsel %vm459, %v452, %v454
        %v463 = vsel %vm459, %v458, %v452
        %464 = vst [vmem:[#allocation2 + $0x100] sm:$0xff] %v462
        %465 = vst [vmem:[#allocation2 + $0x108] sm:$0xff] %v461
        %466 = vst [vmem:[#allocation2 + $0x110] sm:$0xff] %v460
        %467 = vst [vmem:[#allocation2 + $0x118] sm:$0xff] %v463
        %468 = vrot.lane.b32.xlu0 %v300, 104
        %v469 = vpop.permute.xlu0 %468
        %470 = vrot.lane.b32.xlu0 %v301, 104
        %v471 = vpop.permute.xlu0 %470
        %472 = vrot.lane.b32.xlu0 %v302, 104
        %v473 = vpop.permute.xlu0 %472
        %474 = vrot.lane.b32.xlu0 %v303, 104
        %v475 = vpop.permute.xlu0 %474
        %vm476 = vcmp.lt.s32.totalorder %v317, 104
        %v477 = vsel %vm476, %v473, %v475
        %v478 = vsel %vm476, %v471, %v473
        %v479 = vsel %vm476, %v469, %v471
        %v480 = vsel %vm476, %v475, %v469
        %481 = vst [vmem:[#allocation2 + $0x120] sm:$0xff] %v479
        %482 = vst [vmem:[#allocation2 + $0x128] sm:$0xff] %v478
        %483 = vst [vmem:[#allocation2 + $0x130] sm:$0xff] %v477
        %484 = vst [vmem:[#allocation2 + $0x138] sm:$0xff] %v480
        %s485 = scalar_lea.vmem [#allocation6], 16
        %v486 = vld [vmem:[%s485] sm:$0xff]
        %v487 = vld [vmem:[%s485 + $0x8] sm:$0xff]
        %v488 = vld [vmem:[#allocation2 + $0xa0] sm:$0xff]
        %v489 = vld [vmem:[#allocation2 + $0xa8] sm:$0xff]
        %v490 = vld [vmem:[#allocation2 + $0xb0] sm:$0xff]
        %v491 = vld [vmem:[#allocation2 + $0xb8] sm:$0xff]
        %v492 = vld [vmem:[#allocation2 + $0xc0] sm:$0xff]
        %v493 = vld [vmem:[#allocation2 + $0xc8] sm:$0xff]
        %v494 = vld [vmem:[#allocation2 + $0xd0] sm:$0xff]
        %v495 = vld [vmem:[#allocation2 + $0xd8] sm:$0xff]
        %v496 = vld [vmem:[#allocation2 + $0xe0] sm:$0xff]
        %v497 = vld [vmem:[#allocation2 + $0xe8] sm:$0xff]
        %v498 = vld [vmem:[#allocation2 + $0xf0] sm:$0xff]
        %v499 = vld [vmem:[#allocation2 + $0xf8] sm:$0xff]
        %v500 = vld [vmem:[#allocation2 + $0x100] sm:$0xff]
        %v501 = vld [vmem:[#allocation2 + $0x108] sm:$0xff]
        %v502 = vld [vmem:[#allocation2 + $0x110] sm:$0xff]
        %v503 = vld [vmem:[#allocation2 + $0x118] sm:$0xff]
        %v504 = vld [vmem:[#allocation2 + $0x120] sm:$0xff]
        %v505 = vld [vmem:[#allocation2 + $0x128] sm:$0xff]
        %v506 = vld [vmem:[#allocation2 + $0x130] sm:$0xff]
        %v507 = vld [vmem:[#allocation2 + $0x138] sm:$0xff]
        %vm508 = vcmask 326656
        %v510 = vsel %vm508, %v486, 0
        %v513 = vsel %vm508, %v487, 0
        %515 = vmatprep.subr.mxu0 0.0
        %516 = vmatpush1.msra.mxu0 0.0
        %517 = vmatprep.subr.mxu0 0.0
        %518 = vmatpush1.msra.mxu0 0.0
        %519 = vmatprep.subr.mxu0 0.0
        %520 = vmatpush1.msra.mxu0 0.0
        %521 = vmatprep.subr.mxu0 0.0
        %522 = vmatpush1.msra.mxu0 0.0
        %523 = vmatprep.subr.mxu0 0.0
        %524 = vmatpush1.msra.mxu0 0.0
        %525 = vmatprep.subr.mxu0 0.0
        %526 = vmatpush1.msra.mxu0 0.0
        %527 = vmatprep.subr.mxu0 0.0
        %528 = vmatpush1.msra.mxu0 0.0
        %529 = vmatprep.subr.mxu0 0.0
        %530 = vmatpush1.msra.mxu0 0.0
        %531 = vmatprep.subr.mxu0 0.0
        %532 = vmatpush1.msra.mxu0 0.0
        %533 = vmatprep.subr.mxu0 0.0
        %534 = vmatpush1.msra.mxu0 0.0
        %535 = vmatprep.subr.mxu0 0.0
        %536 = vmatpush1.msra.mxu0 0.0
        %537 = vmatprep.subr.mxu0 %v505
        %538 = vmatpush1.msra.mxu0 %v504
        %539 = vmatprep.subr.mxu0 %v501
        %540 = vmatpush1.msra.mxu0 %v500
        %541 = vmatprep.subr.mxu0 %v497
        %542 = vmatpush1.msra.mxu0 %v496
        %543 = vmatprep.subr.mxu0 %v493
        %544 = vmatpush1.msra.mxu0 %v492
        %545 = vmatprep.subr.mxu0 %v489
        %546 = vmatpush1.msra.mxu0 %v488
        %547 = vmatprep.subr.mxu0 0.0
        %548 = vmatpush2.msra.mxu0 0.0
        %549 = vmatprep.subr.mxu0 0.0
        %550 = vmatpush2.msra.mxu0 0.0
        %551 = vmatprep.subr.mxu0 0.0
        %552 = vmatpush2.msra.mxu0 0.0
        %553 = vmatprep.subr.mxu0 0.0
        %554 = vmatpush2.msra.mxu0 0.0
        %555 = vmatprep.subr.mxu0 0.0
        %556 = vmatpush2.msra.mxu0 0.0
        %557 = vmatprep.subr.mxu0 0.0
        %558 = vmatpush2.msra.mxu0 0.0
        %559 = vmatprep.subr.mxu0 0.0
        %560 = vmatpush2.msra.mxu0 0.0
        %561 = vmatprep.subr.mxu0 0.0
        %562 = vmatpush2.msra.mxu0 0.0
        %563 = vmatprep.subr.mxu0 0.0
        %564 = vmatpush2.msra.mxu0 0.0
        %565 = vmatprep.subr.mxu0 0.0
        %566 = vmatpush2.msra.mxu0 0.0
        %567 = vmatprep.subr.mxu0 0.0
        %568 = vmatpush2.msra.mxu0 0.0
        %569 = vmatprep.subr.mxu0 0.0
        %570 = vmatpush2.msra.mxu0 0.0
        %571 = vmatprep.subr.mxu0 0.0
        %572 = vmatpush2.msra.mxu0 0.0
        %573 = vmatprep.subr.mxu0 0.0
        %574 = vmatpush2.msra.mxu0 0.0
        %575 = vmatprep.subr.mxu0 0.0
        %576 = vmatpush2.msra.mxu0 0.0
        %577 = vmatprep.subr.mxu0 0.0
        %578 = vmatpush2.msra.mxu0 0.0
        %579 = vmatprep.mubr.f32.mxu0 0.0
        %580 = vmatmul.mubr.f32.gmra.mxu0 %v510
        %v581 = vpop.f32.mrf.mxu0
        %v582 = vadd.f32 0.0, %v581
        %v583 = vpop.f32.mrf.mxu0
        %v584 = vadd.f32 0.0, %v583
        %585 = vmatprep.mubr.f32.mxu0 0.0
        %586 = vmatmul.mubr.f32.gmra.mxu0 %v513
        %v587 = vpop.f32.mrf.mxu0
        %v588 = vadd.f32 0.0, %v587
        %v589 = vpop.f32.mrf.mxu0
        %v590 = vadd.f32 0.0, %v589
        %591 = vdwg.mxu0
        %592 = vmatprep.subr.mxu0 0.0
        %593 = vmatpush1.msra.mxu0 0.0
        %594 = vmatprep.subr.mxu0 0.0
        %595 = vmatpush1.msra.mxu0 0.0
        %596 = vmatprep.subr.mxu0 0.0
        %597 = vmatpush1.msra.mxu0 0.0
        %598 = vmatprep.subr.mxu0 0.0
        %599 = vmatpush1.msra.mxu0 0.0
        %600 = vmatprep.subr.mxu0 0.0
        %601 = vmatpush1.msra.mxu0 0.0
        %602 = vmatprep.subr.mxu0 0.0
        %603 = vmatpush1.msra.mxu0 0.0
        %604 = vmatprep.subr.mxu0 0.0
        %605 = vmatpush1.msra.mxu0 0.0
        %606 = vmatprep.subr.mxu0 0.0
        %607 = vmatpush1.msra.mxu0 0.0
        %608 = vmatprep.subr.mxu0 0.0
        %609 = vmatpush1.msra.mxu0 0.0
        %610 = vmatprep.subr.mxu0 0.0
        %611 = vmatpush1.msra.mxu0 0.0
        %612 = vmatprep.subr.mxu0 0.0
        %613 = vmatpush1.msra.mxu0 0.0
        %614 = vmatprep.subr.mxu0 %v507
        %615 = vmatpush1.msra.mxu0 %v506
        %616 = vmatprep.subr.mxu0 %v503
        %617 = vmatpush1.msra.mxu0 %v502
        %618 = vmatprep.subr.mxu0 %v499
        %619 = vmatpush1.msra.mxu0 %v498
        %620 = vmatprep.subr.mxu0 %v495
        %621 = vmatpush1.msra.mxu0 %v494
        %622 = vmatprep.subr.mxu0 %v491
        %623 = vmatpush1.msra.mxu0 %v490
        %624 = vmatprep.subr.mxu0 0.0
        %625 = vmatpush2.msra.mxu0 0.0
        %626 = vmatprep.subr.mxu0 0.0
        %627 = vmatpush2.msra.mxu0 0.0
        %628 = vmatprep.subr.mxu0 0.0
        %629 = vmatpush2.msra.mxu0 0.0
        %630 = vmatprep.subr.mxu0 0.0
        %631 = vmatpush2.msra.mxu0 0.0
        %632 = vmatprep.subr.mxu0 0.0
        %633 = vmatpush2.msra.mxu0 0.0
        %634 = vmatprep.subr.mxu0 0.0
        %635 = vmatpush2.msra.mxu0 0.0
        %636 = vmatprep.subr.mxu0 0.0
        %637 = vmatpush2.msra.mxu0 0.0
        %638 = vmatprep.subr.mxu0 0.0
        %639 = vmatpush2.msra.mxu0 0.0
        %640 = vmatprep.subr.mxu0 0.0
        %641 = vmatpush2.msra.mxu0 0.0
        %642 = vmatprep.subr.mxu0 0.0
        %643 = vmatpush2.msra.mxu0 0.0
        %644 = vmatprep.subr.mxu0 0.0
        %645 = vmatpush2.msra.mxu0 0.0
        %646 = vmatprep.subr.mxu0 0.0
        %647 = vmatpush2.msra.mxu0 0.0
        %648 = vmatprep.subr.mxu0 0.0
        %649 = vmatpush2.msra.mxu0 0.0
        %650 = vmatprep.subr.mxu0 0.0
        %651 = vmatpush2.msra.mxu0 0.0
        %652 = vmatprep.subr.mxu0 0.0
        %653 = vmatpush2.msra.mxu0 0.0
        %654 = vmatprep.subr.mxu0 0.0
        %655 = vmatpush2.msra.mxu0 0.0
        %656 = vmatprep.mubr.f32.mxu0 0.0
        %657 = vmatmul.mubr.f32.gmra.mxu0 %v510
        %v658 = vpop.f32.mrf.mxu0
        %v659 = vadd.f32 0.0, %v658
        %v660 = vpop.f32.mrf.mxu0
        %v661 = vadd.f32 0.0, %v660
        %662 = vmatprep.mubr.f32.mxu0 0.0
        %663 = vmatmul.mubr.f32.gmra.mxu0 %v513
        %v664 = vpop.f32.mrf.mxu0
        %v665 = vadd.f32 0.0, %v664
        %v666 = vpop.f32.mrf.mxu0
        %v667 = vadd.f32 0.0, %v666
        %668 = vdwg.mxu0
        %v670 = vsel %vm508, %v378, 0
        %v673 = vsel %vm508, %v379, 0
        %675 = vmatprep.subr.mxu0 0.0
        %676 = vmatpush1.msra.mxu0 0.0
        %677 = vmatprep.subr.mxu0 0.0
        %678 = vmatpush1.msra.mxu0 0.0
        %679 = vmatprep.subr.mxu0 0.0
        %680 = vmatpush1.msra.mxu0 0.0
        %681 = vmatprep.subr.mxu0 0.0
        %682 = vmatpush1.msra.mxu0 0.0
        %683 = vmatprep.subr.mxu0 0.0
        %684 = vmatpush1.msra.mxu0 0.0
        %685 = vmatprep.subr.mxu0 0.0
        %686 = vmatpush1.msra.mxu0 0.0
        %687 = vmatprep.subr.mxu0 0.0
        %688 = vmatpush1.msra.mxu0 0.0
        %689 = vmatprep.subr.mxu0 0.0
        %690 = vmatpush1.msra.mxu0 0.0
        %691 = vmatprep.subr.mxu0 0.0
        %692 = vmatpush1.msra.mxu0 0.0
        %693 = vmatprep.subr.mxu0 0.0
        %694 = vmatpush1.msra.mxu0 0.0
        %695 = vmatprep.subr.mxu0 0.0
        %696 = vmatpush1.msra.mxu0 0.0
        %697 = vmatprep.subr.mxu0 %v397
        %698 = vmatpush1.msra.mxu0 %v396
        %699 = vmatprep.subr.mxu0 %v393
        %700 = vmatpush1.msra.mxu0 %v392
        %701 = vmatprep.subr.mxu0 %v389
        %702 = vmatpush1.msra.mxu0 %v388
        %703 = vmatprep.subr.mxu0 %v385
        %704 = vmatpush1.msra.mxu0 %v384
        %705 = vmatprep.subr.mxu0 %v381
        %706 = vmatpush1.msra.mxu0 %v380
        %707 = vmatprep.subr.mxu0 0.0
        %708 = vmatpush2.msra.mxu0 0.0
        %709 = vmatprep.subr.mxu0 0.0
        %710 = vmatpush2.msra.mxu0 0.0
        %711 = vmatprep.subr.mxu0 0.0
        %712 = vmatpush2.msra.mxu0 0.0
        %713 = vmatprep.subr.mxu0 0.0
        %714 = vmatpush2.msra.mxu0 0.0
        %715 = vmatprep.subr.mxu0 0.0
        %716 = vmatpush2.msra.mxu0 0.0
        %717 = vmatprep.subr.mxu0 0.0
        %718 = vmatpush2.msra.mxu0 0.0
        %719 = vmatprep.subr.mxu0 0.0
        %720 = vmatpush2.msra.mxu0 0.0
        %721 = vmatprep.subr.mxu0 0.0
        %722 = vmatpush2.msra.mxu0 0.0
        %723 = vmatprep.subr.mxu0 0.0
        %724 = vmatpush2.msra.mxu0 0.0
        %725 = vmatprep.subr.mxu0 0.0
        %726 = vmatpush2.msra.mxu0 0.0
        %727 = vmatprep.subr.mxu0 0.0
        %728 = vmatpush2.msra.mxu0 0.0
        %729 = vmatprep.subr.mxu0 0.0
        %730 = vmatpush2.msra.mxu0 0.0
        %731 = vmatprep.subr.mxu0 0.0
        %732 = vmatpush2.msra.mxu0 0.0
        %733 = vmatprep.subr.mxu0 0.0
        %734 = vmatpush2.msra.mxu0 0.0
        %735 = vmatprep.subr.mxu0 0.0
        %736 = vmatpush2.msra.mxu0 0.0
        %737 = vmatprep.subr.mxu0 0.0
        %738 = vmatpush2.msra.mxu0 0.0
        %739 = vmatprep.mubr.f32.mxu0 0.0
        %740 = vmatmul.mubr.f32.gmra.mxu0 %v670
        %v741 = vpop.f32.mrf.mxu0
        %v742 = vadd.f32 %v582, %v741
        %v743 = vpop.f32.mrf.mxu0
        %v744 = vadd.f32 %v584, %v743
        %745 = vmatprep.mubr.f32.mxu0 0.0
        %746 = vmatmul.mubr.f32.gmra.mxu0 %v673
        %v747 = vpop.f32.mrf.mxu0
        %v748 = vadd.f32 %v588, %v747
        %v749 = vpop.f32.mrf.mxu0
        %v750 = vadd.f32 %v590, %v749
        %751 = vdwg.mxu0
        %752 = vmatprep.subr.mxu0 0.0
        %753 = vmatpush1.msra.mxu0 0.0
        %754 = vmatprep.subr.mxu0 0.0
        %755 = vmatpush1.msra.mxu0 0.0
        %756 = vmatprep.subr.mxu0 0.0
        %757 = vmatpush1.msra.mxu0 0.0
        %758 = vmatprep.subr.mxu0 0.0
        %759 = vmatpush1.msra.mxu0 0.0
        %760 = vmatprep.subr.mxu0 0.0
        %761 = vmatpush1.msra.mxu0 0.0
        %762 = vmatprep.subr.mxu0 0.0
        %763 = vmatpush1.msra.mxu0 0.0
        %764 = vmatprep.subr.mxu0 0.0
        %765 = vmatpush1.msra.mxu0 0.0
        %766 = vmatprep.subr.mxu0 0.0
        %767 = vmatpush1.msra.mxu0 0.0
        %768 = vmatprep.subr.mxu0 0.0
        %769 = vmatpush1.msra.mxu0 0.0
        %770 = vmatprep.subr.mxu0 0.0
        %771 = vmatpush1.msra.mxu0 0.0
        %772 = vmatprep.subr.mxu0 0.0
        %773 = vmatpush1.msra.mxu0 0.0
        %774 = vmatprep.subr.mxu0 %v399
        %775 = vmatpush1.msra.mxu0 %v398
        %776 = vmatprep.subr.mxu0 %v395
        %777 = vmatpush1.msra.mxu0 %v394
        %778 = vmatprep.subr.mxu0 %v391
        %779 = vmatpush1.msra.mxu0 %v390
        %780 = vmatprep.subr.mxu0 %v387
        %781 = vmatpush1.msra.mxu0 %v386
        %782 = vmatprep.subr.mxu0 %v383
        %783 = vmatpush1.msra.mxu0 %v382
        %784 = vmatprep.subr.mxu0 0.0
        %785 = vmatpush2.msra.mxu0 0.0
        %786 = vmatprep.subr.mxu0 0.0
        %787 = vmatpush2.msra.mxu0 0.0
        %788 = vmatprep.subr.mxu0 0.0
        %789 = vmatpush2.msra.mxu0 0.0
        %790 = vmatprep.subr.mxu0 0.0
        %791 = vmatpush2.msra.mxu0 0.0
        %792 = vmatprep.subr.mxu0 0.0
        %793 = vmatpush2.msra.mxu0 0.0
        %794 = vmatprep.subr.mxu0 0.0
        %795 = vmatpush2.msra.mxu0 0.0
        %796 = vmatprep.subr.mxu0 0.0
        %797 = vmatpush2.msra.mxu0 0.0
        %798 = vmatprep.subr.mxu0 0.0
        %799 = vmatpush2.msra.mxu0 0.0
        %800 = vmatprep.subr.mxu0 0.0
        %801 = vmatpush2.msra.mxu0 0.0
        %802 = vmatprep.subr.mxu0 0.0
        %803 = vmatpush2.msra.mxu0 0.0
        %804 = vmatprep.subr.mxu0 0.0
        %805 = vmatpush2.msra.mxu0 0.0
        %806 = vmatprep.subr.mxu0 0.0
        %807 = vmatpush2.msra.mxu0 0.0
        %808 = vmatprep.subr.mxu0 0.0
        %809 = vmatpush2.msra.mxu0 0.0
        %810 = vmatprep.subr.mxu0 0.0
        %811 = vmatpush2.msra.mxu0 0.0
        %812 = vmatprep.subr.mxu0 0.0
        %813 = vmatpush2.msra.mxu0 0.0
        %814 = vmatprep.subr.mxu0 0.0
        %815 = vmatpush2.msra.mxu0 0.0
        %816 = vmatprep.mubr.f32.mxu0 0.0
        %817 = vmatmul.mubr.f32.gmra.mxu0 %v670
        %v818 = vpop.f32.mrf.mxu0
        %v819 = vadd.f32 %v659, %v818
        %v820 = vpop.f32.mrf.mxu0
        %v821 = vadd.f32 %v661, %v820
        %822 = vmatprep.mubr.f32.mxu0 0.0
        %823 = vmatmul.mubr.f32.gmra.mxu0 %v673
        %v824 = vpop.f32.mrf.mxu0
        %v825 = vadd.f32 %v665, %v824
        %v826 = vpop.f32.mrf.mxu0
        %v827 = vadd.f32 %v667, %v826
        %828 = vdwg.mxu0
        %829 = vrot.lane.b32.xlu0 %v300, 88
        %v830 = vpop.permute.xlu0 %829
        %831 = vrot.lane.b32.xlu0 %v301, 88
        %v832 = vpop.permute.xlu0 %831
        %833 = vrot.lane.b32.xlu0 %v302, 88
        %v834 = vpop.permute.xlu0 %833
        %835 = vrot.lane.b32.xlu0 %v303, 88
        %v836 = vpop.permute.xlu0 %835
        %vm837 = vcmp.lt.s32.totalorder %v317, 88
        %v838 = vsel %vm837, %v834, %v836
        %v839 = vsel %vm837, %v832, %v834
        %v840 = vsel %vm837, %v830, %v832
        %v841 = vsel %vm837, %v836, %v830
        %842 = vst [vmem:[#allocation2 + $0x140] sm:$0xff] %v840
        %843 = vst [vmem:[#allocation2 + $0x148] sm:$0xff] %v839
        %844 = vst [vmem:[#allocation2 + $0x150] sm:$0xff] %v838
        %845 = vst [vmem:[#allocation2 + $0x158] sm:$0xff] %v841
        %846 = vrot.lane.b32.xlu0 %v300, 87
        %v847 = vpop.permute.xlu0 %846
        %848 = vrot.lane.b32.xlu0 %v301, 87
        %v849 = vpop.permute.xlu0 %848
        %850 = vrot.lane.b32.xlu0 %v302, 87
        %v851 = vpop.permute.xlu0 %850
        %852 = vrot.lane.b32.xlu0 %v303, 87
        %v853 = vpop.permute.xlu0 %852
        %vm854 = vcmp.lt.s32.totalorder %v317, 87
        %v855 = vsel %vm854, %v851, %v853
        %v856 = vsel %vm854, %v849, %v851
        %v857 = vsel %vm854, %v847, %v849
        %v858 = vsel %vm854, %v853, %v847
        %859 = vst [vmem:[#allocation2 + $0x160] sm:$0xff] %v857
        %860 = vst [vmem:[#allocation2 + $0x168] sm:$0xff] %v856
        %861 = vst [vmem:[#allocation2 + $0x170] sm:$0xff] %v855
        %862 = vst [vmem:[#allocation2 + $0x178] sm:$0xff] %v858
        %863 = vrot.lane.b32.xlu0 %v300, 86
        %v864 = vpop.permute.xlu0 %863
        %865 = vrot.lane.b32.xlu0 %v301, 86
        %v866 = vpop.permute.xlu0 %865
        %867 = vrot.lane.b32.xlu0 %v302, 86
        %v868 = vpop.permute.xlu0 %867
        %869 = vrot.lane.b32.xlu0 %v303, 86
        %v870 = vpop.permute.xlu0 %869
        %vm871 = vcmp.lt.s32.totalorder %v317, 86
        %v872 = vsel %vm871, %v868, %v870
        %v873 = vsel %vm871, %v866, %v868
        %v874 = vsel %vm871, %v864, %v866
        %v875 = vsel %vm871, %v870, %v864
        %876 = vst [vmem:[#allocation2 + $0x180] sm:$0xff] %v874
        %877 = vst [vmem:[#allocation2 + $0x188] sm:$0xff] %v873
        %878 = vst [vmem:[#allocation2 + $0x190] sm:$0xff] %v872
        %879 = vst [vmem:[#allocation2 + $0x198] sm:$0xff] %v875
        %880 = vrot.lane.b32.xlu0 %v300, 85
        %v881 = vpop.permute.xlu0 %880
        %882 = vrot.lane.b32.xlu0 %v301, 85
        %v883 = vpop.permute.xlu0 %882
        %884 = vrot.lane.b32.xlu0 %v302, 85
        %v885 = vpop.permute.xlu0 %884
        %886 = vrot.lane.b32.xlu0 %v303, 85
        %v887 = vpop.permute.xlu0 %886
        %vm888 = vcmp.lt.s32.totalorder %v317, 85
        %v889 = vsel %vm888, %v885, %v887
        %v890 = vsel %vm888, %v883, %v885
        %v891 = vsel %vm888, %v881, %v883
        %v892 = vsel %vm888, %v887, %v881
        %893 = vst [vmem:[#allocation2 + $0x1a0] sm:$0xff] %v891
        %894 = vst [vmem:[#allocation2 + $0x1a8] sm:$0xff] %v890
        %895 = vst [vmem:[#allocation2 + $0x1b0] sm:$0xff] %v889
        %896 = vst [vmem:[#allocation2 + $0x1b8] sm:$0xff] %v892
        %897 = vrot.lane.b32.xlu0 %v300, 84
        %v898 = vpop.permute.xlu0 %897
        %899 = vrot.lane.b32.xlu0 %v301, 84
        %v900 = vpop.permute.xlu0 %899
        %901 = vrot.lane.b32.xlu0 %v302, 84
        %v902 = vpop.permute.xlu0 %901
        %903 = vrot.lane.b32.xlu0 %v303, 84
        %v904 = vpop.permute.xlu0 %903
        %vm905 = vcmp.lt.s32.totalorder %v317, 84
        %v906 = vsel %vm905, %v902, %v904
        %v907 = vsel %vm905, %v900, %v902
        %v908 = vsel %vm905, %v898, %v900
        %v909 = vsel %vm905, %v904, %v898
        %910 = vst [vmem:[#allocation2 + $0x1c0] sm:$0xff] %v908
        %911 = vst [vmem:[#allocation2 + $0x1c8] sm:$0xff] %v907
        %912 = vst [vmem:[#allocation2 + $0x1d0] sm:$0xff] %v906
        %913 = vst [vmem:[#allocation2 + $0x1d8] sm:$0xff] %v909
        %s914 = scalar_lea.vmem [#allocation6], 32
        %v915 = vld [vmem:[%s914] sm:$0xff]
        %v916 = vld [vmem:[%s914 + $0x8] sm:$0xff]
        %v917 = vld [vmem:[#allocation2 + $0x140] sm:$0xff]
        %v918 = vld [vmem:[#allocation2 + $0x148] sm:$0xff]
        %v919 = vld [vmem:[#allocation2 + $0x150] sm:$0xff]
        %v920 = vld [vmem:[#allocation2 + $0x158] sm:$0xff]
        %v921 = vld [vmem:[#allocation2 + $0x160] sm:$0xff]
        %v922 = vld [vmem:[#allocation2 + $0x168] sm:$0xff]
        %v923 = vld [vmem:[#allocation2 + $0x170] sm:$0xff]
        %v924 = vld [vmem:[#allocation2 + $0x178] sm:$0xff]
        %v925 = vld [vmem:[#allocation2 + $0x180] sm:$0xff]
        %v926 = vld [vmem:[#allocation2 + $0x188] sm:$0xff]
        %v927 = vld [vmem:[#allocation2 + $0x190] sm:$0xff]
        %v928 = vld [vmem:[#allocation2 + $0x198] sm:$0xff]
        %v929 = vld [vmem:[#allocation2 + $0x1a0] sm:$0xff]
        %v930 = vld [vmem:[#allocation2 + $0x1a8] sm:$0xff]
        %v931 = vld [vmem:[#allocation2 + $0x1b0] sm:$0xff]
        %v932 = vld [vmem:[#allocation2 + $0x1b8] sm:$0xff]
        %v933 = vld [vmem:[#allocation2 + $0x1c0] sm:$0xff]
        %v934 = vld [vmem:[#allocation2 + $0x1c8] sm:$0xff]
        %v935 = vld [vmem:[#allocation2 + $0x1d0] sm:$0xff]
        %v936 = vld [vmem:[#allocation2 + $0x1d8] sm:$0xff]
        %v938 = vsel %vm508, %v915, 0
        %v941 = vsel %vm508, %v916, 0
        %943 = vmatprep.subr.mxu0 0.0
        %944 = vmatpush1.msra.mxu0 0.0
        %945 = vmatprep.subr.mxu0 0.0
        %946 = vmatpush1.msra.mxu0 0.0
        %947 = vmatprep.subr.mxu0 0.0
        %948 = vmatpush1.msra.mxu0 0.0
        %949 = vmatprep.subr.mxu0 0.0
        %950 = vmatpush1.msra.mxu0 0.0
        %951 = vmatprep.subr.mxu0 0.0
        %952 = vmatpush1.msra.mxu0 0.0
        %953 = vmatprep.subr.mxu0 0.0
        %954 = vmatpush1.msra.mxu0 0.0
        %955 = vmatprep.subr.mxu0 0.0
        %956 = vmatpush1.msra.mxu0 0.0
        %957 = vmatprep.subr.mxu0 0.0
        %958 = vmatpush1.msra.mxu0 0.0
        %959 = vmatprep.subr.mxu0 0.0
        %960 = vmatpush1.msra.mxu0 0.0
        %961 = vmatprep.subr.mxu0 0.0
        %962 = vmatpush1.msra.mxu0 0.0
        %963 = vmatprep.subr.mxu0 0.0
        %964 = vmatpush1.msra.mxu0 0.0
        %965 = vmatprep.subr.mxu0 %v934
        %966 = vmatpush1.msra.mxu0 %v933
        %967 = vmatprep.subr.mxu0 %v930
        %968 = vmatpush1.msra.mxu0 %v929
        %969 = vmatprep.subr.mxu0 %v926
        %970 = vmatpush1.msra.mxu0 %v925
        %971 = vmatprep.subr.mxu0 %v922
        %972 = vmatpush1.msra.mxu0 %v921
        %973 = vmatprep.subr.mxu0 %v918
        %974 = vmatpush1.msra.mxu0 %v917
        %975 = vmatprep.subr.mxu0 0.0
        %976 = vmatpush2.msra.mxu0 0.0
        %977 = vmatprep.subr.mxu0 0.0
        %978 = vmatpush2.msra.mxu0 0.0
        %979 = vmatprep.subr.mxu0 0.0
        %980 = vmatpush2.msra.mxu0 0.0
        %981 = vmatprep.subr.mxu0 0.0
        %982 = vmatpush2.msra.mxu0 0.0
        %983 = vmatprep.subr.mxu0 0.0
        %984 = vmatpush2.msra.mxu0 0.0
        %985 = vmatprep.subr.mxu0 0.0
        %986 = vmatpush2.msra.mxu0 0.0
        %987 = vmatprep.subr.mxu0 0.0
        %988 = vmatpush2.msra.mxu0 0.0
        %989 = vmatprep.subr.mxu0 0.0
        %990 = vmatpush2.msra.mxu0 0.0
        %991 = vmatprep.subr.mxu0 0.0
        %992 = vmatpush2.msra.mxu0 0.0
        %993 = vmatprep.subr.mxu0 0.0
        %994 = vmatpush2.msra.mxu0 0.0
        %995 = vmatprep.subr.mxu0 0.0
        %996 = vmatpush2.msra.mxu0 0.0
        %997 = vmatprep.subr.mxu0 0.0
        %998 = vmatpush2.msra.mxu0 0.0
        %999 = vmatprep.subr.mxu0 0.0
        %1000 = vmatpush2.msra.mxu0 0.0
        %1001 = vmatprep.subr.mxu0 0.0
        %1002 = vmatpush2.msra.mxu0 0.0
        %1003 = vmatprep.subr.mxu0 0.0
        %1004 = vmatpush2.msra.mxu0 0.0
        %1005 = vmatprep.subr.mxu0 0.0
        %1006 = vmatpush2.msra.mxu0 0.0
        %1007 = vmatprep.mubr.f32.mxu0 0.0
        %1008 = vmatmul.mubr.f32.gmra.mxu0 %v938
        %v1009 = vpop.f32.mrf.mxu0
        %v1010 = vadd.f32 0.0, %v1009
        %v1011 = vpop.f32.mrf.mxu0
        %v1012 = vadd.f32 0.0, %v1011
        %1013 = vmatprep.mubr.f32.mxu0 0.0
        %1014 = vmatmul.mubr.f32.gmra.mxu0 %v941
        %v1015 = vpop.f32.mrf.mxu0
        %v1016 = vadd.f32 0.0, %v1015
        %v1017 = vpop.f32.mrf.mxu0
        %v1018 = vadd.f32 0.0, %v1017
        %1019 = vdwg.mxu0
        %1020 = vmatprep.subr.mxu0 0.0
        %1021 = vmatpush1.msra.mxu0 0.0
        %1022 = vmatprep.subr.mxu0 0.0
        %1023 = vmatpush1.msra.mxu0 0.0
        %1024 = vmatprep.subr.mxu0 0.0
        %1025 = vmatpush1.msra.mxu0 0.0
        %1026 = vmatprep.subr.mxu0 0.0
        %1027 = vmatpush1.msra.mxu0 0.0
        %1028 = vmatprep.subr.mxu0 0.0
        %1029 = vmatpush1.msra.mxu0 0.0
        %1030 = vmatprep.subr.mxu0 0.0
        %1031 = vmatpush1.msra.mxu0 0.0
        %1032 = vmatprep.subr.mxu0 0.0
        %1033 = vmatpush1.msra.mxu0 0.0
        %1034 = vmatprep.subr.mxu0 0.0
        %1035 = vmatpush1.msra.mxu0 0.0
        %1036 = vmatprep.subr.mxu0 0.0
        %1037 = vmatpush1.msra.mxu0 0.0
        %1038 = vmatprep.subr.mxu0 0.0
        %1039 = vmatpush1.msra.mxu0 0.0
        %1040 = vmatprep.subr.mxu0 0.0
        %1041 = vmatpush1.msra.mxu0 0.0
        %1042 = vmatprep.subr.mxu0 %v936
        %1043 = vmatpush1.msra.mxu0 %v935
        %1044 = vmatprep.subr.mxu0 %v932
        %1045 = vmatpush1.msra.mxu0 %v931
        %1046 = vmatprep.subr.mxu0 %v928
        %1047 = vmatpush1.msra.mxu0 %v927
        %1048 = vmatprep.subr.mxu0 %v924
        %1049 = vmatpush1.msra.mxu0 %v923
        %1050 = vmatprep.subr.mxu0 %v920
        %1051 = vmatpush1.msra.mxu0 %v919
        %1052 = vmatprep.subr.mxu0 0.0
        %1053 = vmatpush2.msra.mxu0 0.0
        %1054 = vmatprep.subr.mxu0 0.0
        %1055 = vmatpush2.msra.mxu0 0.0
        %1056 = vmatprep.subr.mxu0 0.0
        %1057 = vmatpush2.msra.mxu0 0.0
        %1058 = vmatprep.subr.mxu0 0.0
        %1059 = vmatpush2.msra.mxu0 0.0
        %1060 = vmatprep.subr.mxu0 0.0
        %1061 = vmatpush2.msra.mxu0 0.0
        %1062 = vmatprep.subr.mxu0 0.0
        %1063 = vmatpush2.msra.mxu0 0.0
        %1064 = vmatprep.subr.mxu0 0.0
        %1065 = vmatpush2.msra.mxu0 0.0
        %1066 = vmatprep.subr.mxu0 0.0
        %1067 = vmatpush2.msra.mxu0 0.0
        %1068 = vmatprep.subr.mxu0 0.0
        %1069 = vmatpush2.msra.mxu0 0.0
        %1070 = vmatprep.subr.mxu0 0.0
        %1071 = vmatpush2.msra.mxu0 0.0
        %1072 = vmatprep.subr.mxu0 0.0
        %1073 = vmatpush2.msra.mxu0 0.0
        %1074 = vmatprep.subr.mxu0 0.0
        %1075 = vmatpush2.msra.mxu0 0.0
        %1076 = vmatprep.subr.mxu0 0.0
        %1077 = vmatpush2.msra.mxu0 0.0
        %1078 = vmatprep.subr.mxu0 0.0
        %1079 = vmatpush2.msra.mxu0 0.0
        %1080 = vmatprep.subr.mxu0 0.0
        %1081 = vmatpush2.msra.mxu0 0.0
        %1082 = vmatprep.subr.mxu0 0.0
        %1083 = vmatpush2.msra.mxu0 0.0
        %1084 = vmatprep.mubr.f32.mxu0 0.0
        %1085 = vmatmul.mubr.f32.gmra.mxu0 %v938
        %v1086 = vpop.f32.mrf.mxu0
        %v1087 = vadd.f32 0.0, %v1086
        %v1088 = vpop.f32.mrf.mxu0
        %v1089 = vadd.f32 0.0, %v1088
        %1090 = vmatprep.mubr.f32.mxu0 0.0
        %1091 = vmatmul.mubr.f32.gmra.mxu0 %v941
        %v1092 = vpop.f32.mrf.mxu0
        %v1093 = vadd.f32 0.0, %v1092
        %v1094 = vpop.f32.mrf.mxu0
        %v1095 = vadd.f32 0.0, %v1094
        %1096 = vdwg.mxu0
        %v1097 = vadd.f32 %v742, %v1010
        %v1098 = vadd.f32 %v744, %v1012
        %v1099 = vadd.f32 %v819, %v1087
        %v1100 = vadd.f32 %v821, %v1089
        %v1101 = vadd.f32 %v748, %v1016
        %v1102 = vadd.f32 %v750, %v1018
        %v1103 = vadd.f32 %v825, %v1093
        %v1104 = vadd.f32 %v827, %v1095
        %1105 = vrot.lane.b32.xlu0 %v300, 68
        %v1106 = vpop.permute.xlu0 %1105
        %1107 = vrot.lane.b32.xlu0 %v301, 68
        %v1108 = vpop.permute.xlu0 %1107
        %1109 = vrot.lane.b32.xlu0 %v302, 68
        %v1110 = vpop.permute.xlu0 %1109
        %1111 = vrot.lane.b32.xlu0 %v303, 68
        %v1112 = vpop.permute.xlu0 %1111
        %vm1113 = vcmp.lt.s32.totalorder %v317, 68
        %v1114 = vsel %vm1113, %v1110, %v1112
        %v1115 = vsel %vm1113, %v1108, %v1110
        %v1116 = vsel %vm1113, %v1106, %v1108
        %v1117 = vsel %vm1113, %v1112, %v1106
        %1118 = vst [vmem:[#allocation2 + $0x1e0] sm:$0xff] %v1116
        %1119 = vst [vmem:[#allocation2 + $0x1e8] sm:$0xff] %v1115
        %1120 = vst [vmem:[#allocation2 + $0x1f0] sm:$0xff] %v1114
        %1121 = vst [vmem:[#allocation2 + $0x1f8] sm:$0xff] %v1117
        %1122 = vrot.lane.b32.xlu0 %v300, 67
        %v1123 = vpop.permute.xlu0 %1122
        %1124 = vrot.lane.b32.xlu0 %v301, 67
        %v1125 = vpop.permute.xlu0 %1124
        %1126 = vrot.lane.b32.xlu0 %v302, 67
        %v1127 = vpop.permute.xlu0 %1126
        %1128 = vrot.lane.b32.xlu0 %v303, 67
        %v1129 = vpop.permute.xlu0 %1128
        %vm1130 = vcmp.lt.s32.totalorder %v317, 67
        %v1131 = vsel %vm1130, %v1127, %v1129
        %v1132 = vsel %vm1130, %v1125, %v1127
        %v1133 = vsel %vm1130, %v1123, %v1125
        %v1134 = vsel %vm1130, %v1129, %v1123
        %1135 = vst [vmem:[#allocation2 + $0x200] sm:$0xff] %v1133
        %1136 = vst [vmem:[#allocation2 + $0x208] sm:$0xff] %v1132
        %1137 = vst [vmem:[#allocation2 + $0x210] sm:$0xff] %v1131
        %1138 = vst [vmem:[#allocation2 + $0x218] sm:$0xff] %v1134
        %1139 = vrot.lane.b32.xlu0 %v300, 66
        %v1140 = vpop.permute.xlu0 %1139
        %1141 = vrot.lane.b32.xlu0 %v301, 66
        %v1142 = vpop.permute.xlu0 %1141
        %1143 = vrot.lane.b32.xlu0 %v302, 66
        %v1144 = vpop.permute.xlu0 %1143
        %1145 = vrot.lane.b32.xlu0 %v303, 66
        %v1146 = vpop.permute.xlu0 %1145
        %vm1147 = vcmp.lt.s32.totalorder %v317, 66
        %v1148 = vsel %vm1147, %v1144, %v1146
        %v1149 = vsel %vm1147, %v1142, %v1144
        %v1150 = vsel %vm1147, %v1140, %v1142
        %v1151 = vsel %vm1147, %v1146, %v1140
        %1152 = vst [vmem:[#allocation2 + $0x220] sm:$0xff] %v1150
        %1153 = vst [vmem:[#allocation2 + $0x228] sm:$0xff] %v1149
        %1154 = vst [vmem:[#allocation2 + $0x230] sm:$0xff] %v1148
        %1155 = vst [vmem:[#allocation2 + $0x238] sm:$0xff] %v1151
        %1156 = vrot.lane.b32.xlu0 %v300, 65
        %v1157 = vpop.permute.xlu0 %1156
        %1158 = vrot.lane.b32.xlu0 %v301, 65
        %v1159 = vpop.permute.xlu0 %1158
        %1160 = vrot.lane.b32.xlu0 %v302, 65
        %v1161 = vpop.permute.xlu0 %1160
        %1162 = vrot.lane.b32.xlu0 %v303, 65
        %v1163 = vpop.permute.xlu0 %1162
        %vm1164 = vcmp.lt.s32.totalorder %v317, 65
        %v1165 = vsel %vm1164, %v1161, %v1163
        %v1166 = vsel %vm1164, %v1159, %v1161
        %v1167 = vsel %vm1164, %v1157, %v1159
        %v1168 = vsel %vm1164, %v1163, %v1157
        %1169 = vst [vmem:[#allocation2 + $0x240] sm:$0xff] %v1167
        %1170 = vst [vmem:[#allocation2 + $0x248] sm:$0xff] %v1166
        %1171 = vst [vmem:[#allocation2 + $0x250] sm:$0xff] %v1165
        %1172 = vst [vmem:[#allocation2 + $0x258] sm:$0xff] %v1168
        %1173 = vrot.lane.b32.xlu0 %v300, 64
        %v1174 = vpop.permute.xlu0 %1173
        %1175 = vrot.lane.b32.xlu0 %v301, 64
        %v1176 = vpop.permute.xlu0 %1175
        %1177 = vrot.lane.b32.xlu0 %v302, 64
        %v1178 = vpop.permute.xlu0 %1177
        %1179 = vrot.lane.b32.xlu0 %v303, 64
        %v1180 = vpop.permute.xlu0 %1179
        %vm1181 = vcmp.lt.s32.totalorder %v317, 64
        %v1182 = vsel %vm1181, %v1178, %v1180
        %v1183 = vsel %vm1181, %v1176, %v1178
        %v1184 = vsel %vm1181, %v1174, %v1176
        %v1185 = vsel %vm1181, %v1180, %v1174
        %1186 = vst [vmem:[#allocation2 + $0x260] sm:$0xff] %v1184
        %1187 = vst [vmem:[#allocation2 + $0x268] sm:$0xff] %v1183
        %1188 = vst [vmem:[#allocation2 + $0x270] sm:$0xff] %v1182
        %1189 = vst [vmem:[#allocation2 + $0x278] sm:$0xff] %v1185
        %s1190 = scalar_lea.vmem [#allocation6], 48
        %v1191 = vld [vmem:[%s1190] sm:$0xff]
        %v1192 = vld [vmem:[%s1190 + $0x8] sm:$0xff]
        %v1193 = vld [vmem:[#allocation2 + $0x1e0] sm:$0xff]
        %v1194 = vld [vmem:[#allocation2 + $0x1e8] sm:$0xff]
        %v1195 = vld [vmem:[#allocation2 + $0x1f0] sm:$0xff]
        %v1196 = vld [vmem:[#allocation2 + $0x1f8] sm:$0xff]
        %v1197 = vld [vmem:[#allocation2 + $0x200] sm:$0xff]
        %v1198 = vld [vmem:[#allocation2 + $0x208] sm:$0xff]
        %v1199 = vld [vmem:[#allocation2 + $0x210] sm:$0xff]
        %v1200 = vld [vmem:[#allocation2 + $0x218] sm:$0xff]
        %v1201 = vld [vmem:[#allocation2 + $0x220] sm:$0xff]
        %v1202 = vld [vmem:[#allocation2 + $0x228] sm:$0xff]
        %v1203 = vld [vmem:[#allocation2 + $0x230] sm:$0xff]
        %v1204 = vld [vmem:[#allocation2 + $0x238] sm:$0xff]
        %v1205 = vld [vmem:[#allocation2 + $0x240] sm:$0xff]
        %v1206 = vld [vmem:[#allocation2 + $0x248] sm:$0xff]
        %v1207 = vld [vmem:[#allocation2 + $0x250] sm:$0xff]
        %v1208 = vld [vmem:[#allocation2 + $0x258] sm:$0xff]
        %v1209 = vld [vmem:[#allocation2 + $0x260] sm:$0xff]
        %v1210 = vld [vmem:[#allocation2 + $0x268] sm:$0xff]
        %v1211 = vld [vmem:[#allocation2 + $0x270] sm:$0xff]
        %v1212 = vld [vmem:[#allocation2 + $0x278] sm:$0xff]
        %v1214 = vsel %vm508, %v1191, 0
        %v1217 = vsel %vm508, %v1192, 0
        %1219 = vmatprep.subr.mxu0 0.0
        %1220 = vmatpush1.msra.mxu0 0.0
        %1221 = vmatprep.subr.mxu0 0.0
        %1222 = vmatpush1.msra.mxu0 0.0
        %1223 = vmatprep.subr.mxu0 0.0
        %1224 = vmatpush1.msra.mxu0 0.0
        %1225 = vmatprep.subr.mxu0 0.0
        %1226 = vmatpush1.msra.mxu0 0.0
        %1227 = vmatprep.subr.mxu0 0.0
        %1228 = vmatpush1.msra.mxu0 0.0
        %1229 = vmatprep.subr.mxu0 0.0
        %1230 = vmatpush1.msra.mxu0 0.0
        %1231 = vmatprep.subr.mxu0 0.0
        %1232 = vmatpush1.msra.mxu0 0.0
        %1233 = vmatprep.subr.mxu0 0.0
        %1234 = vmatpush1.msra.mxu0 0.0
        %1235 = vmatprep.subr.mxu0 0.0
        %1236 = vmatpush1.msra.mxu0 0.0
        %1237 = vmatprep.subr.mxu0 0.0
        %1238 = vmatpush1.msra.mxu0 0.0
        %1239 = vmatprep.subr.mxu0 0.0
        %1240 = vmatpush1.msra.mxu0 0.0
        %1241 = vmatprep.subr.mxu0 %v1210
        %1242 = vmatpush1.msra.mxu0 %v1209
        %1243 = vmatprep.subr.mxu0 %v1206
        %1244 = vmatpush1.msra.mxu0 %v1205
        %1245 = vmatprep.subr.mxu0 %v1202
        %1246 = vmatpush1.msra.mxu0 %v1201
        %1247 = vmatprep.subr.mxu0 %v1198
        %1248 = vmatpush1.msra.mxu0 %v1197
        %1249 = vmatprep.subr.mxu0 %v1194
        %1250 = vmatpush1.msra.mxu0 %v1193
        %1251 = vmatprep.subr.mxu0 0.0
        %1252 = vmatpush2.msra.mxu0 0.0
        %1253 = vmatprep.subr.mxu0 0.0
        %1254 = vmatpush2.msra.mxu0 0.0
        %1255 = vmatprep.subr.mxu0 0.0
        %1256 = vmatpush2.msra.mxu0 0.0
        %1257 = vmatprep.subr.mxu0 0.0
        %1258 = vmatpush2.msra.mxu0 0.0
        %1259 = vmatprep.subr.mxu0 0.0
        %1260 = vmatpush2.msra.mxu0 0.0
        %1261 = vmatprep.subr.mxu0 0.0
        %1262 = vmatpush2.msra.mxu0 0.0
        %1263 = vmatprep.subr.mxu0 0.0
        %1264 = vmatpush2.msra.mxu0 0.0
        %1265 = vmatprep.subr.mxu0 0.0
        %1266 = vmatpush2.msra.mxu0 0.0
        %1267 = vmatprep.subr.mxu0 0.0
        %1268 = vmatpush2.msra.mxu0 0.0
        %1269 = vmatprep.subr.mxu0 0.0
        %1270 = vmatpush2.msra.mxu0 0.0
        %1271 = vmatprep.subr.mxu0 0.0
        %1272 = vmatpush2.msra.mxu0 0.0
        %1273 = vmatprep.subr.mxu0 0.0
        %1274 = vmatpush2.msra.mxu0 0.0
        %1275 = vmatprep.subr.mxu0 0.0
        %1276 = vmatpush2.msra.mxu0 0.0
        %1277 = vmatprep.subr.mxu0 0.0
        %1278 = vmatpush2.msra.mxu0 0.0
        %1279 = vmatprep.subr.mxu0 0.0
        %1280 = vmatpush2.msra.mxu0 0.0
        %1281 = vmatprep.subr.mxu0 0.0
        %1282 = vmatpush2.msra.mxu0 0.0
        %1283 = vmatprep.mubr.f32.mxu0 0.0
        %1284 = vmatmul.mubr.f32.gmra.mxu0 %v1214
        %v1285 = vpop.f32.mrf.mxu0
        %v1286 = vadd.f32 0.0, %v1285
        %v1287 = vpop.f32.mrf.mxu0
        %v1288 = vadd.f32 0.0, %v1287
        %1289 = vmatprep.mubr.f32.mxu0 0.0
        %1290 = vmatmul.mubr.f32.gmra.mxu0 %v1217
        %v1291 = vpop.f32.mrf.mxu0
        %v1292 = vadd.f32 0.0, %v1291
        %v1293 = vpop.f32.mrf.mxu0
        %v1294 = vadd.f32 0.0, %v1293
        %1295 = vdwg.mxu0
        %1296 = vmatprep.subr.mxu0 0.0
        %1297 = vmatpush1.msra.mxu0 0.0
        %1298 = vmatprep.subr.mxu0 0.0
        %1299 = vmatpush1.msra.mxu0 0.0
        %1300 = vmatprep.subr.mxu0 0.0
        %1301 = vmatpush1.msra.mxu0 0.0
        %1302 = vmatprep.subr.mxu0 0.0
        %1303 = vmatpush1.msra.mxu0 0.0
        %1304 = vmatprep.subr.mxu0 0.0
        %1305 = vmatpush1.msra.mxu0 0.0
        %1306 = vmatprep.subr.mxu0 0.0
        %1307 = vmatpush1.msra.mxu0 0.0
        %1308 = vmatprep.subr.mxu0 0.0
        %1309 = vmatpush1.msra.mxu0 0.0
        %1310 = vmatprep.subr.mxu0 0.0
        %1311 = vmatpush1.msra.mxu0 0.0
        %1312 = vmatprep.subr.mxu0 0.0
        %1313 = vmatpush1.msra.mxu0 0.0
        %1314 = vmatprep.subr.mxu0 0.0
        %1315 = vmatpush1.msra.mxu0 0.0
        %1316 = vmatprep.subr.mxu0 0.0
        %1317 = vmatpush1.msra.mxu0 0.0
        %1318 = vmatprep.subr.mxu0 %v1212
        %1319 = vmatpush1.msra.mxu0 %v1211
        %1320 = vmatprep.subr.mxu0 %v1208
        %1321 = vmatpush1.msra.mxu0 %v1207
        %1322 = vmatprep.subr.mxu0 %v1204
        %1323 = vmatpush1.msra.mxu0 %v1203
        %1324 = vmatprep.subr.mxu0 %v1200
        %1325 = vmatpush1.msra.mxu0 %v1199
        %1326 = vmatprep.subr.mxu0 %v1196
        %1327 = vmatpush1.msra.mxu0 %v1195
        %1328 = vmatprep.subr.mxu0 0.0
        %1329 = vmatpush2.msra.mxu0 0.0
        %1330 = vmatprep.subr.mxu0 0.0
        %1331 = vmatpush2.msra.mxu0 0.0
        %1332 = vmatprep.subr.mxu0 0.0
        %1333 = vmatpush2.msra.mxu0 0.0
        %1334 = vmatprep.subr.mxu0 0.0
        %1335 = vmatpush2.msra.mxu0 0.0
        %1336 = vmatprep.subr.mxu0 0.0
        %1337 = vmatpush2.msra.mxu0 0.0
        %1338 = vmatprep.subr.mxu0 0.0
        %1339 = vmatpush2.msra.mxu0 0.0
        %1340 = vmatprep.subr.mxu0 0.0
        %1341 = vmatpush2.msra.mxu0 0.0
        %1342 = vmatprep.subr.mxu0 0.0
        %1343 = vmatpush2.msra.mxu0 0.0
        %1344 = vmatprep.subr.mxu0 0.0
        %1345 = vmatpush2.msra.mxu0 0.0
        %1346 = vmatprep.subr.mxu0 0.0
        %1347 = vmatpush2.msra.mxu0 0.0
        %1348 = vmatprep.subr.mxu0 0.0
        %1349 = vmatpush2.msra.mxu0 0.0
        %1350 = vmatprep.subr.mxu0 0.0
        %1351 = vmatpush2.msra.mxu0 0.0
        %1352 = vmatprep.subr.mxu0 0.0
        %1353 = vmatpush2.msra.mxu0 0.0
        %1354 = vmatprep.subr.mxu0 0.0
        %1355 = vmatpush2.msra.mxu0 0.0
        %1356 = vmatprep.subr.mxu0 0.0
        %1357 = vmatpush2.msra.mxu0 0.0
        %1358 = vmatprep.subr.mxu0 0.0
        %1359 = vmatpush2.msra.mxu0 0.0
        %1360 = vmatprep.mubr.f32.mxu0 0.0
        %1361 = vmatmul.mubr.f32.gmra.mxu0 %v1214
        %v1362 = vpop.f32.mrf.mxu0
        %v1363 = vadd.f32 0.0, %v1362
        %v1364 = vpop.f32.mrf.mxu0
        %v1365 = vadd.f32 0.0, %v1364
        %1366 = vmatprep.mubr.f32.mxu0 0.0
        %1367 = vmatmul.mubr.f32.gmra.mxu0 %v1217
        %v1368 = vpop.f32.mrf.mxu0
        %v1369 = vadd.f32 0.0, %v1368
        %v1370 = vpop.f32.mrf.mxu0
        %v1371 = vadd.f32 0.0, %v1370
        %1372 = vdwg.mxu0
        %v1373 = vadd.f32 %v1097, %v1286
        %v1374 = vadd.f32 %v1098, %v1288
        %v1375 = vadd.f32 %v1099, %v1363
        %v1376 = vadd.f32 %v1100, %v1365
        %v1377 = vadd.f32 %v1101, %v1292
        %v1378 = vadd.f32 %v1102, %v1294
        %v1379 = vadd.f32 %v1103, %v1369
        %v1380 = vadd.f32 %v1104, %v1371
        %1381 = vrot.lane.b32.xlu0 %v300, 48
        %v1382 = vpop.permute.xlu0 %1381
        %1383 = vrot.lane.b32.xlu0 %v301, 48
        %v1384 = vpop.permute.xlu0 %1383
        %1385 = vrot.lane.b32.xlu0 %v302, 48
        %v1386 = vpop.permute.xlu0 %1385
        %1387 = vrot.lane.b32.xlu0 %v303, 48
        %v1388 = vpop.permute.xlu0 %1387
        %vm1389 = vcmp.lt.s32.totalorder %v317, 48
        %v1390 = vsel %vm1389, %v1386, %v1388
        %v1391 = vsel %vm1389, %v1384, %v1386
        %v1392 = vsel %vm1389, %v1382, %v1384
        %v1393 = vsel %vm1389, %v1388, %v1382
        %1394 = vst [vmem:[#allocation2 + $0x280] sm:$0xff] %v1392
        %1395 = vst [vmem:[#allocation2 + $0x288] sm:$0xff] %v1391
        %1396 = vst [vmem:[#allocation2 + $0x290] sm:$0xff] %v1390
        %1397 = vst [vmem:[#allocation2 + $0x298] sm:$0xff] %v1393
        %1398 = vrot.lane.b32.xlu0 %v300, 47
        %v1399 = vpop.permute.xlu0 %1398
        %1400 = vrot.lane.b32.xlu0 %v301, 47
        %v1401 = vpop.permute.xlu0 %1400
        %1402 = vrot.lane.b32.xlu0 %v302, 47
        %v1403 = vpop.permute.xlu0 %1402
        %1404 = vrot.lane.b32.xlu0 %v303, 47
        %v1405 = vpop.permute.xlu0 %1404
        %vm1406 = vcmp.lt.s32.totalorder %v317, 47
        %v1407 = vsel %vm1406, %v1403, %v1405
        %v1408 = vsel %vm1406, %v1401, %v1403
        %v1409 = vsel %vm1406, %v1399, %v1401
        %v1410 = vsel %vm1406, %v1405, %v1399
        %1411 = vst [vmem:[#allocation2 + $0x2a0] sm:$0xff] %v1409
        %1412 = vst [vmem:[#allocation2 + $0x2a8] sm:$0xff] %v1408
        %1413 = vst [vmem:[#allocation2 + $0x2b0] sm:$0xff] %v1407
        %1414 = vst [vmem:[#allocation2 + $0x2b8] sm:$0xff] %v1410
        %1415 = vrot.lane.b32.xlu0 %v300, 46
        %v1416 = vpop.permute.xlu0 %1415
        %1417 = vrot.lane.b32.xlu0 %v301, 46
        %v1418 = vpop.permute.xlu0 %1417
        %1419 = vrot.lane.b32.xlu0 %v302, 46
        %v1420 = vpop.permute.xlu0 %1419
        %1421 = vrot.lane.b32.xlu0 %v303, 46
        %v1422 = vpop.permute.xlu0 %1421
        %vm1423 = vcmp.lt.s32.totalorder %v317, 46
        %v1424 = vsel %vm1423, %v1420, %v1422
        %v1425 = vsel %vm1423, %v1418, %v1420
        %v1426 = vsel %vm1423, %v1416, %v1418
        %v1427 = vsel %vm1423, %v1422, %v1416
        %1428 = vst [vmem:[#allocation2 + $0x2c0] sm:$0xff] %v1426
        %1429 = vst [vmem:[#allocation2 + $0x2c8] sm:$0xff] %v1425
        %1430 = vst [vmem:[#allocation2 + $0x2d0] sm:$0xff] %v1424
        %1431 = vst [vmem:[#allocation2 + $0x2d8] sm:$0xff] %v1427
        %1432 = vrot.lane.b32.xlu0 %v300, 45
        %v1433 = vpop.permute.xlu0 %1432
        %1434 = vrot.lane.b32.xlu0 %v301, 45
        %v1435 = vpop.permute.xlu0 %1434
        %1436 = vrot.lane.b32.xlu0 %v302, 45
        %v1437 = vpop.permute.xlu0 %1436
        %1438 = vrot.lane.b32.xlu0 %v303, 45
        %v1439 = vpop.permute.xlu0 %1438
        %vm1440 = vcmp.lt.s32.totalorder %v317, 45
        %v1441 = vsel %vm1440, %v1437, %v1439
        %v1442 = vsel %vm1440, %v1435, %v1437
        %v1443 = vsel %vm1440, %v1433, %v1435
        %v1444 = vsel %vm1440, %v1439, %v1433
        %1445 = vst [vmem:[#allocation2 + $0x2e0] sm:$0xff] %v1443
        %1446 = vst [vmem:[#allocation2 + $0x2e8] sm:$0xff] %v1442
        %1447 = vst [vmem:[#allocation2 + $0x2f0] sm:$0xff] %v1441
        %1448 = vst [vmem:[#allocation2 + $0x2f8] sm:$0xff] %v1444
        %1449 = vrot.lane.b32.xlu0 %v300, 44
        %v1450 = vpop.permute.xlu0 %1449
        %1451 = vrot.lane.b32.xlu0 %v301, 44
        %v1452 = vpop.permute.xlu0 %1451
        %1453 = vrot.lane.b32.xlu0 %v302, 44
        %v1454 = vpop.permute.xlu0 %1453
        %1455 = vrot.lane.b32.xlu0 %v303, 44
        %v1456 = vpop.permute.xlu0 %1455
        %vm1457 = vcmp.lt.s32.totalorder %v317, 44
        %v1458 = vsel %vm1457, %v1454, %v1456
        %v1459 = vsel %vm1457, %v1452, %v1454
        %v1460 = vsel %vm1457, %v1450, %v1452
        %v1461 = vsel %vm1457, %v1456, %v1450
        %1462 = vst [vmem:[#allocation2 + $0x300] sm:$0xff] %v1460
        %1463 = vst [vmem:[#allocation2 + $0x308] sm:$0xff] %v1459
        %1464 = vst [vmem:[#allocation2 + $0x310] sm:$0xff] %v1458
        %1465 = vst [vmem:[#allocation2 + $0x318] sm:$0xff] %v1461
        %s1466 = scalar_lea.vmem [#allocation6], 64
        %v1467 = vld [vmem:[%s1466] sm:$0xff]
        %v1468 = vld [vmem:[%s1466 + $0x8] sm:$0xff]
        %v1469 = vld [vmem:[#allocation2 + $0x280] sm:$0xff]
        %v1470 = vld [vmem:[#allocation2 + $0x288] sm:$0xff]
        %v1471 = vld [vmem:[#allocation2 + $0x290] sm:$0xff]
        %v1472 = vld [vmem:[#allocation2 + $0x298] sm:$0xff]
        %v1473 = vld [vmem:[#allocation2 + $0x2a0] sm:$0xff]
        %v1474 = vld [vmem:[#allocation2 + $0x2a8] sm:$0xff]
        %v1475 = vld [vmem:[#allocation2 + $0x2b0] sm:$0xff]
        %v1476 = vld [vmem:[#allocation2 + $0x2b8] sm:$0xff]
        %v1477 = vld [vmem:[#allocation2 + $0x2c0] sm:$0xff]
        %v1478 = vld [vmem:[#allocation2 + $0x2c8] sm:$0xff]
        %v1479 = vld [vmem:[#allocation2 + $0x2d0] sm:$0xff]
        %v1480 = vld [vmem:[#allocation2 + $0x2d8] sm:$0xff]
        %v1481 = vld [vmem:[#allocation2 + $0x2e0] sm:$0xff]
        %v1482 = vld [vmem:[#allocation2 + $0x2e8] sm:$0xff]
        %v1483 = vld [vmem:[#allocation2 + $0x2f0] sm:$0xff]
        %v1484 = vld [vmem:[#allocation2 + $0x2f8] sm:$0xff]
        %v1485 = vld [vmem:[#allocation2 + $0x300] sm:$0xff]
        %v1486 = vld [vmem:[#allocation2 + $0x308] sm:$0xff]
        %v1487 = vld [vmem:[#allocation2 + $0x310] sm:$0xff]
        %v1488 = vld [vmem:[#allocation2 + $0x318] sm:$0xff]
        %v1490 = vsel %vm508, %v1467, 0
        %v1493 = vsel %vm508, %v1468, 0
        %1495 = vmatprep.subr.mxu0 0.0
        %1496 = vmatpush1.msra.mxu0 0.0
        %1497 = vmatprep.subr.mxu0 0.0
        %1498 = vmatpush1.msra.mxu0 0.0
        %1499 = vmatprep.subr.mxu0 0.0
        %1500 = vmatpush1.msra.mxu0 0.0
        %1501 = vmatprep.subr.mxu0 0.0
        %1502 = vmatpush1.msra.mxu0 0.0
        %1503 = vmatprep.subr.mxu0 0.0
        %1504 = vmatpush1.msra.mxu0 0.0
        %1505 = vmatprep.subr.mxu0 0.0
        %1506 = vmatpush1.msra.mxu0 0.0
        %1507 = vmatprep.subr.mxu0 0.0
        %1508 = vmatpush1.msra.mxu0 0.0
        %1509 = vmatprep.subr.mxu0 0.0
        %1510 = vmatpush1.msra.mxu0 0.0
        %1511 = vmatprep.subr.mxu0 0.0
        %1512 = vmatpush1.msra.mxu0 0.0
        %1513 = vmatprep.subr.mxu0 0.0
        %1514 = vmatpush1.msra.mxu0 0.0
        %1515 = vmatprep.subr.mxu0 0.0
        %1516 = vmatpush1.msra.mxu0 0.0
        %1517 = vmatprep.subr.mxu0 %v1486
        %1518 = vmatpush1.msra.mxu0 %v1485
        %1519 = vmatprep.subr.mxu0 %v1482
        %1520 = vmatpush1.msra.mxu0 %v1481
        %1521 = vmatprep.subr.mxu0 %v1478
        %1522 = vmatpush1.msra.mxu0 %v1477
        %1523 = vmatprep.subr.mxu0 %v1474
        %1524 = vmatpush1.msra.mxu0 %v1473
        %1525 = vmatprep.subr.mxu0 %v1470
        %1526 = vmatpush1.msra.mxu0 %v1469
        %1527 = vmatprep.subr.mxu0 0.0
        %1528 = vmatpush2.msra.mxu0 0.0
        %1529 = vmatprep.subr.mxu0 0.0
        %1530 = vmatpush2.msra.mxu0 0.0
        %1531 = vmatprep.subr.mxu0 0.0
        %1532 = vmatpush2.msra.mxu0 0.0
        %1533 = vmatprep.subr.mxu0 0.0
        %1534 = vmatpush2.msra.mxu0 0.0
        %1535 = vmatprep.subr.mxu0 0.0
        %1536 = vmatpush2.msra.mxu0 0.0
        %1537 = vmatprep.subr.mxu0 0.0
        %1538 = vmatpush2.msra.mxu0 0.0
        %1539 = vmatprep.subr.mxu0 0.0
        %1540 = vmatpush2.msra.mxu0 0.0
        %1541 = vmatprep.subr.mxu0 0.0
        %1542 = vmatpush2.msra.mxu0 0.0
        %1543 = vmatprep.subr.mxu0 0.0
        %1544 = vmatpush2.msra.mxu0 0.0
        %1545 = vmatprep.subr.mxu0 0.0
        %1546 = vmatpush2.msra.mxu0 0.0
        %1547 = vmatprep.subr.mxu0 0.0
        %1548 = vmatpush2.msra.mxu0 0.0
        %1549 = vmatprep.subr.mxu0 0.0
        %1550 = vmatpush2.msra.mxu0 0.0
        %1551 = vmatprep.subr.mxu0 0.0
        %1552 = vmatpush2.msra.mxu0 0.0
        %1553 = vmatprep.subr.mxu0 0.0
        %1554 = vmatpush2.msra.mxu0 0.0
        %1555 = vmatprep.subr.mxu0 0.0
        %1556 = vmatpush2.msra.mxu0 0.0
        %1557 = vmatprep.subr.mxu0 0.0
        %1558 = vmatpush2.msra.mxu0 0.0
        %1559 = vmatprep.mubr.f32.mxu0 0.0
        %1560 = vmatmul.mubr.f32.gmra.mxu0 %v1490
        %v1561 = vpop.f32.mrf.mxu0
        %v1562 = vadd.f32 0.0, %v1561
        %v1563 = vpop.f32.mrf.mxu0
        %v1564 = vadd.f32 0.0, %v1563
        %1565 = vmatprep.mubr.f32.mxu0 0.0
        %1566 = vmatmul.mubr.f32.gmra.mxu0 %v1493
        %v1567 = vpop.f32.mrf.mxu0
        %v1568 = vadd.f32 0.0, %v1567
        %v1569 = vpop.f32.mrf.mxu0
        %v1570 = vadd.f32 0.0, %v1569
        %1571 = vdwg.mxu0
        %1572 = vmatprep.subr.mxu0 0.0
        %1573 = vmatpush1.msra.mxu0 0.0
        %1574 = vmatprep.subr.mxu0 0.0
        %1575 = vmatpush1.msra.mxu0 0.0
        %1576 = vmatprep.subr.mxu0 0.0
        %1577 = vmatpush1.msra.mxu0 0.0
        %1578 = vmatprep.subr.mxu0 0.0
        %1579 = vmatpush1.msra.mxu0 0.0
        %1580 = vmatprep.subr.mxu0 0.0
        %1581 = vmatpush1.msra.mxu0 0.0
        %1582 = vmatprep.subr.mxu0 0.0
        %1583 = vmatpush1.msra.mxu0 0.0
        %1584 = vmatprep.subr.mxu0 0.0
        %1585 = vmatpush1.msra.mxu0 0.0
        %1586 = vmatprep.subr.mxu0 0.0
        %1587 = vmatpush1.msra.mxu0 0.0
        %1588 = vmatprep.subr.mxu0 0.0
        %1589 = vmatpush1.msra.mxu0 0.0
        %1590 = vmatprep.subr.mxu0 0.0
        %1591 = vmatpush1.msra.mxu0 0.0
        %1592 = vmatprep.subr.mxu0 0.0
        %1593 = vmatpush1.msra.mxu0 0.0
        %1594 = vmatprep.subr.mxu0 %v1488
        %1595 = vmatpush1.msra.mxu0 %v1487
        %1596 = vmatprep.subr.mxu0 %v1484
        %1597 = vmatpush1.msra.mxu0 %v1483
        %1598 = vmatprep.subr.mxu0 %v1480
        %1599 = vmatpush1.msra.mxu0 %v1479
        %1600 = vmatprep.subr.mxu0 %v1476
        %1601 = vmatpush1.msra.mxu0 %v1475
        %1602 = vmatprep.subr.mxu0 %v1472
        %1603 = vmatpush1.msra.mxu0 %v1471
        %1604 = vmatprep.subr.mxu0 0.0
        %1605 = vmatpush2.msra.mxu0 0.0
        %1606 = vmatprep.subr.mxu0 0.0
        %1607 = vmatpush2.msra.mxu0 0.0
        %1608 = vmatprep.subr.mxu0 0.0
        %1609 = vmatpush2.msra.mxu0 0.0
        %1610 = vmatprep.subr.mxu0 0.0
        %1611 = vmatpush2.msra.mxu0 0.0
        %1612 = vmatprep.subr.mxu0 0.0
        %1613 = vmatpush2.msra.mxu0 0.0
        %1614 = vmatprep.subr.mxu0 0.0
        %1615 = vmatpush2.msra.mxu0 0.0
        %1616 = vmatprep.subr.mxu0 0.0
        %1617 = vmatpush2.msra.mxu0 0.0
        %1618 = vmatprep.subr.mxu0 0.0
        %1619 = vmatpush2.msra.mxu0 0.0
        %1620 = vmatprep.subr.mxu0 0.0
        %1621 = vmatpush2.msra.mxu0 0.0
        %1622 = vmatprep.subr.mxu0 0.0
        %1623 = vmatpush2.msra.mxu0 0.0
        %1624 = vmatprep.subr.mxu0 0.0
        %1625 = vmatpush2.msra.mxu0 0.0
        %1626 = vmatprep.subr.mxu0 0.0
        %1627 = vmatpush2.msra.mxu0 0.0
        %1628 = vmatprep.subr.mxu0 0.0
        %1629 = vmatpush2.msra.mxu0 0.0
        %1630 = vmatprep.subr.mxu0 0.0
        %1631 = vmatpush2.msra.mxu0 0.0
        %1632 = vmatprep.subr.mxu0 0.0
        %1633 = vmatpush2.msra.mxu0 0.0
        %1634 = vmatprep.subr.mxu0 0.0
        %1635 = vmatpush2.msra.mxu0 0.0
        %1636 = vmatprep.mubr.f32.mxu0 0.0
        %1637 = vmatmul.mubr.f32.gmra.mxu0 %v1490
        %v1638 = vpop.f32.mrf.mxu0
        %v1639 = vadd.f32 0.0, %v1638
        %v1640 = vpop.f32.mrf.mxu0
        %v1641 = vadd.f32 0.0, %v1640
        %1642 = vmatprep.mubr.f32.mxu0 0.0
        %1643 = vmatmul.mubr.f32.gmra.mxu0 %v1493
        %v1644 = vpop.f32.mrf.mxu0
        %v1645 = vadd.f32 0.0, %v1644
        %v1646 = vpop.f32.mrf.mxu0
        %v1647 = vadd.f32 0.0, %v1646
        %1648 = vdwg.mxu0
        %v1649 = vadd.f32 %v1373, %v1562
        %v1650 = vadd.f32 %v1374, %v1564
        %v1651 = vadd.f32 %v1375, %v1639
        %v1652 = vadd.f32 %v1376, %v1641
        %v1653 = vadd.f32 %v1377, %v1568
        %v1654 = vadd.f32 %v1378, %v1570
        %v1655 = vadd.f32 %v1379, %v1645
        %v1656 = vadd.f32 %v1380, %v1647
        %v1657 = vld [vmem:[%s2] sm:$0xff]
        %v1658 = vld [vmem:[%s2 + $0x8] sm:$0xff]
        %1660 = vset.pattern.permute.xlu0 0
        %1661 = vperm.xlu0 %1660, %v1657
        %v1662 = vpop.permute.xlu0 %1661
        %1665 = vset.pattern.permute.xlu0 0
        %1666 = vperm.xlu0 %1665, %v1658
        %v1667 = vpop.permute.xlu0 %1666
        %v1669 = vadd.f32 %v1649, %v1662
        %v1670 = vadd.f32 %v1650, %v1662
        %v1671 = vadd.f32 %v1651, %v1662
        %v1672 = vadd.f32 %v1652, %v1662
        %v1673 = vadd.f32 %v1653, %v1667
        %v1674 = vadd.f32 %v1654, %v1667
        %v1675 = vadd.f32 %v1655, %v1667
        %v1676 = vadd.f32 %v1656, %v1667
        %v1677 = vmax.f32 %v1669, 0.0
        %v1678 = vmax.f32 %v1670, 0.0
        %v1679 = vmax.f32 %v1671, 0.0
        %v1680 = vmax.f32 %v1672, 0.0
        %v1681 = vmax.f32 %v1673, 0.0
        %v1682 = vmax.f32 %v1674, 0.0
        %v1683 = vmax.f32 %v1675, 0.0
        %v1684 = vmax.f32 %v1676, 0.0
        %v1686 = vlaneseq
        %v1687 = vshrl.u32 %v1686, 7
        %v1688 = vsub.s32 0, %v1687
        %v1689 = vrot.slane %v299, %v1688
        %v1690 = vlaneseq
        %v1691 = vshrl.u32 %v1690, 7
        %v1692 = vsub.s32 1, %v1691
        %v1693 = vrot.slane %v299, %v1692
        %v1694 = vlaneseq
        %v1695 = vshrl.u32 %v1694, 7
        %v1696 = vsub.s32 2, %v1695
        %v1697 = vrot.slane %v299, %v1696
        %v1698 = vlaneseq
        %v1699 = vshrl.u32 %v1698, 7
        %v1700 = vsub.s32 3, %v1699
        %v1701 = vrot.slane %v299, %v1700
        %v1706 = vmul.f32 %v1677, %v1689
        %v1707 = vmul.f32 %v1678, %v1693
        %v1708 = vmul.f32 %v1679, %v1697
        %v1709 = vmul.f32 %v1680, %v1701
        %v1710 = vmul.f32 %v1681, %v1689
        %v1711 = vmul.f32 %v1682, %v1693
        %v1712 = vmul.f32 %v1683, %v1697
        %v1713 = vmul.f32 %v1684, %v1701
        %1714 = vrot.lane.b32.xlu0 %v1706, 42
        %v1715 = vpop.permute.xlu0 %1714
        %1716 = vrot.lane.b32.xlu0 %v1710, 42
        %v1717 = vpop.permute.xlu0 %1716
        %1718 = vrot.lane.b32.xlu0 %v1707, 42
        %v1719 = vpop.permute.xlu0 %1718
        %1720 = vrot.lane.b32.xlu0 %v1711, 42
        %v1721 = vpop.permute.xlu0 %1720
        %1722 = vrot.lane.b32.xlu0 %v1708, 42
        %v1723 = vpop.permute.xlu0 %1722
        %1724 = vrot.lane.b32.xlu0 %v1712, 42
        %v1725 = vpop.permute.xlu0 %1724
        %1726 = vrot.lane.b32.xlu0 %v1709, 42
        %v1727 = vpop.permute.xlu0 %1726
        %1728 = vrot.lane.b32.xlu0 %v1713, 42
        %v1729 = vpop.permute.xlu0 %1728
        %vm1730 = vcmp.lt.s32.totalorder %v317, 42
        %v1731 = vsel %vm1730, %v1723, %v1727
        %v1732 = vsel %vm1730, %v1725, %v1729
        %v1733 = vsel %vm1730, %v1719, %v1723
        %v1734 = vsel %vm1730, %v1721, %v1725
        %v1735 = vsel %vm1730, %v1715, %v1719
        %v1736 = vsel %vm1730, %v1717, %v1721
        %v1737 = vsel %vm1730, %v1727, %v1715
        %v1738 = vsel %vm1730, %v1729, %v1717
        %1739 = vst [vmem:[#allocation2] sm:$0xff] %v1737
        %1740 = vst [vmem:[#allocation2 + $0x8] sm:$0xff] %v1735
        %1741 = vst [vmem:[#allocation2 + $0x10] sm:$0xff] %v1733
        %1742 = vst [vmem:[#allocation2 + $0x18] sm:$0xff] %v1731
        %1743 = vst [vmem:[#allocation2 + $0x20] sm:$0xff] %v1738
        %1744 = vst [vmem:[#allocation2 + $0x28] sm:$0xff] %v1736
        %1745 = vst [vmem:[#allocation2 + $0x30] sm:$0xff] %v1734
        %1746 = vst [vmem:[#allocation2 + $0x38] sm:$0xff] %v1732
        %1747 = vrot.lane.b32.xlu0 %v1706, 41
        %v1748 = vpop.permute.xlu0 %1747
        %1749 = vrot.lane.b32.xlu0 %v1710, 41
        %v1750 = vpop.permute.xlu0 %1749
        %1751 = vrot.lane.b32.xlu0 %v1707, 41
        %v1752 = vpop.permute.xlu0 %1751
        %1753 = vrot.lane.b32.xlu0 %v1711, 41
        %v1754 = vpop.permute.xlu0 %1753
        %1755 = vrot.lane.b32.xlu0 %v1708, 41
        %v1756 = vpop.permute.xlu0 %1755
        %1757 = vrot.lane.b32.xlu0 %v1712, 41
        %v1758 = vpop.permute.xlu0 %1757
        %1759 = vrot.lane.b32.xlu0 %v1709, 41
        %v1760 = vpop.permute.xlu0 %1759
        %1761 = vrot.lane.b32.xlu0 %v1713, 41
        %v1762 = vpop.permute.xlu0 %1761
        %vm1763 = vcmp.lt.s32.totalorder %v317, 41
        %v1764 = vsel %vm1763, %v1756, %v1760
        %v1765 = vsel %vm1763, %v1758, %v1762
        %v1766 = vsel %vm1763, %v1752, %v1756
        %v1767 = vsel %vm1763, %v1754, %v1758
        %v1768 = vsel %vm1763, %v1748, %v1752
        %v1769 = vsel %vm1763, %v1750, %v1754
        %v1770 = vsel %vm1763, %v1760, %v1748
        %v1771 = vsel %vm1763, %v1762, %v1750
        %1772 = vst [vmem:[#allocation2 + $0x40] sm:$0xff] %v1770
        %1773 = vst [vmem:[#allocation2 + $0x48] sm:$0xff] %v1768
        %1774 = vst [vmem:[#allocation2 + $0x50] sm:$0xff] %v1766
        %1775 = vst [vmem:[#allocation2 + $0x58] sm:$0xff] %v1764
        %1776 = vst [vmem:[#allocation2 + $0x60] sm:$0xff] %v1771
        %1777 = vst [vmem:[#allocation2 + $0x68] sm:$0xff] %v1769
        %1778 = vst [vmem:[#allocation2 + $0x70] sm:$0xff] %v1767
        %1779 = vst [vmem:[#allocation2 + $0x78] sm:$0xff] %v1765
        %1780 = vrot.lane.b32.xlu0 %v1706, 40
        %v1781 = vpop.permute.xlu0 %1780
        %1782 = vrot.lane.b32.xlu0 %v1710, 40
        %v1783 = vpop.permute.xlu0 %1782
        %1784 = vrot.lane.b32.xlu0 %v1707, 40
        %v1785 = vpop.permute.xlu0 %1784
        %1786 = vrot.lane.b32.xlu0 %v1711, 40
        %v1787 = vpop.permute.xlu0 %1786
        %1788 = vrot.lane.b32.xlu0 %v1708, 40
        %v1789 = vpop.permute.xlu0 %1788
        %1790 = vrot.lane.b32.xlu0 %v1712, 40
        %v1791 = vpop.permute.xlu0 %1790
        %1792 = vrot.lane.b32.xlu0 %v1709, 40
        %v1793 = vpop.permute.xlu0 %1792
        %1794 = vrot.lane.b32.xlu0 %v1713, 40
        %v1795 = vpop.permute.xlu0 %1794
        %vm1796 = vcmp.lt.s32.totalorder %v317, 40
        %v1797 = vsel %vm1796, %v1789, %v1793
        %v1798 = vsel %vm1796, %v1791, %v1795
        %v1799 = vsel %vm1796, %v1785, %v1789
        %v1800 = vsel %vm1796, %v1787, %v1791
        %v1801 = vsel %vm1796, %v1781, %v1785
        %v1802 = vsel %vm1796, %v1783, %v1787
        %v1803 = vsel %vm1796, %v1793, %v1781
        %v1804 = vsel %vm1796, %v1795, %v1783
        %1805 = vst [vmem:[#allocation2 + $0x80] sm:$0xff] %v1803
        %1806 = vst [vmem:[#allocation2 + $0x88] sm:$0xff] %v1801
        %1807 = vst [vmem:[#allocation2 + $0x90] sm:$0xff] %v1799
        %1808 = vst [vmem:[#allocation2 + $0x98] sm:$0xff] %v1797
        %1809 = vst [vmem:[#allocation2 + $0xa0] sm:$0xff] %v1804
        %1810 = vst [vmem:[#allocation2 + $0xa8] sm:$0xff] %v1802
        %1811 = vst [vmem:[#allocation2 + $0xb0] sm:$0xff] %v1800
        %1812 = vst [vmem:[#allocation2 + $0xb8] sm:$0xff] %v1798
        %1813 = vrot.lane.b32.xlu0 %v1706, 39
        %v1814 = vpop.permute.xlu0 %1813
        %1815 = vrot.lane.b32.xlu0 %v1710, 39
        %v1816 = vpop.permute.xlu0 %1815
        %1817 = vrot.lane.b32.xlu0 %v1707, 39
        %v1818 = vpop.permute.xlu0 %1817
        %1819 = vrot.lane.b32.xlu0 %v1711, 39
        %v1820 = vpop.permute.xlu0 %1819
        %1821 = vrot.lane.b32.xlu0 %v1708, 39
        %v1822 = vpop.permute.xlu0 %1821
        %1823 = vrot.lane.b32.xlu0 %v1712, 39
        %v1824 = vpop.permute.xlu0 %1823
        %1825 = vrot.lane.b32.xlu0 %v1709, 39
        %v1826 = vpop.permute.xlu0 %1825
        %1827 = vrot.lane.b32.xlu0 %v1713, 39
        %v1828 = vpop.permute.xlu0 %1827
        %vm1829 = vcmp.lt.s32.totalorder %v317, 39
        %v1830 = vsel %vm1829, %v1822, %v1826
        %v1831 = vsel %vm1829, %v1824, %v1828
        %v1832 = vsel %vm1829, %v1818, %v1822
        %v1833 = vsel %vm1829, %v1820, %v1824
        %v1834 = vsel %vm1829, %v1814, %v1818
        %v1835 = vsel %vm1829, %v1816, %v1820
        %v1836 = vsel %vm1829, %v1826, %v1814
        %v1837 = vsel %vm1829, %v1828, %v1816
        %1838 = vst [vmem:[#allocation2 + $0xc0] sm:$0xff] %v1836
        %1839 = vst [vmem:[#allocation2 + $0xc8] sm:$0xff] %v1834
        %1840 = vst [vmem:[#allocation2 + $0xd0] sm:$0xff] %v1832
        %1841 = vst [vmem:[#allocation2 + $0xd8] sm:$0xff] %v1830
        %1842 = vst [vmem:[#allocation2 + $0xe0] sm:$0xff] %v1837
        %1843 = vst [vmem:[#allocation2 + $0xe8] sm:$0xff] %v1835
        %1844 = vst [vmem:[#allocation2 + $0xf0] sm:$0xff] %v1833
        %1845 = vst [vmem:[#allocation2 + $0xf8] sm:$0xff] %v1831
        %1846 = vrot.lane.b32.xlu0 %v1706, 38
        %v1847 = vpop.permute.xlu0 %1846
        %1848 = vrot.lane.b32.xlu0 %v1710, 38
        %v1849 = vpop.permute.xlu0 %1848
        %1850 = vrot.lane.b32.xlu0 %v1707, 38
        %v1851 = vpop.permute.xlu0 %1850
        %1852 = vrot.lane.b32.xlu0 %v1711, 38
        %v1853 = vpop.permute.xlu0 %1852
        %1854 = vrot.lane.b32.xlu0 %v1708, 38
        %v1855 = vpop.permute.xlu0 %1854
        %1856 = vrot.lane.b32.xlu0 %v1712, 38
        %v1857 = vpop.permute.xlu0 %1856
        %1858 = vrot.lane.b32.xlu0 %v1709, 38
        %v1859 = vpop.permute.xlu0 %1858
        %1860 = vrot.lane.b32.xlu0 %v1713, 38
        %v1861 = vpop.permute.xlu0 %1860
        %vm1862 = vcmp.lt.s32.totalorder %v317, 38
        %v1863 = vsel %vm1862, %v1855, %v1859
        %v1864 = vsel %vm1862, %v1857, %v1861
        %v1865 = vsel %vm1862, %v1851, %v1855
        %v1866 = vsel %vm1862, %v1853, %v1857
        %v1867 = vsel %vm1862, %v1847, %v1851
        %v1868 = vsel %vm1862, %v1849, %v1853
        %v1869 = vsel %vm1862, %v1859, %v1847
        %v1870 = vsel %vm1862, %v1861, %v1849
        %1871 = vst [vmem:[#allocation2 + $0x100] sm:$0xff] %v1869
        %1872 = vst [vmem:[#allocation2 + $0x108] sm:$0xff] %v1867
        %1873 = vst [vmem:[#allocation2 + $0x110] sm:$0xff] %v1865
        %1874 = vst [vmem:[#allocation2 + $0x118] sm:$0xff] %v1863
        %1875 = vst [vmem:[#allocation2 + $0x120] sm:$0xff] %v1870
        %1876 = vst [vmem:[#allocation2 + $0x128] sm:$0xff] %v1868
        %1877 = vst [vmem:[#allocation2 + $0x130] sm:$0xff] %v1866
        %1878 = vst [vmem:[#allocation2 + $0x138] sm:$0xff] %v1864
        %v1879 = vld [vmem:[#allocation8] sm:$0xff]
        %v1880 = vld [vmem:[#allocation2] sm:$0xff]
        %v1881 = vld [vmem:[#allocation2 + $0x8] sm:$0xff]
        %v1882 = vld [vmem:[#allocation2 + $0x10] sm:$0xff]
        %v1883 = vld [vmem:[#allocation2 + $0x18] sm:$0xff]
        %v1884 = vld [vmem:[#allocation2 + $0x20] sm:$0xff]
        %v1885 = vld [vmem:[#allocation2 + $0x28] sm:$0xff]
        %v1886 = vld [vmem:[#allocation2 + $0x30] sm:$0xff]
        %v1887 = vld [vmem:[#allocation2 + $0x38] sm:$0xff]
        %v1888 = vld [vmem:[#allocation2 + $0x40] sm:$0xff]
        %v1889 = vld [vmem:[#allocation2 + $0x48] sm:$0xff]
        %v1890 = vld [vmem:[#allocation2 + $0x50] sm:$0xff]
        %v1891 = vld [vmem:[#allocation2 + $0x58] sm:$0xff]
        %v1892 = vld [vmem:[#allocation2 + $0x60] sm:$0xff]
        %v1893 = vld [vmem:[#allocation2 + $0x68] sm:$0xff]
        %v1894 = vld [vmem:[#allocation2 + $0x70] sm:$0xff]
        %v1895 = vld [vmem:[#allocation2 + $0x78] sm:$0xff]
        %v1896 = vld [vmem:[#allocation2 + $0x80] sm:$0xff]
        %v1897 = vld [vmem:[#allocation2 + $0x88] sm:$0xff]
        %v1898 = vld [vmem:[#allocation2 + $0x90] sm:$0xff]
        %v1899 = vld [vmem:[#allocation2 + $0x98] sm:$0xff]
        %v1900 = vld [vmem:[#allocation2 + $0xa0] sm:$0xff]
        %v1901 = vld [vmem:[#allocation2 + $0xa8] sm:$0xff]
        %v1902 = vld [vmem:[#allocation2 + $0xb0] sm:$0xff]
        %v1903 = vld [vmem:[#allocation2 + $0xb8] sm:$0xff]
        %v1904 = vld [vmem:[#allocation2 + $0xc0] sm:$0xff]
        %v1905 = vld [vmem:[#allocation2 + $0xc8] sm:$0xff]
        %v1906 = vld [vmem:[#allocation2 + $0xd0] sm:$0xff]
        %v1907 = vld [vmem:[#allocation2 + $0xd8] sm:$0xff]
        %v1908 = vld [vmem:[#allocation2 + $0xe0] sm:$0xff]
        %v1909 = vld [vmem:[#allocation2 + $0xe8] sm:$0xff]
        %v1910 = vld [vmem:[#allocation2 + $0xf0] sm:$0xff]
        %v1911 = vld [vmem:[#allocation2 + $0xf8] sm:$0xff]
        %v1912 = vld [vmem:[#allocation2 + $0x100] sm:$0xff]
        %v1913 = vld [vmem:[#allocation2 + $0x108] sm:$0xff]
        %v1914 = vld [vmem:[#allocation2 + $0x110] sm:$0xff]
        %v1915 = vld [vmem:[#allocation2 + $0x118] sm:$0xff]
        %v1916 = vld [vmem:[#allocation2 + $0x120] sm:$0xff]
        %v1917 = vld [vmem:[#allocation2 + $0x128] sm:$0xff]
        %v1918 = vld [vmem:[#allocation2 + $0x130] sm:$0xff]
        %v1919 = vld [vmem:[#allocation2 + $0x138] sm:$0xff]
        %1920 = vrot.lane.b32.xlu0 %v1706, 22
        %v1921 = vpop.permute.xlu0 %1920
        %1922 = vrot.lane.b32.xlu0 %v1710, 22
        %v1923 = vpop.permute.xlu0 %1922
        %1924 = vrot.lane.b32.xlu0 %v1707, 22
        %v1925 = vpop.permute.xlu0 %1924
        %1926 = vrot.lane.b32.xlu0 %v1711, 22
        %v1927 = vpop.permute.xlu0 %1926
        %1928 = vrot.lane.b32.xlu0 %v1708, 22
        %v1929 = vpop.permute.xlu0 %1928
        %1930 = vrot.lane.b32.xlu0 %v1712, 22
        %v1931 = vpop.permute.xlu0 %1930
        %1932 = vrot.lane.b32.xlu0 %v1709, 22
        %v1933 = vpop.permute.xlu0 %1932
        %1934 = vrot.lane.b32.xlu0 %v1713, 22
        %v1935 = vpop.permute.xlu0 %1934
        %vm1936 = vcmp.lt.s32.totalorder %v317, 22
        %v1937 = vsel %vm1936, %v1929, %v1933
        %v1938 = vsel %vm1936, %v1931, %v1935
        %v1939 = vsel %vm1936, %v1925, %v1929
        %v1940 = vsel %vm1936, %v1927, %v1931
        %v1941 = vsel %vm1936, %v1921, %v1925
        %v1942 = vsel %vm1936, %v1923, %v1927
        %v1943 = vsel %vm1936, %v1933, %v1921
        %v1944 = vsel %vm1936, %v1935, %v1923
        %1945 = vst [vmem:[#allocation2 + $0x140] sm:$0xff] %v1943
        %1946 = vst [vmem:[#allocation2 + $0x148] sm:$0xff] %v1941
        %1947 = vst [vmem:[#allocation2 + $0x150] sm:$0xff] %v1939
        %1948 = vst [vmem:[#allocation2 + $0x158] sm:$0xff] %v1937
        %1949 = vst [vmem:[#allocation2 + $0x160] sm:$0xff] %v1944
        %1950 = vst [vmem:[#allocation2 + $0x168] sm:$0xff] %v1942
        %1951 = vst [vmem:[#allocation2 + $0x170] sm:$0xff] %v1940
        %1952 = vst [vmem:[#allocation2 + $0x178] sm:$0xff] %v1938
        %1953 = vrot.lane.b32.xlu0 %v1706, 21
        %v1954 = vpop.permute.xlu0 %1953
        %1955 = vrot.lane.b32.xlu0 %v1710, 21
        %v1956 = vpop.permute.xlu0 %1955
        %1957 = vrot.lane.b32.xlu0 %v1707, 21
        %v1958 = vpop.permute.xlu0 %1957
        %1959 = vrot.lane.b32.xlu0 %v1711, 21
        %v1960 = vpop.permute.xlu0 %1959
        %1961 = vrot.lane.b32.xlu0 %v1708, 21
        %v1962 = vpop.permute.xlu0 %1961
        %1963 = vrot.lane.b32.xlu0 %v1712, 21
        %v1964 = vpop.permute.xlu0 %1963
        %1965 = vrot.lane.b32.xlu0 %v1709, 21
        %v1966 = vpop.permute.xlu0 %1965
        %1967 = vrot.lane.b32.xlu0 %v1713, 21
        %v1968 = vpop.permute.xlu0 %1967
        %vm1969 = vcmp.lt.s32.totalorder %v317, 21
        %v1970 = vsel %vm1969, %v1962, %v1966
        %v1971 = vsel %vm1969, %v1964, %v1968
        %v1972 = vsel %vm1969, %v1958, %v1962
        %v1973 = vsel %vm1969, %v1960, %v1964
        %v1974 = vsel %vm1969, %v1954, %v1958
        %v1975 = vsel %vm1969, %v1956, %v1960
        %v1976 = vsel %vm1969, %v1966, %v1954
        %v1977 = vsel %vm1969, %v1968, %v1956
        %1978 = vst [vmem:[#allocation2 + $0x180] sm:$0xff] %v1976
        %1979 = vst [vmem:[#allocation2 + $0x188] sm:$0xff] %v1974
        %1980 = vst [vmem:[#allocation2 + $0x190] sm:$0xff] %v1972
        %1981 = vst [vmem:[#allocation2 + $0x198] sm:$0xff] %v1970
        %1982 = vst [vmem:[#allocation2 + $0x1a0] sm:$0xff] %v1977
        %1983 = vst [vmem:[#allocation2 + $0x1a8] sm:$0xff] %v1975
        %1984 = vst [vmem:[#allocation2 + $0x1b0] sm:$0xff] %v1973
        %1985 = vst [vmem:[#allocation2 + $0x1b8] sm:$0xff] %v1971
        %1986 = vrot.lane.b32.xlu0 %v1706, 20
        %v1987 = vpop.permute.xlu0 %1986
        %1988 = vrot.lane.b32.xlu0 %v1710, 20
        %v1989 = vpop.permute.xlu0 %1988
        %1990 = vrot.lane.b32.xlu0 %v1707, 20
        %v1991 = vpop.permute.xlu0 %1990
        %1992 = vrot.lane.b32.xlu0 %v1711, 20
        %v1993 = vpop.permute.xlu0 %1992
        %1994 = vrot.lane.b32.xlu0 %v1708, 20
        %v1995 = vpop.permute.xlu0 %1994
        %1996 = vrot.lane.b32.xlu0 %v1712, 20
        %v1997 = vpop.permute.xlu0 %1996
        %1998 = vrot.lane.b32.xlu0 %v1709, 20
        %v1999 = vpop.permute.xlu0 %1998
        %2000 = vrot.lane.b32.xlu0 %v1713, 20
        %v2001 = vpop.permute.xlu0 %2000
        %vm2002 = vcmp.lt.s32.totalorder %v317, 20
        %v2003 = vsel %vm2002, %v1995, %v1999
        %v2004 = vsel %vm2002, %v1997, %v2001
        %v2005 = vsel %vm2002, %v1991, %v1995
        %v2006 = vsel %vm2002, %v1993, %v1997
        %v2007 = vsel %vm2002, %v1987, %v1991
        %v2008 = vsel %vm2002, %v1989, %v1993
        %v2009 = vsel %vm2002, %v1999, %v1987
        %v2010 = vsel %vm2002, %v2001, %v1989
        %2011 = vst [vmem:[#allocation2 + $0x1c0] sm:$0xff] %v2009
        %2012 = vst [vmem:[#allocation2 + $0x1c8] sm:$0xff] %v2007
        %2013 = vst [vmem:[#allocation2 + $0x1d0] sm:$0xff] %v2005
        %2014 = vst [vmem:[#allocation2 + $0x1d8] sm:$0xff] %v2003
        %2015 = vst [vmem:[#allocation2 + $0x1e0] sm:$0xff] %v2010
        %2016 = vst [vmem:[#allocation2 + $0x1e8] sm:$0xff] %v2008
        %2017 = vst [vmem:[#allocation2 + $0x1f0] sm:$0xff] %v2006
        %2018 = vst [vmem:[#allocation2 + $0x1f8] sm:$0xff] %v2004
        %2019 = vrot.lane.b32.xlu0 %v1706, 19
        %v2020 = vpop.permute.xlu0 %2019
        %2021 = vrot.lane.b32.xlu0 %v1710, 19
        %v2022 = vpop.permute.xlu0 %2021
        %2023 = vrot.lane.b32.xlu0 %v1707, 19
        %v2024 = vpop.permute.xlu0 %2023
        %2025 = vrot.lane.b32.xlu0 %v1711, 19
        %v2026 = vpop.permute.xlu0 %2025
        %2027 = vrot.lane.b32.xlu0 %v1708, 19
        %v2028 = vpop.permute.xlu0 %2027
        %2029 = vrot.lane.b32.xlu0 %v1712, 19
        %v2030 = vpop.permute.xlu0 %2029
        %2031 = vrot.lane.b32.xlu0 %v1709, 19
        %v2032 = vpop.permute.xlu0 %2031
        %2033 = vrot.lane.b32.xlu0 %v1713, 19
        %v2034 = vpop.permute.xlu0 %2033
        %vm2035 = vcmp.lt.s32.totalorder %v317, 19
        %v2036 = vsel %vm2035, %v2028, %v2032
        %v2037 = vsel %vm2035, %v2030, %v2034
        %v2038 = vsel %vm2035, %v2024, %v2028
        %v2039 = vsel %vm2035, %v2026, %v2030
        %v2040 = vsel %vm2035, %v2020, %v2024
        %v2041 = vsel %vm2035, %v2022, %v2026
        %v2042 = vsel %vm2035, %v2032, %v2020
        %v2043 = vsel %vm2035, %v2034, %v2022
        %2044 = vst [vmem:[#allocation2 + $0x200] sm:$0xff] %v2042
        %2045 = vst [vmem:[#allocation2 + $0x208] sm:$0xff] %v2040
        %2046 = vst [vmem:[#allocation2 + $0x210] sm:$0xff] %v2038
        %2047 = vst [vmem:[#allocation2 + $0x218] sm:$0xff] %v2036
        %2048 = vst [vmem:[#allocation2 + $0x220] sm:$0xff] %v2043
        %2049 = vst [vmem:[#allocation2 + $0x228] sm:$0xff] %v2041
        %2050 = vst [vmem:[#allocation2 + $0x230] sm:$0xff] %v2039
        %2051 = vst [vmem:[#allocation2 + $0x238] sm:$0xff] %v2037
        %2052 = vrot.lane.b32.xlu0 %v1706, 18
        %v2053 = vpop.permute.xlu0 %2052
        %2054 = vrot.lane.b32.xlu0 %v1710, 18
        %v2055 = vpop.permute.xlu0 %2054
        %2056 = vrot.lane.b32.xlu0 %v1707, 18
        %v2057 = vpop.permute.xlu0 %2056
        %2058 = vrot.lane.b32.xlu0 %v1711, 18
        %v2059 = vpop.permute.xlu0 %2058
        %2060 = vrot.lane.b32.xlu0 %v1708, 18
        %v2061 = vpop.permute.xlu0 %2060
        %2062 = vrot.lane.b32.xlu0 %v1712, 18
        %v2063 = vpop.permute.xlu0 %2062
        %2064 = vrot.lane.b32.xlu0 %v1709, 18
        %v2065 = vpop.permute.xlu0 %2064
        %2066 = vrot.lane.b32.xlu0 %v1713, 18
        %v2067 = vpop.permute.xlu0 %2066
        %vm2068 = vcmp.lt.s32.totalorder %v317, 18
        %v2069 = vsel %vm2068, %v2061, %v2065
        %v2070 = vsel %vm2068, %v2063, %v2067
        %v2071 = vsel %vm2068, %v2057, %v2061
        %v2072 = vsel %vm2068, %v2059, %v2063
        %v2073 = vsel %vm2068, %v2053, %v2057
        %v2074 = vsel %vm2068, %v2055, %v2059
        %v2075 = vsel %vm2068, %v2065, %v2053
        %v2076 = vsel %vm2068, %v2067, %v2055
        %2077 = vst [vmem:[#allocation2 + $0x240] sm:$0xff] %v2075
        %2078 = vst [vmem:[#allocation2 + $0x248] sm:$0xff] %v2073
        %2079 = vst [vmem:[#allocation2 + $0x250] sm:$0xff] %v2071
        %2080 = vst [vmem:[#allocation2 + $0x258] sm:$0xff] %v2069
        %2081 = vst [vmem:[#allocation2 + $0x260] sm:$0xff] %v2076
        %2082 = vst [vmem:[#allocation2 + $0x268] sm:$0xff] %v2074
        %2083 = vst [vmem:[#allocation2 + $0x270] sm:$0xff] %v2072
        %2084 = vst [vmem:[#allocation2 + $0x278] sm:$0xff] %v2070
        %s2085 = scalar_lea.vmem [#allocation8], 8
        %v2086 = vld [vmem:[%s2085] sm:$0xff]
        %v2087 = vld [vmem:[#allocation2 + $0x140] sm:$0xff]
        %v2088 = vld [vmem:[#allocation2 + $0x148] sm:$0xff]
        %v2089 = vld [vmem:[#allocation2 + $0x150] sm:$0xff]
        %v2090 = vld [vmem:[#allocation2 + $0x158] sm:$0xff]
        %v2091 = vld [vmem:[#allocation2 + $0x160] sm:$0xff]
        %v2092 = vld [vmem:[#allocation2 + $0x168] sm:$0xff]
        %v2093 = vld [vmem:[#allocation2 + $0x170] sm:$0xff]
        %v2094 = vld [vmem:[#allocation2 + $0x178] sm:$0xff]
        %v2095 = vld [vmem:[#allocation2 + $0x180] sm:$0xff]
        %v2096 = vld [vmem:[#allocation2 + $0x188] sm:$0xff]
        %v2097 = vld [vmem:[#allocation2 + $0x190] sm:$0xff]
        %v2098 = vld [vmem:[#allocation2 + $0x198] sm:$0xff]
        %v2099 = vld [vmem:[#allocation2 + $0x1a0] sm:$0xff]
        %v2100 = vld [vmem:[#allocation2 + $0x1a8] sm:$0xff]
        %v2101 = vld [vmem:[#allocation2 + $0x1b0] sm:$0xff]
        %v2102 = vld [vmem:[#allocation2 + $0x1b8] sm:$0xff]
        %v2103 = vld [vmem:[#allocation2 + $0x1c0] sm:$0xff]
        %v2104 = vld [vmem:[#allocation2 + $0x1c8] sm:$0xff]
        %v2105 = vld [vmem:[#allocation2 + $0x1d0] sm:$0xff]
        %v2106 = vld [vmem:[#allocation2 + $0x1d8] sm:$0xff]
        %v2107 = vld [vmem:[#allocation2 + $0x1e0] sm:$0xff]
        %v2108 = vld [vmem:[#allocation2 + $0x1e8] sm:$0xff]
        %v2109 = vld [vmem:[#allocation2 + $0x1f0] sm:$0xff]
        %v2110 = vld [vmem:[#allocation2 + $0x1f8] sm:$0xff]
        %v2111 = vld [vmem:[#allocation2 + $0x200] sm:$0xff]
        %v2112 = vld [vmem:[#allocation2 + $0x208] sm:$0xff]
        %v2113 = vld [vmem:[#allocation2 + $0x210] sm:$0xff]
        %v2114 = vld [vmem:[#allocation2 + $0x218] sm:$0xff]
        %v2115 = vld [vmem:[#allocation2 + $0x220] sm:$0xff]
        %v2116 = vld [vmem:[#allocation2 + $0x228] sm:$0xff]
        %v2117 = vld [vmem:[#allocation2 + $0x230] sm:$0xff]
        %v2118 = vld [vmem:[#allocation2 + $0x238] sm:$0xff]
        %v2119 = vld [vmem:[#allocation2 + $0x240] sm:$0xff]
        %v2120 = vld [vmem:[#allocation2 + $0x248] sm:$0xff]
        %v2121 = vld [vmem:[#allocation2 + $0x250] sm:$0xff]
        %v2122 = vld [vmem:[#allocation2 + $0x258] sm:$0xff]
        %v2123 = vld [vmem:[#allocation2 + $0x260] sm:$0xff]
        %v2124 = vld [vmem:[#allocation2 + $0x268] sm:$0xff]
        %v2125 = vld [vmem:[#allocation2 + $0x270] sm:$0xff]
        %v2126 = vld [vmem:[#allocation2 + $0x278] sm:$0xff]
        %vm2127 = vcmask 654336
        %v2129 = vsel %vm2127, %v2086, 0
        %2131 = vmatprep.subr.mxu0 0.0
        %2132 = vmatpush1.msra.mxu0 0.0
        %2133 = vmatprep.subr.mxu0 0.0
        %2134 = vmatpush1.msra.mxu0 0.0
        %2135 = vmatprep.subr.mxu0 0.0
        %2136 = vmatpush1.msra.mxu0 0.0
        %2137 = vmatprep.subr.mxu0 0.0
        %2138 = vmatpush1.msra.mxu0 0.0
        %2139 = vmatprep.subr.mxu0 0.0
        %2140 = vmatpush1.msra.mxu0 0.0
        %2141 = vmatprep.subr.mxu0 0.0
        %2142 = vmatpush1.msra.mxu0 0.0
        %2143 = vmatprep.subr.mxu0 %v2124
        %2144 = vmatpush1.msra.mxu0 %v2123
        %2145 = vmatprep.subr.mxu0 %v2120
        %2146 = vmatpush1.msra.mxu0 %v2119
        %2147 = vmatprep.subr.mxu0 %v2116
        %2148 = vmatpush1.msra.mxu0 %v2115
        %2149 = vmatprep.subr.mxu0 %v2112
        %2150 = vmatpush1.msra.mxu0 %v2111
        %2151 = vmatprep.subr.mxu0 %v2108
        %2152 = vmatpush1.msra.mxu0 %v2107
        %2153 = vmatprep.subr.mxu0 %v2104
        %2154 = vmatpush1.msra.mxu0 %v2103
        %2155 = vmatprep.subr.mxu0 %v2100
        %2156 = vmatpush1.msra.mxu0 %v2099
        %2157 = vmatprep.subr.mxu0 %v2096
        %2158 = vmatpush1.msra.mxu0 %v2095
        %2159 = vmatprep.subr.mxu0 %v2092
        %2160 = vmatpush1.msra.mxu0 %v2091
        %2161 = vmatprep.subr.mxu0 %v2088
        %2162 = vmatpush1.msra.mxu0 %v2087
        %2163 = vmatprep.subr.mxu0 0.0
        %2164 = vmatpush2.msra.mxu0 0.0
        %2165 = vmatprep.subr.mxu0 0.0
        %2166 = vmatpush2.msra.mxu0 0.0
        %2167 = vmatprep.subr.mxu0 0.0
        %2168 = vmatpush2.msra.mxu0 0.0
        %2169 = vmatprep.subr.mxu0 0.0
        %2170 = vmatpush2.msra.mxu0 0.0
        %2171 = vmatprep.subr.mxu0 0.0
        %2172 = vmatpush2.msra.mxu0 0.0
        %2173 = vmatprep.subr.mxu0 0.0
        %2174 = vmatpush2.msra.mxu0 0.0
        %2175 = vmatprep.subr.mxu0 0.0
        %2176 = vmatpush2.msra.mxu0 0.0
        %2177 = vmatprep.subr.mxu0 0.0
        %2178 = vmatpush2.msra.mxu0 0.0
        %2179 = vmatprep.subr.mxu0 0.0
        %2180 = vmatpush2.msra.mxu0 0.0
        %2181 = vmatprep.subr.mxu0 0.0
        %2182 = vmatpush2.msra.mxu0 0.0
        %2183 = vmatprep.subr.mxu0 0.0
        %2184 = vmatpush2.msra.mxu0 0.0
        %2185 = vmatprep.subr.mxu0 0.0
        %2186 = vmatpush2.msra.mxu0 0.0
        %2187 = vmatprep.subr.mxu0 0.0
        %2188 = vmatpush2.msra.mxu0 0.0
        %2189 = vmatprep.subr.mxu0 0.0
        %2190 = vmatpush2.msra.mxu0 0.0
        %2191 = vmatprep.subr.mxu0 0.0
        %2192 = vmatpush2.msra.mxu0 0.0
        %2193 = vmatprep.subr.mxu0 0.0
        %2194 = vmatpush2.msra.mxu0 0.0
        %2195 = vmatprep.mubr.f32.mxu0 0.0
        %2196 = vmatmul.mubr.f32.gmra.mxu0 %v2129
        %v2197 = vpop.f32.mrf.mxu0
        %v2198 = vadd.f32 0.0, %v2197
        %v2199 = vpop.f32.mrf.mxu0
        %v2200 = vadd.f32 0.0, %v2199
        %2201 = vdwg.mxu0
        %2202 = vmatprep.subr.mxu0 0.0
        %2203 = vmatpush1.msra.mxu0 0.0
        %2204 = vmatprep.subr.mxu0 0.0
        %2205 = vmatpush1.msra.mxu0 0.0
        %2206 = vmatprep.subr.mxu0 0.0
        %2207 = vmatpush1.msra.mxu0 0.0
        %2208 = vmatprep.subr.mxu0 0.0
        %2209 = vmatpush1.msra.mxu0 0.0
        %2210 = vmatprep.subr.mxu0 0.0
        %2211 = vmatpush1.msra.mxu0 0.0
        %2212 = vmatprep.subr.mxu0 0.0
        %2213 = vmatpush1.msra.mxu0 0.0
        %2214 = vmatprep.subr.mxu0 %v2126
        %2215 = vmatpush1.msra.mxu0 %v2125
        %2216 = vmatprep.subr.mxu0 %v2122
        %2217 = vmatpush1.msra.mxu0 %v2121
        %2218 = vmatprep.subr.mxu0 %v2118
        %2219 = vmatpush1.msra.mxu0 %v2117
        %2220 = vmatprep.subr.mxu0 %v2114
        %2221 = vmatpush1.msra.mxu0 %v2113
        %2222 = vmatprep.subr.mxu0 %v2110
        %2223 = vmatpush1.msra.mxu0 %v2109
        %2224 = vmatprep.subr.mxu0 %v2106
        %2225 = vmatpush1.msra.mxu0 %v2105
        %2226 = vmatprep.subr.mxu0 %v2102
        %2227 = vmatpush1.msra.mxu0 %v2101
        %2228 = vmatprep.subr.mxu0 %v2098
        %2229 = vmatpush1.msra.mxu0 %v2097
        %2230 = vmatprep.subr.mxu0 %v2094
        %2231 = vmatpush1.msra.mxu0 %v2093
        %2232 = vmatprep.subr.mxu0 %v2090
        %2233 = vmatpush1.msra.mxu0 %v2089
        %2234 = vmatprep.subr.mxu0 0.0
        %2235 = vmatpush2.msra.mxu0 0.0
        %2236 = vmatprep.subr.mxu0 0.0
        %2237 = vmatpush2.msra.mxu0 0.0
        %2238 = vmatprep.subr.mxu0 0.0
        %2239 = vmatpush2.msra.mxu0 0.0
        %2240 = vmatprep.subr.mxu0 0.0
        %2241 = vmatpush2.msra.mxu0 0.0
        %2242 = vmatprep.subr.mxu0 0.0
        %2243 = vmatpush2.msra.mxu0 0.0
        %2244 = vmatprep.subr.mxu0 0.0
        %2245 = vmatpush2.msra.mxu0 0.0
        %2246 = vmatprep.subr.mxu0 0.0
        %2247 = vmatpush2.msra.mxu0 0.0
        %2248 = vmatprep.subr.mxu0 0.0
        %2249 = vmatpush2.msra.mxu0 0.0
        %2250 = vmatprep.subr.mxu0 0.0
        %2251 = vmatpush2.msra.mxu0 0.0
        %2252 = vmatprep.subr.mxu0 0.0
        %2253 = vmatpush2.msra.mxu0 0.0
        %2254 = vmatprep.subr.mxu0 0.0
        %2255 = vmatpush2.msra.mxu0 0.0
        %2256 = vmatprep.subr.mxu0 0.0
        %2257 = vmatpush2.msra.mxu0 0.0
        %2258 = vmatprep.subr.mxu0 0.0
        %2259 = vmatpush2.msra.mxu0 0.0
        %2260 = vmatprep.subr.mxu0 0.0
        %2261 = vmatpush2.msra.mxu0 0.0
        %2262 = vmatprep.subr.mxu0 0.0
        %2263 = vmatpush2.msra.mxu0 0.0
        %2264 = vmatprep.subr.mxu0 0.0
        %2265 = vmatpush2.msra.mxu0 0.0
        %2266 = vmatprep.mubr.f32.mxu0 0.0
        %2267 = vmatmul.mubr.f32.gmra.mxu0 %v2129
        %v2268 = vpop.f32.mrf.mxu0
        %v2269 = vadd.f32 0.0, %v2268
        %v2270 = vpop.f32.mrf.mxu0
        %v2271 = vadd.f32 0.0, %v2270
        %2272 = vdwg.mxu0
        %v2274 = vsel %vm2127, %v1879, 0
        %2276 = vmatprep.subr.mxu0 0.0
        %2277 = vmatpush1.msra.mxu0 0.0
        %2278 = vmatprep.subr.mxu0 0.0
        %2279 = vmatpush1.msra.mxu0 0.0
        %2280 = vmatprep.subr.mxu0 0.0
        %2281 = vmatpush1.msra.mxu0 0.0
        %2282 = vmatprep.subr.mxu0 0.0
        %2283 = vmatpush1.msra.mxu0 0.0
        %2284 = vmatprep.subr.mxu0 0.0
        %2285 = vmatpush1.msra.mxu0 0.0
        %2286 = vmatprep.subr.mxu0 0.0
        %2287 = vmatpush1.msra.mxu0 0.0
        %2288 = vmatprep.subr.mxu0 %v1917
        %2289 = vmatpush1.msra.mxu0 %v1916
        %2290 = vmatprep.subr.mxu0 %v1913
        %2291 = vmatpush1.msra.mxu0 %v1912
        %2292 = vmatprep.subr.mxu0 %v1909
        %2293 = vmatpush1.msra.mxu0 %v1908
        %2294 = vmatprep.subr.mxu0 %v1905
        %2295 = vmatpush1.msra.mxu0 %v1904
        %2296 = vmatprep.subr.mxu0 %v1901
        %2297 = vmatpush1.msra.mxu0 %v1900
        %2298 = vmatprep.subr.mxu0 %v1897
        %2299 = vmatpush1.msra.mxu0 %v1896
        %2300 = vmatprep.subr.mxu0 %v1893
        %2301 = vmatpush1.msra.mxu0 %v1892
        %2302 = vmatprep.subr.mxu0 %v1889
        %2303 = vmatpush1.msra.mxu0 %v1888
        %2304 = vmatprep.subr.mxu0 %v1885
        %2305 = vmatpush1.msra.mxu0 %v1884
        %2306 = vmatprep.subr.mxu0 %v1881
        %2307 = vmatpush1.msra.mxu0 %v1880
        %2308 = vmatprep.subr.mxu0 0.0
        %2309 = vmatpush2.msra.mxu0 0.0
        %2310 = vmatprep.subr.mxu0 0.0
        %2311 = vmatpush2.msra.mxu0 0.0
        %2312 = vmatprep.subr.mxu0 0.0
        %2313 = vmatpush2.msra.mxu0 0.0
        %2314 = vmatprep.subr.mxu0 0.0
        %2315 = vmatpush2.msra.mxu0 0.0
        %2316 = vmatprep.subr.mxu0 0.0
        %2317 = vmatpush2.msra.mxu0 0.0
        %2318 = vmatprep.subr.mxu0 0.0
        %2319 = vmatpush2.msra.mxu0 0.0
        %2320 = vmatprep.subr.mxu0 0.0
        %2321 = vmatpush2.msra.mxu0 0.0
        %2322 = vmatprep.subr.mxu0 0.0
        %2323 = vmatpush2.msra.mxu0 0.0
        %2324 = vmatprep.subr.mxu0 0.0
        %2325 = vmatpush2.msra.mxu0 0.0
        %2326 = vmatprep.subr.mxu0 0.0
        %2327 = vmatpush2.msra.mxu0 0.0
        %2328 = vmatprep.subr.mxu0 0.0
        %2329 = vmatpush2.msra.mxu0 0.0
        %2330 = vmatprep.subr.mxu0 0.0
        %2331 = vmatpush2.msra.mxu0 0.0
        %2332 = vmatprep.subr.mxu0 0.0
        %2333 = vmatpush2.msra.mxu0 0.0
        %2334 = vmatprep.subr.mxu0 0.0
        %2335 = vmatpush2.msra.mxu0 0.0
        %2336 = vmatprep.subr.mxu0 0.0
        %2337 = vmatpush2.msra.mxu0 0.0
        %2338 = vmatprep.subr.mxu0 0.0
        %2339 = vmatpush2.msra.mxu0 0.0
        %2340 = vmatprep.mubr.f32.mxu0 0.0
        %2341 = vmatmul.mubr.f32.gmra.mxu0 %v2274
        %v2342 = vpop.f32.mrf.mxu0
        %v2343 = vadd.f32 %v2198, %v2342
        %v2344 = vpop.f32.mrf.mxu0
        %v2345 = vadd.f32 %v2200, %v2344
        %2346 = vdwg.mxu0
        %2347 = vmatprep.subr.mxu0 0.0
        %2348 = vmatpush1.msra.mxu0 0.0
        %2349 = vmatprep.subr.mxu0 0.0
        %2350 = vmatpush1.msra.mxu0 0.0
        %2351 = vmatprep.subr.mxu0 0.0
        %2352 = vmatpush1.msra.mxu0 0.0
        %2353 = vmatprep.subr.mxu0 0.0
        %2354 = vmatpush1.msra.mxu0 0.0
        %2355 = vmatprep.subr.mxu0 0.0
        %2356 = vmatpush1.msra.mxu0 0.0
        %2357 = vmatprep.subr.mxu0 0.0
        %2358 = vmatpush1.msra.mxu0 0.0
        %2359 = vmatprep.subr.mxu0 %v1919
        %2360 = vmatpush1.msra.mxu0 %v1918
        %2361 = vmatprep.subr.mxu0 %v1915
        %2362 = vmatpush1.msra.mxu0 %v1914
        %2363 = vmatprep.subr.mxu0 %v1911
        %2364 = vmatpush1.msra.mxu0 %v1910
        %2365 = vmatprep.subr.mxu0 %v1907
        %2366 = vmatpush1.msra.mxu0 %v1906
        %2367 = vmatprep.subr.mxu0 %v1903
        %2368 = vmatpush1.msra.mxu0 %v1902
        %2369 = vmatprep.subr.mxu0 %v1899
        %2370 = vmatpush1.msra.mxu0 %v1898
        %2371 = vmatprep.subr.mxu0 %v1895
        %2372 = vmatpush1.msra.mxu0 %v1894
        %2373 = vmatprep.subr.mxu0 %v1891
        %2374 = vmatpush1.msra.mxu0 %v1890
        %2375 = vmatprep.subr.mxu0 %v1887
        %2376 = vmatpush1.msra.mxu0 %v1886
        %2377 = vmatprep.subr.mxu0 %v1883
        %2378 = vmatpush1.msra.mxu0 %v1882
        %2379 = vmatprep.subr.mxu0 0.0
        %2380 = vmatpush2.msra.mxu0 0.0
        %2381 = vmatprep.subr.mxu0 0.0
        %2382 = vmatpush2.msra.mxu0 0.0
        %2383 = vmatprep.subr.mxu0 0.0
        %2384 = vmatpush2.msra.mxu0 0.0
        %2385 = vmatprep.subr.mxu0 0.0
        %2386 = vmatpush2.msra.mxu0 0.0
        %2387 = vmatprep.subr.mxu0 0.0
        %2388 = vmatpush2.msra.mxu0 0.0
        %2389 = vmatprep.subr.mxu0 0.0
        %2390 = vmatpush2.msra.mxu0 0.0
        %2391 = vmatprep.subr.mxu0 0.0
        %2392 = vmatpush2.msra.mxu0 0.0
        %2393 = vmatprep.subr.mxu0 0.0
        %2394 = vmatpush2.msra.mxu0 0.0
        %2395 = vmatprep.subr.mxu0 0.0
        %2396 = vmatpush2.msra.mxu0 0.0
        %2397 = vmatprep.subr.mxu0 0.0
        %2398 = vmatpush2.msra.mxu0 0.0
        %2399 = vmatprep.subr.mxu0 0.0
        %2400 = vmatpush2.msra.mxu0 0.0
        %2401 = vmatprep.subr.mxu0 0.0
        %2402 = vmatpush2.msra.mxu0 0.0
        %2403 = vmatprep.subr.mxu0 0.0
        %2404 = vmatpush2.msra.mxu0 0.0
        %2405 = vmatprep.subr.mxu0 0.0
        %2406 = vmatpush2.msra.mxu0 0.0
        %2407 = vmatprep.subr.mxu0 0.0
        %2408 = vmatpush2.msra.mxu0 0.0
        %2409 = vmatprep.subr.mxu0 0.0
        %2410 = vmatpush2.msra.mxu0 0.0
        %2411 = vmatprep.mubr.f32.mxu0 0.0
        %2412 = vmatmul.mubr.f32.gmra.mxu0 %v2274
        %v2413 = vpop.f32.mrf.mxu0
        %v2414 = vadd.f32 %v2269, %v2413
        %v2415 = vpop.f32.mrf.mxu0
        %v2416 = vadd.f32 %v2271, %v2415
        %2417 = vdwg.mxu0
        %2418 = vrot.lane.b32.xlu0 %v1706, 2
        %v2419 = vpop.permute.xlu0 %2418
        %2420 = vrot.lane.b32.xlu0 %v1710, 2
        %v2421 = vpop.permute.xlu0 %2420
        %2422 = vrot.lane.b32.xlu0 %v1707, 2
        %v2423 = vpop.permute.xlu0 %2422
        %2424 = vrot.lane.b32.xlu0 %v1711, 2
        %v2425 = vpop.permute.xlu0 %2424
        %2426 = vrot.lane.b32.xlu0 %v1708, 2
        %v2427 = vpop.permute.xlu0 %2426
        %2428 = vrot.lane.b32.xlu0 %v1712, 2
        %v2429 = vpop.permute.xlu0 %2428
        %2430 = vrot.lane.b32.xlu0 %v1709, 2
        %v2431 = vpop.permute.xlu0 %2430
        %2432 = vrot.lane.b32.xlu0 %v1713, 2
        %v2433 = vpop.permute.xlu0 %2432
        %vm2434 = vcmp.lt.s32.totalorder %v317, 2
        %v2435 = vsel %vm2434, %v2427, %v2431
        %v2436 = vsel %vm2434, %v2429, %v2433
        %v2437 = vsel %vm2434, %v2423, %v2427
        %v2438 = vsel %vm2434, %v2425, %v2429
        %v2439 = vsel %vm2434, %v2419, %v2423
        %v2440 = vsel %vm2434, %v2421, %v2425
        %v2441 = vsel %vm2434, %v2431, %v2419
        %v2442 = vsel %vm2434, %v2433, %v2421
        %2443 = vst [vmem:[#allocation2 + $0x280] sm:$0xff] %v2441
        %2444 = vst [vmem:[#allocation2 + $0x288] sm:$0xff] %v2439
        %2445 = vst [vmem:[#allocation2 + $0x290] sm:$0xff] %v2437
        %2446 = vst [vmem:[#allocation2 + $0x298] sm:$0xff] %v2435
        %2447 = vst [vmem:[#allocation2 + $0x2a0] sm:$0xff] %v2442
        %2448 = vst [vmem:[#allocation2 + $0x2a8] sm:$0xff] %v2440
        %2449 = vst [vmem:[#allocation2 + $0x2b0] sm:$0xff] %v2438
        %2450 = vst [vmem:[#allocation2 + $0x2b8] sm:$0xff] %v2436
        %2451 = vrot.lane.b32.xlu0 %v1706, 1
        %v2452 = vpop.permute.xlu0 %2451
        %2453 = vrot.lane.b32.xlu0 %v1710, 1
        %v2454 = vpop.permute.xlu0 %2453
        %2455 = vrot.lane.b32.xlu0 %v1707, 1
        %v2456 = vpop.permute.xlu0 %2455
        %2457 = vrot.lane.b32.xlu0 %v1711, 1
        %v2458 = vpop.permute.xlu0 %2457
        %2459 = vrot.lane.b32.xlu0 %v1708, 1
        %v2460 = vpop.permute.xlu0 %2459
        %2461 = vrot.lane.b32.xlu0 %v1712, 1
        %v2462 = vpop.permute.xlu0 %2461
        %2463 = vrot.lane.b32.xlu0 %v1709, 1
        %v2464 = vpop.permute.xlu0 %2463
        %2465 = vrot.lane.b32.xlu0 %v1713, 1
        %v2466 = vpop.permute.xlu0 %2465
        %vm2467 = vcmp.lt.s32.totalorder %v317, 1
        %v2468 = vsel %vm2467, %v2460, %v2464
        %v2469 = vsel %vm2467, %v2462, %v2466
        %v2470 = vsel %vm2467, %v2456, %v2460
        %v2471 = vsel %vm2467, %v2458, %v2462
        %v2472 = vsel %vm2467, %v2452, %v2456
        %v2473 = vsel %vm2467, %v2454, %v2458
        %v2474 = vsel %vm2467, %v2464, %v2452
        %v2475 = vsel %vm2467, %v2466, %v2454
        %2476 = vst [vmem:[#allocation2 + $0x2c0] sm:$0xff] %v2474
        %2477 = vst [vmem:[#allocation2 + $0x2c8] sm:$0xff] %v2472
        %2478 = vst [vmem:[#allocation2 + $0x2d0] sm:$0xff] %v2470
        %2479 = vst [vmem:[#allocation2 + $0x2d8] sm:$0xff] %v2468
        %2480 = vst [vmem:[#allocation2 + $0x2e0] sm:$0xff] %v2475
        %2481 = vst [vmem:[#allocation2 + $0x2e8] sm:$0xff] %v2473
        %2482 = vst [vmem:[#allocation2 + $0x2f0] sm:$0xff] %v2471
        %2483 = vst [vmem:[#allocation2 + $0x2f8] sm:$0xff] %v2469
        %2484 = vst [vmem:[#allocation2 + $0x300] sm:$0xff] %v1706
        %2485 = vst [vmem:[#allocation2 + $0x308] sm:$0xff] %v1707
        %2486 = vst [vmem:[#allocation2 + $0x310] sm:$0xff] %v1708
        %2487 = vst [vmem:[#allocation2 + $0x318] sm:$0xff] %v1709
        %2488 = vst [vmem:[#allocation2 + $0x320] sm:$0xff] %v1710
        %2489 = vst [vmem:[#allocation2 + $0x328] sm:$0xff] %v1711
        %2490 = vst [vmem:[#allocation2 + $0x330] sm:$0xff] %v1712
        %2491 = vst [vmem:[#allocation2 + $0x338] sm:$0xff] %v1713
        %2492 = vrot.lane.b32.xlu0 %v1706, 127
        %v2493 = vpop.permute.xlu0 %2492
        %2494 = vrot.lane.b32.xlu0 %v1710, 127
        %v2495 = vpop.permute.xlu0 %2494
        %2496 = vrot.lane.b32.xlu0 %v1707, 127
        %v2497 = vpop.permute.xlu0 %2496
        %2498 = vrot.lane.b32.xlu0 %v1711, 127
        %v2499 = vpop.permute.xlu0 %2498
        %2500 = vrot.lane.b32.xlu0 %v1708, 127
        %v2501 = vpop.permute.xlu0 %2500
        %2502 = vrot.lane.b32.xlu0 %v1712, 127
        %v2503 = vpop.permute.xlu0 %2502
        %2504 = vrot.lane.b32.xlu0 %v1709, 127
        %v2505 = vpop.permute.xlu0 %2504
        %2506 = vrot.lane.b32.xlu0 %v1713, 127
        %v2507 = vpop.permute.xlu0 %2506
        %v2508 = vsel %vm318, %v2501, %v2505
        %v2509 = vsel %vm318, %v2503, %v2507
        %v2510 = vsel %vm318, %v2497, %v2501
        %v2511 = vsel %vm318, %v2499, %v2503
        %v2512 = vsel %vm318, %v2493, %v2497
        %v2513 = vsel %vm318, %v2495, %v2499
        %v2514 = vsel %vm318, %v2505, %v2493
        %v2515 = vsel %vm318, %v2507, %v2495
        %2516 = vst [vmem:[#allocation2 + $0x340] sm:$0xff] %v2512
        %2517 = vst [vmem:[#allocation2 + $0x348] sm:$0xff] %v2510
        %2518 = vst [vmem:[#allocation2 + $0x350] sm:$0xff] %v2508
        %2519 = vst [vmem:[#allocation2 + $0x358] sm:$0xff] %v2514
        %2520 = vst [vmem:[#allocation2 + $0x360] sm:$0xff] %v2513
        %2521 = vst [vmem:[#allocation2 + $0x368] sm:$0xff] %v2511
        %2522 = vst [vmem:[#allocation2 + $0x370] sm:$0xff] %v2509
        %2523 = vst [vmem:[#allocation2 + $0x378] sm:$0xff] %v2515
        %2524 = vrot.lane.b32.xlu0 %v1706, 126
        %v2525 = vpop.permute.xlu0 %2524
        %2526 = vrot.lane.b32.xlu0 %v1710, 126
        %v2527 = vpop.permute.xlu0 %2526
        %2528 = vrot.lane.b32.xlu0 %v1707, 126
        %v2529 = vpop.permute.xlu0 %2528
        %2530 = vrot.lane.b32.xlu0 %v1711, 126
        %v2531 = vpop.permute.xlu0 %2530
        %2532 = vrot.lane.b32.xlu0 %v1708, 126
        %v2533 = vpop.permute.xlu0 %2532
        %2534 = vrot.lane.b32.xlu0 %v1712, 126
        %v2535 = vpop.permute.xlu0 %2534
        %2536 = vrot.lane.b32.xlu0 %v1709, 126
        %v2537 = vpop.permute.xlu0 %2536
        %2538 = vrot.lane.b32.xlu0 %v1713, 126
        %v2539 = vpop.permute.xlu0 %2538
        %v2540 = vsel %vm335, %v2533, %v2537
        %v2541 = vsel %vm335, %v2535, %v2539
        %v2542 = vsel %vm335, %v2529, %v2533
        %v2543 = vsel %vm335, %v2531, %v2535
        %v2544 = vsel %vm335, %v2525, %v2529
        %v2545 = vsel %vm335, %v2527, %v2531
        %v2546 = vsel %vm335, %v2537, %v2525
        %v2547 = vsel %vm335, %v2539, %v2527
        %2548 = vst [vmem:[#allocation2 + $0x380] sm:$0xff] %v2544
        %2549 = vst [vmem:[#allocation2 + $0x388] sm:$0xff] %v2542
        %2550 = vst [vmem:[#allocation2 + $0x390] sm:$0xff] %v2540
        %2551 = vst [vmem:[#allocation2 + $0x398] sm:$0xff] %v2546
        %2552 = vst [vmem:[#allocation2 + $0x3a0] sm:$0xff] %v2545
        %2553 = vst [vmem:[#allocation2 + $0x3a8] sm:$0xff] %v2543
        %2554 = vst [vmem:[#allocation2 + $0x3b0] sm:$0xff] %v2541
        %2555 = vst [vmem:[#allocation2 + $0x3b8] sm:$0xff] %v2547
        %s2556 = scalar_lea.vmem [#allocation8], 16
        %v2557 = vld [vmem:[%s2556] sm:$0xff]
        %v2558 = vld [vmem:[#allocation2 + $0x280] sm:$0xff]
        %v2559 = vld [vmem:[#allocation2 + $0x288] sm:$0xff]
        %v2560 = vld [vmem:[#allocation2 + $0x290] sm:$0xff]
        %v2561 = vld [vmem:[#allocation2 + $0x298] sm:$0xff]
        %v2562 = vld [vmem:[#allocation2 + $0x2a0] sm:$0xff]
        %v2563 = vld [vmem:[#allocation2 + $0x2a8] sm:$0xff]
        %v2564 = vld [vmem:[#allocation2 + $0x2b0] sm:$0xff]
        %v2565 = vld [vmem:[#allocation2 + $0x2b8] sm:$0xff]
        %v2566 = vld [vmem:[#allocation2 + $0x2c0] sm:$0xff]
        %v2567 = vld [vmem:[#allocation2 + $0x2c8] sm:$0xff]
        %v2568 = vld [vmem:[#allocation2 + $0x2d0] sm:$0xff]
        %v2569 = vld [vmem:[#allocation2 + $0x2d8] sm:$0xff]
        %v2570 = vld [vmem:[#allocation2 + $0x2e0] sm:$0xff]
        %v2571 = vld [vmem:[#allocation2 + $0x2e8] sm:$0xff]
        %v2572 = vld [vmem:[#allocation2 + $0x2f0] sm:$0xff]
        %v2573 = vld [vmem:[#allocation2 + $0x2f8] sm:$0xff]
        %v2574 = vld [vmem:[#allocation2 + $0x300] sm:$0xff]
        %v2575 = vld [vmem:[#allocation2 + $0x308] sm:$0xff]
        %v2576 = vld [vmem:[#allocation2 + $0x310] sm:$0xff]
        %v2577 = vld [vmem:[#allocation2 + $0x318] sm:$0xff]
        %v2578 = vld [vmem:[#allocation2 + $0x320] sm:$0xff]
        %v2579 = vld [vmem:[#allocation2 + $0x328] sm:$0xff]
        %v2580 = vld [vmem:[#allocation2 + $0x330] sm:$0xff]
        %v2581 = vld [vmem:[#allocation2 + $0x338] sm:$0xff]
        %v2582 = vld [vmem:[#allocation2 + $0x340] sm:$0xff]
        %v2583 = vld [vmem:[#allocation2 + $0x348] sm:$0xff]
        %v2584 = vld [vmem:[#allocation2 + $0x350] sm:$0xff]
        %v2585 = vld [vmem:[#allocation2 + $0x358] sm:$0xff]
        %v2586 = vld [vmem:[#allocation2 + $0x360] sm:$0xff]
        %v2587 = vld [vmem:[#allocation2 + $0x368] sm:$0xff]
        %v2588 = vld [vmem:[#allocation2 + $0x370] sm:$0xff]
        %v2589 = vld [vmem:[#allocation2 + $0x378] sm:$0xff]
        %v2590 = vld [vmem:[#allocation2 + $0x380] sm:$0xff]
        %v2591 = vld [vmem:[#allocation2 + $0x388] sm:$0xff]
        %v2592 = vld [vmem:[#allocation2 + $0x390] sm:$0xff]
        %v2593 = vld [vmem:[#allocation2 + $0x398] sm:$0xff]
        %v2594 = vld [vmem:[#allocation2 + $0x3a0] sm:$0xff]
        %v2595 = vld [vmem:[#allocation2 + $0x3a8] sm:$0xff]
        %v2596 = vld [vmem:[#allocation2 + $0x3b0] sm:$0xff]
        %v2597 = vld [vmem:[#allocation2 + $0x3b8] sm:$0xff]
        %v2599 = vsel %vm2127, %v2557, 0
        %2601 = vmatprep.subr.mxu0 0.0
        %2602 = vmatpush1.msra.mxu0 0.0
        %2603 = vmatprep.subr.mxu0 0.0
        %2604 = vmatpush1.msra.mxu0 0.0
        %2605 = vmatprep.subr.mxu0 0.0
        %2606 = vmatpush1.msra.mxu0 0.0
        %2607 = vmatprep.subr.mxu0 0.0
        %2608 = vmatpush1.msra.mxu0 0.0
        %2609 = vmatprep.subr.mxu0 0.0
        %2610 = vmatpush1.msra.mxu0 0.0
        %2611 = vmatprep.subr.mxu0 0.0
        %2612 = vmatpush1.msra.mxu0 0.0
        %2613 = vmatprep.subr.mxu0 %v2595
        %2614 = vmatpush1.msra.mxu0 %v2594
        %2615 = vmatprep.subr.mxu0 %v2591
        %2616 = vmatpush1.msra.mxu0 %v2590
        %2617 = vmatprep.subr.mxu0 %v2587
        %2618 = vmatpush1.msra.mxu0 %v2586
        %2619 = vmatprep.subr.mxu0 %v2583
        %2620 = vmatpush1.msra.mxu0 %v2582
        %2621 = vmatprep.subr.mxu0 %v2579
        %2622 = vmatpush1.msra.mxu0 %v2578
        %2623 = vmatprep.subr.mxu0 %v2575
        %2624 = vmatpush1.msra.mxu0 %v2574
        %2625 = vmatprep.subr.mxu0 %v2571
        %2626 = vmatpush1.msra.mxu0 %v2570
        %2627 = vmatprep.subr.mxu0 %v2567
        %2628 = vmatpush1.msra.mxu0 %v2566
        %2629 = vmatprep.subr.mxu0 %v2563
        %2630 = vmatpush1.msra.mxu0 %v2562
        %2631 = vmatprep.subr.mxu0 %v2559
        %2632 = vmatpush1.msra.mxu0 %v2558
        %2633 = vmatprep.subr.mxu0 0.0
        %2634 = vmatpush2.msra.mxu0 0.0
        %2635 = vmatprep.subr.mxu0 0.0
        %2636 = vmatpush2.msra.mxu0 0.0
        %2637 = vmatprep.subr.mxu0 0.0
        %2638 = vmatpush2.msra.mxu0 0.0
        %2639 = vmatprep.subr.mxu0 0.0
        %2640 = vmatpush2.msra.mxu0 0.0
        %2641 = vmatprep.subr.mxu0 0.0
        %2642 = vmatpush2.msra.mxu0 0.0
        %2643 = vmatprep.subr.mxu0 0.0
        %2644 = vmatpush2.msra.mxu0 0.0
        %2645 = vmatprep.subr.mxu0 0.0
        %2646 = vmatpush2.msra.mxu0 0.0
        %2647 = vmatprep.subr.mxu0 0.0
        %2648 = vmatpush2.msra.mxu0 0.0
        %2649 = vmatprep.subr.mxu0 0.0
        %2650 = vmatpush2.msra.mxu0 0.0
        %2651 = vmatprep.subr.mxu0 0.0
        %2652 = vmatpush2.msra.mxu0 0.0
        %2653 = vmatprep.subr.mxu0 0.0
        %2654 = vmatpush2.msra.mxu0 0.0
        %2655 = vmatprep.subr.mxu0 0.0
        %2656 = vmatpush2.msra.mxu0 0.0
        %2657 = vmatprep.subr.mxu0 0.0
        %2658 = vmatpush2.msra.mxu0 0.0
        %2659 = vmatprep.subr.mxu0 0.0
        %2660 = vmatpush2.msra.mxu0 0.0
        %2661 = vmatprep.subr.mxu0 0.0
        %2662 = vmatpush2.msra.mxu0 0.0
        %2663 = vmatprep.subr.mxu0 0.0
        %2664 = vmatpush2.msra.mxu0 0.0
        %2665 = vmatprep.mubr.f32.mxu0 0.0
        %2666 = vmatmul.mubr.f32.gmra.mxu0 %v2599
        %v2667 = vpop.f32.mrf.mxu0
        %v2668 = vadd.f32 0.0, %v2667
        %v2669 = vpop.f32.mrf.mxu0
        %v2670 = vadd.f32 0.0, %v2669
        %2671 = vdwg.mxu0
        %2672 = vmatprep.subr.mxu0 0.0
        %2673 = vmatpush1.msra.mxu0 0.0
        %2674 = vmatprep.subr.mxu0 0.0
        %2675 = vmatpush1.msra.mxu0 0.0
        %2676 = vmatprep.subr.mxu0 0.0
        %2677 = vmatpush1.msra.mxu0 0.0
        %2678 = vmatprep.subr.mxu0 0.0
        %2679 = vmatpush1.msra.mxu0 0.0
        %2680 = vmatprep.subr.mxu0 0.0
        %2681 = vmatpush1.msra.mxu0 0.0
        %2682 = vmatprep.subr.mxu0 0.0
        %2683 = vmatpush1.msra.mxu0 0.0
        %2684 = vmatprep.subr.mxu0 %v2597
        %2685 = vmatpush1.msra.mxu0 %v2596
        %2686 = vmatprep.subr.mxu0 %v2593
        %2687 = vmatpush1.msra.mxu0 %v2592
        %2688 = vmatprep.subr.mxu0 %v2589
        %2689 = vmatpush1.msra.mxu0 %v2588
        %2690 = vmatprep.subr.mxu0 %v2585
        %2691 = vmatpush1.msra.mxu0 %v2584
        %2692 = vmatprep.subr.mxu0 %v2581
        %2693 = vmatpush1.msra.mxu0 %v2580
        %2694 = vmatprep.subr.mxu0 %v2577
        %2695 = vmatpush1.msra.mxu0 %v2576
        %2696 = vmatprep.subr.mxu0 %v2573
        %2697 = vmatpush1.msra.mxu0 %v2572
        %2698 = vmatprep.subr.mxu0 %v2569
        %2699 = vmatpush1.msra.mxu0 %v2568
        %2700 = vmatprep.subr.mxu0 %v2565
        %2701 = vmatpush1.msra.mxu0 %v2564
        %2702 = vmatprep.subr.mxu0 %v2561
        %2703 = vmatpush1.msra.mxu0 %v2560
        %2704 = vmatprep.subr.mxu0 0.0
        %2705 = vmatpush2.msra.mxu0 0.0
        %2706 = vmatprep.subr.mxu0 0.0
        %2707 = vmatpush2.msra.mxu0 0.0
        %2708 = vmatprep.subr.mxu0 0.0
        %2709 = vmatpush2.msra.mxu0 0.0
        %2710 = vmatprep.subr.mxu0 0.0
        %2711 = vmatpush2.msra.mxu0 0.0
        %2712 = vmatprep.subr.mxu0 0.0
        %2713 = vmatpush2.msra.mxu0 0.0
        %2714 = vmatprep.subr.mxu0 0.0
        %2715 = vmatpush2.msra.mxu0 0.0
        %2716 = vmatprep.subr.mxu0 0.0
        %2717 = vmatpush2.msra.mxu0 0.0
        %2718 = vmatprep.subr.mxu0 0.0
        %2719 = vmatpush2.msra.mxu0 0.0
        %2720 = vmatprep.subr.mxu0 0.0
        %2721 = vmatpush2.msra.mxu0 0.0
        %2722 = vmatprep.subr.mxu0 0.0
        %2723 = vmatpush2.msra.mxu0 0.0
        %2724 = vmatprep.subr.mxu0 0.0
        %2725 = vmatpush2.msra.mxu0 0.0
        %2726 = vmatprep.subr.mxu0 0.0
        %2727 = vmatpush2.msra.mxu0 0.0
        %2728 = vmatprep.subr.mxu0 0.0
        %2729 = vmatpush2.msra.mxu0 0.0
        %2730 = vmatprep.subr.mxu0 0.0
        %2731 = vmatpush2.msra.mxu0 0.0
        %2732 = vmatprep.subr.mxu0 0.0
        %2733 = vmatpush2.msra.mxu0 0.0
        %2734 = vmatprep.subr.mxu0 0.0
        %2735 = vmatpush2.msra.mxu0 0.0
        %2736 = vmatprep.mubr.f32.mxu0 0.0
        %2737 = vmatmul.mubr.f32.gmra.mxu0 %v2599
        %v2738 = vpop.f32.mrf.mxu0
        %v2739 = vadd.f32 0.0, %v2738
        %v2740 = vpop.f32.mrf.mxu0
        %v2741 = vadd.f32 0.0, %v2740
        %2742 = vdwg.mxu0
        %v2743 = vadd.f32 %v2343, %v2668
        %v2744 = vadd.f32 %v2345, %v2670
        %v2745 = vadd.f32 %v2414, %v2739
        %v2746 = vadd.f32 %v2416, %v2741
        %2747 = vrot.lane.b32.xlu0 %v1706, 110
        %v2748 = vpop.permute.xlu0 %2747
        %2749 = vrot.lane.b32.xlu0 %v1710, 110
        %v2750 = vpop.permute.xlu0 %2749
        %2751 = vrot.lane.b32.xlu0 %v1707, 110
        %v2752 = vpop.permute.xlu0 %2751
        %2753 = vrot.lane.b32.xlu0 %v1711, 110
        %v2754 = vpop.permute.xlu0 %2753
        %2755 = vrot.lane.b32.xlu0 %v1708, 110
        %v2756 = vpop.permute.xlu0 %2755
        %2757 = vrot.lane.b32.xlu0 %v1712, 110
        %v2758 = vpop.permute.xlu0 %2757
        %2759 = vrot.lane.b32.xlu0 %v1709, 110
        %v2760 = vpop.permute.xlu0 %2759
        %2761 = vrot.lane.b32.xlu0 %v1713, 110
        %v2762 = vpop.permute.xlu0 %2761
        %vm2763 = vcmp.lt.s32.totalorder %v317, 110
        %v2764 = vsel %vm2763, %v2756, %v2760
        %v2765 = vsel %vm2763, %v2758, %v2762
        %v2766 = vsel %vm2763, %v2752, %v2756
        %v2767 = vsel %vm2763, %v2754, %v2758
        %v2768 = vsel %vm2763, %v2748, %v2752
        %v2769 = vsel %vm2763, %v2750, %v2754
        %v2770 = vsel %vm2763, %v2760, %v2748
        %v2771 = vsel %vm2763, %v2762, %v2750
        %2772 = vst [vmem:[#allocation2 + $0x3c0] sm:$0xff] %v2768
        %2773 = vst [vmem:[#allocation2 + $0x3c8] sm:$0xff] %v2766
        %2774 = vst [vmem:[#allocation2 + $0x3d0] sm:$0xff] %v2764
        %2775 = vst [vmem:[#allocation2 + $0x3d8] sm:$0xff] %v2770
        %2776 = vst [vmem:[#allocation2 + $0x3e0] sm:$0xff] %v2769
        %2777 = vst [vmem:[#allocation2 + $0x3e8] sm:$0xff] %v2767
        %2778 = vst [vmem:[#allocation2 + $0x3f0] sm:$0xff] %v2765
        %2779 = vst [vmem:[#allocation2 + $0x3f8] sm:$0xff] %v2771
        %2780 = vrot.lane.b32.xlu0 %v1706, 109
        %v2781 = vpop.permute.xlu0 %2780
        %2782 = vrot.lane.b32.xlu0 %v1710, 109
        %v2783 = vpop.permute.xlu0 %2782
        %2784 = vrot.lane.b32.xlu0 %v1707, 109
        %v2785 = vpop.permute.xlu0 %2784
        %2786 = vrot.lane.b32.xlu0 %v1711, 109
        %v2787 = vpop.permute.xlu0 %2786
        %2788 = vrot.lane.b32.xlu0 %v1708, 109
        %v2789 = vpop.permute.xlu0 %2788
        %2790 = vrot.lane.b32.xlu0 %v1712, 109
        %v2791 = vpop.permute.xlu0 %2790
        %2792 = vrot.lane.b32.xlu0 %v1709, 109
        %v2793 = vpop.permute.xlu0 %2792
        %2794 = vrot.lane.b32.xlu0 %v1713, 109
        %v2795 = vpop.permute.xlu0 %2794
        %vm2796 = vcmp.lt.s32.totalorder %v317, 109
        %v2797 = vsel %vm2796, %v2789, %v2793
        %v2798 = vsel %vm2796, %v2791, %v2795
        %v2799 = vsel %vm2796, %v2785, %v2789
        %v2800 = vsel %vm2796, %v2787, %v2791
        %v2801 = vsel %vm2796, %v2781, %v2785
        %v2802 = vsel %vm2796, %v2783, %v2787
        %v2803 = vsel %vm2796, %v2793, %v2781
        %v2804 = vsel %vm2796, %v2795, %v2783
        %2805 = vst [vmem:[#allocation2 + $0x400] sm:$0xff] %v2801
        %2806 = vst [vmem:[#allocation2 + $0x408] sm:$0xff] %v2799
        %2807 = vst [vmem:[#allocation2 + $0x410] sm:$0xff] %v2797
        %2808 = vst [vmem:[#allocation2 + $0x418] sm:$0xff] %v2803
        %2809 = vst [vmem:[#allocation2 + $0x420] sm:$0xff] %v2802
        %2810 = vst [vmem:[#allocation2 + $0x428] sm:$0xff] %v2800
        %2811 = vst [vmem:[#allocation2 + $0x430] sm:$0xff] %v2798
        %2812 = vst [vmem:[#allocation2 + $0x438] sm:$0xff] %v2804
        %2813 = vrot.lane.b32.xlu0 %v1706, 108
        %v2814 = vpop.permute.xlu0 %2813
        %2815 = vrot.lane.b32.xlu0 %v1710, 108
        %v2816 = vpop.permute.xlu0 %2815
        %2817 = vrot.lane.b32.xlu0 %v1707, 108
        %v2818 = vpop.permute.xlu0 %2817
        %2819 = vrot.lane.b32.xlu0 %v1711, 108
        %v2820 = vpop.permute.xlu0 %2819
        %2821 = vrot.lane.b32.xlu0 %v1708, 108
        %v2822 = vpop.permute.xlu0 %2821
        %2823 = vrot.lane.b32.xlu0 %v1712, 108
        %v2824 = vpop.permute.xlu0 %2823
        %2825 = vrot.lane.b32.xlu0 %v1709, 108
        %v2826 = vpop.permute.xlu0 %2825
        %2827 = vrot.lane.b32.xlu0 %v1713, 108
        %v2828 = vpop.permute.xlu0 %2827
        %v2829 = vsel %vm408, %v2822, %v2826
        %v2830 = vsel %vm408, %v2824, %v2828
        %v2831 = vsel %vm408, %v2818, %v2822
        %v2832 = vsel %vm408, %v2820, %v2824
        %v2833 = vsel %vm408, %v2814, %v2818
        %v2834 = vsel %vm408, %v2816, %v2820
        %v2835 = vsel %vm408, %v2826, %v2814
        %v2836 = vsel %vm408, %v2828, %v2816
        %2837 = vst [vmem:[#allocation2 + $0x440] sm:$0xff] %v2833
        %2838 = vst [vmem:[#allocation2 + $0x448] sm:$0xff] %v2831
        %2839 = vst [vmem:[#allocation2 + $0x450] sm:$0xff] %v2829
        %2840 = vst [vmem:[#allocation2 + $0x458] sm:$0xff] %v2835
        %2841 = vst [vmem:[#allocation2 + $0x460] sm:$0xff] %v2834
        %2842 = vst [vmem:[#allocation2 + $0x468] sm:$0xff] %v2832
        %2843 = vst [vmem:[#allocation2 + $0x470] sm:$0xff] %v2830
        %2844 = vst [vmem:[#allocation2 + $0x478] sm:$0xff] %v2836
        %2845 = vrot.lane.b32.xlu0 %v1706, 107
        %v2846 = vpop.permute.xlu0 %2845
        %2847 = vrot.lane.b32.xlu0 %v1710, 107
        %v2848 = vpop.permute.xlu0 %2847
        %2849 = vrot.lane.b32.xlu0 %v1707, 107
        %v2850 = vpop.permute.xlu0 %2849
        %2851 = vrot.lane.b32.xlu0 %v1711, 107
        %v2852 = vpop.permute.xlu0 %2851
        %2853 = vrot.lane.b32.xlu0 %v1708, 107
        %v2854 = vpop.permute.xlu0 %2853
        %2855 = vrot.lane.b32.xlu0 %v1712, 107
        %v2856 = vpop.permute.xlu0 %2855
        %2857 = vrot.lane.b32.xlu0 %v1709, 107
        %v2858 = vpop.permute.xlu0 %2857
        %2859 = vrot.lane.b32.xlu0 %v1713, 107
        %v2860 = vpop.permute.xlu0 %2859
        %v2861 = vsel %vm425, %v2854, %v2858
        %v2862 = vsel %vm425, %v2856, %v2860
        %v2863 = vsel %vm425, %v2850, %v2854
        %v2864 = vsel %vm425, %v2852, %v2856
        %v2865 = vsel %vm425, %v2846, %v2850
        %v2866 = vsel %vm425, %v2848, %v2852
        %v2867 = vsel %vm425, %v2858, %v2846
        %v2868 = vsel %vm425, %v2860, %v2848
        %2869 = vst [vmem:[#allocation2 + $0x480] sm:$0xff] %v2865
        %2870 = vst [vmem:[#allocation2 + $0x488] sm:$0xff] %v2863
        %2871 = vst [vmem:[#allocation2 + $0x490] sm:$0xff] %v2861
        %2872 = vst [vmem:[#allocation2 + $0x498] sm:$0xff] %v2867
        %2873 = vst [vmem:[#allocation2 + $0x4a0] sm:$0xff] %v2866
        %2874 = vst [vmem:[#allocation2 + $0x4a8] sm:$0xff] %v2864
        %2875 = vst [vmem:[#allocation2 + $0x4b0] sm:$0xff] %v2862
        %2876 = vst [vmem:[#allocation2 + $0x4b8] sm:$0xff] %v2868
        %2877 = vrot.lane.b32.xlu0 %v1706, 106
        %v2878 = vpop.permute.xlu0 %2877
        %2879 = vrot.lane.b32.xlu0 %v1710, 106
        %v2880 = vpop.permute.xlu0 %2879
        %2881 = vrot.lane.b32.xlu0 %v1707, 106
        %v2882 = vpop.permute.xlu0 %2881
        %2883 = vrot.lane.b32.xlu0 %v1711, 106
        %v2884 = vpop.permute.xlu0 %2883
        %2885 = vrot.lane.b32.xlu0 %v1708, 106
        %v2886 = vpop.permute.xlu0 %2885
        %2887 = vrot.lane.b32.xlu0 %v1712, 106
        %v2888 = vpop.permute.xlu0 %2887
        %2889 = vrot.lane.b32.xlu0 %v1709, 106
        %v2890 = vpop.permute.xlu0 %2889
        %2891 = vrot.lane.b32.xlu0 %v1713, 106
        %v2892 = vpop.permute.xlu0 %2891
        %v2893 = vsel %vm442, %v2886, %v2890
        %v2894 = vsel %vm442, %v2888, %v2892
        %v2895 = vsel %vm442, %v2882, %v2886
        %v2896 = vsel %vm442, %v2884, %v2888
        %v2897 = vsel %vm442, %v2878, %v2882
        %v2898 = vsel %vm442, %v2880, %v2884
        %v2899 = vsel %vm442, %v2890, %v2878
        %v2900 = vsel %vm442, %v2892, %v2880
        %2901 = vst [vmem:[#allocation2 + $0x4c0] sm:$0xff] %v2897
        %2902 = vst [vmem:[#allocation2 + $0x4c8] sm:$0xff] %v2895
        %2903 = vst [vmem:[#allocation2 + $0x4d0] sm:$0xff] %v2893
        %2904 = vst [vmem:[#allocation2 + $0x4d8] sm:$0xff] %v2899
        %2905 = vst [vmem:[#allocation2 + $0x4e0] sm:$0xff] %v2898
        %2906 = vst [vmem:[#allocation2 + $0x4e8] sm:$0xff] %v2896
        %2907 = vst [vmem:[#allocation2 + $0x4f0] sm:$0xff] %v2894
        %2908 = vst [vmem:[#allocation2 + $0x4f8] sm:$0xff] %v2900
        %s2909 = scalar_lea.vmem [#allocation8], 24
        %v2910 = vld [vmem:[%s2909] sm:$0xff]
        %v2911 = vld [vmem:[#allocation2 + $0x3c0] sm:$0xff]
        %v2912 = vld [vmem:[#allocation2 + $0x3c8] sm:$0xff]
        %v2913 = vld [vmem:[#allocation2 + $0x3d0] sm:$0xff]
        %v2914 = vld [vmem:[#allocation2 + $0x3d8] sm:$0xff]
        %v2915 = vld [vmem:[#allocation2 + $0x3e0] sm:$0xff]
        %v2916 = vld [vmem:[#allocation2 + $0x3e8] sm:$0xff]
        %v2917 = vld [vmem:[#allocation2 + $0x3f0] sm:$0xff]
        %v2918 = vld [vmem:[#allocation2 + $0x3f8] sm:$0xff]
        %v2919 = vld [vmem:[#allocation2 + $0x400] sm:$0xff]
        %v2920 = vld [vmem:[#allocation2 + $0x408] sm:$0xff]
        %v2921 = vld [vmem:[#allocation2 + $0x410] sm:$0xff]
        %v2922 = vld [vmem:[#allocation2 + $0x418] sm:$0xff]
        %v2923 = vld [vmem:[#allocation2 + $0x420] sm:$0xff]
        %v2924 = vld [vmem:[#allocation2 + $0x428] sm:$0xff]
        %v2925 = vld [vmem:[#allocation2 + $0x430] sm:$0xff]
        %v2926 = vld [vmem:[#allocation2 + $0x438] sm:$0xff]
        %v2927 = vld [vmem:[#allocation2 + $0x440] sm:$0xff]
        %v2928 = vld [vmem:[#allocation2 + $0x448] sm:$0xff]
        %v2929 = vld [vmem:[#allocation2 + $0x450] sm:$0xff]
        %v2930 = vld [vmem:[#allocation2 + $0x458] sm:$0xff]
        %v2931 = vld [vmem:[#allocation2 + $0x460] sm:$0xff]
        %v2932 = vld [vmem:[#allocation2 + $0x468] sm:$0xff]
        %v2933 = vld [vmem:[#allocation2 + $0x470] sm:$0xff]
        %v2934 = vld [vmem:[#allocation2 + $0x478] sm:$0xff]
        %v2935 = vld [vmem:[#allocation2 + $0x480] sm:$0xff]
        %v2936 = vld [vmem:[#allocation2 + $0x488] sm:$0xff]
        %v2937 = vld [vmem:[#allocation2 + $0x490] sm:$0xff]
        %v2938 = vld [vmem:[#allocation2 + $0x498] sm:$0xff]
        %v2939 = vld [vmem:[#allocation2 + $0x4a0] sm:$0xff]
        %v2940 = vld [vmem:[#allocation2 + $0x4a8] sm:$0xff]
        %v2941 = vld [vmem:[#allocation2 + $0x4b0] sm:$0xff]
        %v2942 = vld [vmem:[#allocation2 + $0x4b8] sm:$0xff]
        %v2943 = vld [vmem:[#allocation2 + $0x4c0] sm:$0xff]
        %v2944 = vld [vmem:[#allocation2 + $0x4c8] sm:$0xff]
        %v2945 = vld [vmem:[#allocation2 + $0x4d0] sm:$0xff]
        %v2946 = vld [vmem:[#allocation2 + $0x4d8] sm:$0xff]
        %v2947 = vld [vmem:[#allocation2 + $0x4e0] sm:$0xff]
        %v2948 = vld [vmem:[#allocation2 + $0x4e8] sm:$0xff]
        %v2949 = vld [vmem:[#allocation2 + $0x4f0] sm:$0xff]
        %v2950 = vld [vmem:[#allocation2 + $0x4f8] sm:$0xff]
        %v2952 = vsel %vm2127, %v2910, 0
        %2954 = vmatprep.subr.mxu0 0.0
        %2955 = vmatpush1.msra.mxu0 0.0
        %2956 = vmatprep.subr.mxu0 0.0
        %2957 = vmatpush1.msra.mxu0 0.0
        %2958 = vmatprep.subr.mxu0 0.0
        %2959 = vmatpush1.msra.mxu0 0.0
        %2960 = vmatprep.subr.mxu0 0.0
        %2961 = vmatpush1.msra.mxu0 0.0
        %2962 = vmatprep.subr.mxu0 0.0
        %2963 = vmatpush1.msra.mxu0 0.0
        %2964 = vmatprep.subr.mxu0 0.0
        %2965 = vmatpush1.msra.mxu0 0.0
        %2966 = vmatprep.subr.mxu0 %v2948
        %2967 = vmatpush1.msra.mxu0 %v2947
        %2968 = vmatprep.subr.mxu0 %v2944
        %2969 = vmatpush1.msra.mxu0 %v2943
        %2970 = vmatprep.subr.mxu0 %v2940
        %2971 = vmatpush1.msra.mxu0 %v2939
        %2972 = vmatprep.subr.mxu0 %v2936
        %2973 = vmatpush1.msra.mxu0 %v2935
        %2974 = vmatprep.subr.mxu0 %v2932
        %2975 = vmatpush1.msra.mxu0 %v2931
        %2976 = vmatprep.subr.mxu0 %v2928
        %2977 = vmatpush1.msra.mxu0 %v2927
        %2978 = vmatprep.subr.mxu0 %v2924
        %2979 = vmatpush1.msra.mxu0 %v2923
        %2980 = vmatprep.subr.mxu0 %v2920
        %2981 = vmatpush1.msra.mxu0 %v2919
        %2982 = vmatprep.subr.mxu0 %v2916
        %2983 = vmatpush1.msra.mxu0 %v2915
        %2984 = vmatprep.subr.mxu0 %v2912
        %2985 = vmatpush1.msra.mxu0 %v2911
        %2986 = vmatprep.subr.mxu0 0.0
        %2987 = vmatpush2.msra.mxu0 0.0
        %2988 = vmatprep.subr.mxu0 0.0
        %2989 = vmatpush2.msra.mxu0 0.0
        %2990 = vmatprep.subr.mxu0 0.0
        %2991 = vmatpush2.msra.mxu0 0.0
        %2992 = vmatprep.subr.mxu0 0.0
        %2993 = vmatpush2.msra.mxu0 0.0
        %2994 = vmatprep.subr.mxu0 0.0
        %2995 = vmatpush2.msra.mxu0 0.0
        %2996 = vmatprep.subr.mxu0 0.0
        %2997 = vmatpush2.msra.mxu0 0.0
        %2998 = vmatprep.subr.mxu0 0.0
        %2999 = vmatpush2.msra.mxu0 0.0
        %3000 = vmatprep.subr.mxu0 0.0
        %3001 = vmatpush2.msra.mxu0 0.0
        %3002 = vmatprep.subr.mxu0 0.0
        %3003 = vmatpush2.msra.mxu0 0.0
        %3004 = vmatprep.subr.mxu0 0.0
        %3005 = vmatpush2.msra.mxu0 0.0
        %3006 = vmatprep.subr.mxu0 0.0
        %3007 = vmatpush2.msra.mxu0 0.0
        %3008 = vmatprep.subr.mxu0 0.0
        %3009 = vmatpush2.msra.mxu0 0.0
        %3010 = vmatprep.subr.mxu0 0.0
        %3011 = vmatpush2.msra.mxu0 0.0
        %3012 = vmatprep.subr.mxu0 0.0
        %3013 = vmatpush2.msra.mxu0 0.0
        %3014 = vmatprep.subr.mxu0 0.0
        %3015 = vmatpush2.msra.mxu0 0.0
        %3016 = vmatprep.subr.mxu0 0.0
        %3017 = vmatpush2.msra.mxu0 0.0
        %3018 = vmatprep.mubr.f32.mxu0 0.0
        %3019 = vmatmul.mubr.f32.gmra.mxu0 %v2952
        %v3020 = vpop.f32.mrf.mxu0
        %v3021 = vadd.f32 0.0, %v3020
        %v3022 = vpop.f32.mrf.mxu0
        %v3023 = vadd.f32 0.0, %v3022
        %3024 = vdwg.mxu0
        %3025 = vmatprep.subr.mxu0 0.0
        %3026 = vmatpush1.msra.mxu0 0.0
        %3027 = vmatprep.subr.mxu0 0.0
        %3028 = vmatpush1.msra.mxu0 0.0
        %3029 = vmatprep.subr.mxu0 0.0
        %3030 = vmatpush1.msra.mxu0 0.0
        %3031 = vmatprep.subr.mxu0 0.0
        %3032 = vmatpush1.msra.mxu0 0.0
        %3033 = vmatprep.subr.mxu0 0.0
        %3034 = vmatpush1.msra.mxu0 0.0
        %3035 = vmatprep.subr.mxu0 0.0
        %3036 = vmatpush1.msra.mxu0 0.0
        %3037 = vmatprep.subr.mxu0 %v2950
        %3038 = vmatpush1.msra.mxu0 %v2949
        %3039 = vmatprep.subr.mxu0 %v2946
        %3040 = vmatpush1.msra.mxu0 %v2945
        %3041 = vmatprep.subr.mxu0 %v2942
        %3042 = vmatpush1.msra.mxu0 %v2941
        %3043 = vmatprep.subr.mxu0 %v2938
        %3044 = vmatpush1.msra.mxu0 %v2937
        %3045 = vmatprep.subr.mxu0 %v2934
        %3046 = vmatpush1.msra.mxu0 %v2933
        %3047 = vmatprep.subr.mxu0 %v2930
        %3048 = vmatpush1.msra.mxu0 %v2929
        %3049 = vmatprep.subr.mxu0 %v2926
        %3050 = vmatpush1.msra.mxu0 %v2925
        %3051 = vmatprep.subr.mxu0 %v2922
        %3052 = vmatpush1.msra.mxu0 %v2921
        %3053 = vmatprep.subr.mxu0 %v2918
        %3054 = vmatpush1.msra.mxu0 %v2917
        %3055 = vmatprep.subr.mxu0 %v2914
        %3056 = vmatpush1.msra.mxu0 %v2913
        %3057 = vmatprep.subr.mxu0 0.0
        %3058 = vmatpush2.msra.mxu0 0.0
        %3059 = vmatprep.subr.mxu0 0.0
        %3060 = vmatpush2.msra.mxu0 0.0
        %3061 = vmatprep.subr.mxu0 0.0
        %3062 = vmatpush2.msra.mxu0 0.0
        %3063 = vmatprep.subr.mxu0 0.0
        %3064 = vmatpush2.msra.mxu0 0.0
        %3065 = vmatprep.subr.mxu0 0.0
        %3066 = vmatpush2.msra.mxu0 0.0
        %3067 = vmatprep.subr.mxu0 0.0
        %3068 = vmatpush2.msra.mxu0 0.0
        %3069 = vmatprep.subr.mxu0 0.0
        %3070 = vmatpush2.msra.mxu0 0.0
        %3071 = vmatprep.subr.mxu0 0.0
        %3072 = vmatpush2.msra.mxu0 0.0
        %3073 = vmatprep.subr.mxu0 0.0
        %3074 = vmatpush2.msra.mxu0 0.0
        %3075 = vmatprep.subr.mxu0 0.0
        %3076 = vmatpush2.msra.mxu0 0.0
        %3077 = vmatprep.subr.mxu0 0.0
        %3078 = vmatpush2.msra.mxu0 0.0
        %3079 = vmatprep.subr.mxu0 0.0
        %3080 = vmatpush2.msra.mxu0 0.0
        %3081 = vmatprep.subr.mxu0 0.0
        %3082 = vmatpush2.msra.mxu0 0.0
        %3083 = vmatprep.subr.mxu0 0.0
        %3084 = vmatpush2.msra.mxu0 0.0
        %3085 = vmatprep.subr.mxu0 0.0
        %3086 = vmatpush2.msra.mxu0 0.0
        %3087 = vmatprep.subr.mxu0 0.0
        %3088 = vmatpush2.msra.mxu0 0.0
        %3089 = vmatprep.mubr.f32.mxu0 0.0
        %3090 = vmatmul.mubr.f32.gmra.mxu0 %v2952
        %v3091 = vpop.f32.mrf.mxu0
        %v3092 = vadd.f32 0.0, %v3091
        %v3093 = vpop.f32.mrf.mxu0
        %v3094 = vadd.f32 0.0, %v3093
        %3095 = vdwg.mxu0
        %v3096 = vadd.f32 %v2743, %v3021
        %v3097 = vadd.f32 %v2744, %v3023
        %v3098 = vadd.f32 %v2745, %v3092
        %v3099 = vadd.f32 %v2746, %v3094
        %3100 = vrot.lane.b32.xlu0 %v1706, 90
        %v3101 = vpop.permute.xlu0 %3100
        %3102 = vrot.lane.b32.xlu0 %v1710, 90
        %v3103 = vpop.permute.xlu0 %3102
        %3104 = vrot.lane.b32.xlu0 %v1707, 90
        %v3105 = vpop.permute.xlu0 %3104
        %3106 = vrot.lane.b32.xlu0 %v1711, 90
        %v3107 = vpop.permute.xlu0 %3106
        %3108 = vrot.lane.b32.xlu0 %v1708, 90
        %v3109 = vpop.permute.xlu0 %3108
        %3110 = vrot.lane.b32.xlu0 %v1712, 90
        %v3111 = vpop.permute.xlu0 %3110
        %3112 = vrot.lane.b32.xlu0 %v1709, 90
        %v3113 = vpop.permute.xlu0 %3112
        %3114 = vrot.lane.b32.xlu0 %v1713, 90
        %v3115 = vpop.permute.xlu0 %3114
        %vm3116 = vcmp.lt.s32.totalorder %v317, 90
        %v3117 = vsel %vm3116, %v3109, %v3113
        %v3118 = vsel %vm3116, %v3111, %v3115
        %v3119 = vsel %vm3116, %v3105, %v3109
        %v3120 = vsel %vm3116, %v3107, %v3111
        %v3121 = vsel %vm3116, %v3101, %v3105
        %v3122 = vsel %vm3116, %v3103, %v3107
        %v3123 = vsel %vm3116, %v3113, %v3101
        %v3124 = vsel %vm3116, %v3115, %v3103
        %3125 = vst [vmem:[#allocation2 + $0x500] sm:$0xff] %v3121
        %3126 = vst [vmem:[#allocation2 + $0x508] sm:$0xff] %v3119
        %3127 = vst [vmem:[#allocation2 + $0x510] sm:$0xff] %v3117
        %3128 = vst [vmem:[#allocation2 + $0x518] sm:$0xff] %v3123
        %3129 = vst [vmem:[#allocation2 + $0x520] sm:$0xff] %v3122
        %3130 = vst [vmem:[#allocation2 + $0x528] sm:$0xff] %v3120
        %3131 = vst [vmem:[#allocation2 + $0x530] sm:$0xff] %v3118
        %3132 = vst [vmem:[#allocation2 + $0x538] sm:$0xff] %v3124
        %3133 = vrot.lane.b32.xlu0 %v1706, 89
        %v3134 = vpop.permute.xlu0 %3133
        %3135 = vrot.lane.b32.xlu0 %v1710, 89
        %v3136 = vpop.permute.xlu0 %3135
        %3137 = vrot.lane.b32.xlu0 %v1707, 89
        %v3138 = vpop.permute.xlu0 %3137
        %3139 = vrot.lane.b32.xlu0 %v1711, 89
        %v3140 = vpop.permute.xlu0 %3139
        %3141 = vrot.lane.b32.xlu0 %v1708, 89
        %v3142 = vpop.permute.xlu0 %3141
        %3143 = vrot.lane.b32.xlu0 %v1712, 89
        %v3144 = vpop.permute.xlu0 %3143
        %3145 = vrot.lane.b32.xlu0 %v1709, 89
        %v3146 = vpop.permute.xlu0 %3145
        %3147 = vrot.lane.b32.xlu0 %v1713, 89
        %v3148 = vpop.permute.xlu0 %3147
        %vm3149 = vcmp.lt.s32.totalorder %v317, 89
        %v3150 = vsel %vm3149, %v3142, %v3146
        %v3151 = vsel %vm3149, %v3144, %v3148
        %v3152 = vsel %vm3149, %v3138, %v3142
        %v3153 = vsel %vm3149, %v3140, %v3144
        %v3154 = vsel %vm3149, %v3134, %v3138
        %v3155 = vsel %vm3149, %v3136, %v3140
        %v3156 = vsel %vm3149, %v3146, %v3134
        %v3157 = vsel %vm3149, %v3148, %v3136
        %3158 = vst [vmem:[#allocation2 + $0x540] sm:$0xff] %v3154
        %3159 = vst [vmem:[#allocation2 + $0x548] sm:$0xff] %v3152
        %3160 = vst [vmem:[#allocation2 + $0x550] sm:$0xff] %v3150
        %3161 = vst [vmem:[#allocation2 + $0x558] sm:$0xff] %v3156
        %3162 = vst [vmem:[#allocation2 + $0x560] sm:$0xff] %v3155
        %3163 = vst [vmem:[#allocation2 + $0x568] sm:$0xff] %v3153
        %3164 = vst [vmem:[#allocation2 + $0x570] sm:$0xff] %v3151
        %3165 = vst [vmem:[#allocation2 + $0x578] sm:$0xff] %v3157
        %3166 = vrot.lane.b32.xlu0 %v1706, 88
        %v3167 = vpop.permute.xlu0 %3166
        %3168 = vrot.lane.b32.xlu0 %v1710, 88
        %v3169 = vpop.permute.xlu0 %3168
        %3170 = vrot.lane.b32.xlu0 %v1707, 88
        %v3171 = vpop.permute.xlu0 %3170
        %3172 = vrot.lane.b32.xlu0 %v1711, 88
        %v3173 = vpop.permute.xlu0 %3172
        %3174 = vrot.lane.b32.xlu0 %v1708, 88
        %v3175 = vpop.permute.xlu0 %3174
        %3176 = vrot.lane.b32.xlu0 %v1712, 88
        %v3177 = vpop.permute.xlu0 %3176
        %3178 = vrot.lane.b32.xlu0 %v1709, 88
        %v3179 = vpop.permute.xlu0 %3178
        %3180 = vrot.lane.b32.xlu0 %v1713, 88
        %v3181 = vpop.permute.xlu0 %3180
        %v3182 = vsel %vm837, %v3175, %v3179
        %v3183 = vsel %vm837, %v3177, %v3181
        %v3184 = vsel %vm837, %v3171, %v3175
        %v3185 = vsel %vm837, %v3173, %v3177
        %v3186 = vsel %vm837, %v3167, %v3171
        %v3187 = vsel %vm837, %v3169, %v3173
        %v3188 = vsel %vm837, %v3179, %v3167
        %v3189 = vsel %vm837, %v3181, %v3169
        %3190 = vst [vmem:[#allocation2 + $0x580] sm:$0xff] %v3186
        %3191 = vst [vmem:[#allocation2 + $0x588] sm:$0xff] %v3184
        %3192 = vst [vmem:[#allocation2 + $0x590] sm:$0xff] %v3182
        %3193 = vst [vmem:[#allocation2 + $0x598] sm:$0xff] %v3188
        %3194 = vst [vmem:[#allocation2 + $0x5a0] sm:$0xff] %v3187
        %3195 = vst [vmem:[#allocation2 + $0x5a8] sm:$0xff] %v3185
        %3196 = vst [vmem:[#allocation2 + $0x5b0] sm:$0xff] %v3183
        %3197 = vst [vmem:[#allocation2 + $0x5b8] sm:$0xff] %v3189
        %3198 = vrot.lane.b32.xlu0 %v1706, 87
        %v3199 = vpop.permute.xlu0 %3198
        %3200 = vrot.lane.b32.xlu0 %v1710, 87
        %v3201 = vpop.permute.xlu0 %3200
        %3202 = vrot.lane.b32.xlu0 %v1707, 87
        %v3203 = vpop.permute.xlu0 %3202
        %3204 = vrot.lane.b32.xlu0 %v1711, 87
        %v3205 = vpop.permute.xlu0 %3204
        %3206 = vrot.lane.b32.xlu0 %v1708, 87
        %v3207 = vpop.permute.xlu0 %3206
        %3208 = vrot.lane.b32.xlu0 %v1712, 87
        %v3209 = vpop.permute.xlu0 %3208
        %3210 = vrot.lane.b32.xlu0 %v1709, 87
        %v3211 = vpop.permute.xlu0 %3210
        %3212 = vrot.lane.b32.xlu0 %v1713, 87
        %v3213 = vpop.permute.xlu0 %3212
        %v3214 = vsel %vm854, %v3207, %v3211
        %v3215 = vsel %vm854, %v3209, %v3213
        %v3216 = vsel %vm854, %v3203, %v3207
        %v3217 = vsel %vm854, %v3205, %v3209
        %v3218 = vsel %vm854, %v3199, %v3203
        %v3219 = vsel %vm854, %v3201, %v3205
        %v3220 = vsel %vm854, %v3211, %v3199
        %v3221 = vsel %vm854, %v3213, %v3201
        %3222 = vst [vmem:[#allocation2 + $0x5c0] sm:$0xff] %v3218
        %3223 = vst [vmem:[#allocation2 + $0x5c8] sm:$0xff] %v3216
        %3224 = vst [vmem:[#allocation2 + $0x5d0] sm:$0xff] %v3214
        %3225 = vst [vmem:[#allocation2 + $0x5d8] sm:$0xff] %v3220
        %3226 = vst [vmem:[#allocation2 + $0x5e0] sm:$0xff] %v3219
        %3227 = vst [vmem:[#allocation2 + $0x5e8] sm:$0xff] %v3217
        %3228 = vst [vmem:[#allocation2 + $0x5f0] sm:$0xff] %v3215
        %3229 = vst [vmem:[#allocation2 + $0x5f8] sm:$0xff] %v3221
        %3230 = vrot.lane.b32.xlu0 %v1706, 86
        %v3231 = vpop.permute.xlu0 %3230
        %3232 = vrot.lane.b32.xlu0 %v1710, 86
        %v3233 = vpop.permute.xlu0 %3232
        %3234 = vrot.lane.b32.xlu0 %v1707, 86
        %v3235 = vpop.permute.xlu0 %3234
        %3236 = vrot.lane.b32.xlu0 %v1711, 86
        %v3237 = vpop.permute.xlu0 %3236
        %3238 = vrot.lane.b32.xlu0 %v1708, 86
        %v3239 = vpop.permute.xlu0 %3238
        %3240 = vrot.lane.b32.xlu0 %v1712, 86
        %v3241 = vpop.permute.xlu0 %3240
        %3242 = vrot.lane.b32.xlu0 %v1709, 86
        %v3243 = vpop.permute.xlu0 %3242
        %3244 = vrot.lane.b32.xlu0 %v1713, 86
        %v3245 = vpop.permute.xlu0 %3244
        %v3246 = vsel %vm871, %v3239, %v3243
        %v3247 = vsel %vm871, %v3241, %v3245
        %v3248 = vsel %vm871, %v3235, %v3239
        %v3249 = vsel %vm871, %v3237, %v3241
        %v3250 = vsel %vm871, %v3231, %v3235
        %v3251 = vsel %vm871, %v3233, %v3237
        %v3252 = vsel %vm871, %v3243, %v3231
        %v3253 = vsel %vm871, %v3245, %v3233
        %3254 = vst [vmem:[#allocation2 + $0x600] sm:$0xff] %v3250
        %3255 = vst [vmem:[#allocation2 + $0x608] sm:$0xff] %v3248
        %3256 = vst [vmem:[#allocation2 + $0x610] sm:$0xff] %v3246
        %3257 = vst [vmem:[#allocation2 + $0x618] sm:$0xff] %v3252
        %3258 = vst [vmem:[#allocation2 + $0x620] sm:$0xff] %v3251
        %3259 = vst [vmem:[#allocation2 + $0x628] sm:$0xff] %v3249
        %3260 = vst [vmem:[#allocation2 + $0x630] sm:$0xff] %v3247
        %3261 = vst [vmem:[#allocation2 + $0x638] sm:$0xff] %v3253
        %s3262 = scalar_lea.vmem [#allocation8], 32
        %v3263 = vld [vmem:[%s3262] sm:$0xff]
        %v3264 = vld [vmem:[#allocation2 + $0x500] sm:$0xff]
        %v3265 = vld [vmem:[#allocation2 + $0x508] sm:$0xff]
        %v3266 = vld [vmem:[#allocation2 + $0x510] sm:$0xff]
        %v3267 = vld [vmem:[#allocation2 + $0x518] sm:$0xff]
        %v3268 = vld [vmem:[#allocation2 + $0x520] sm:$0xff]
        %v3269 = vld [vmem:[#allocation2 + $0x528] sm:$0xff]
        %v3270 = vld [vmem:[#allocation2 + $0x530] sm:$0xff]
        %v3271 = vld [vmem:[#allocation2 + $0x538] sm:$0xff]
        %v3272 = vld [vmem:[#allocation2 + $0x540] sm:$0xff]
        %v3273 = vld [vmem:[#allocation2 + $0x548] sm:$0xff]
        %v3274 = vld [vmem:[#allocation2 + $0x550] sm:$0xff]
        %v3275 = vld [vmem:[#allocation2 + $0x558] sm:$0xff]
        %v3276 = vld [vmem:[#allocation2 + $0x560] sm:$0xff]
        %v3277 = vld [vmem:[#allocation2 + $0x568] sm:$0xff]
        %v3278 = vld [vmem:[#allocation2 + $0x570] sm:$0xff]
        %v3279 = vld [vmem:[#allocation2 + $0x578] sm:$0xff]
        %v3280 = vld [vmem:[#allocation2 + $0x580] sm:$0xff]
        %v3281 = vld [vmem:[#allocation2 + $0x588] sm:$0xff]
        %v3282 = vld [vmem:[#allocation2 + $0x590] sm:$0xff]
        %v3283 = vld [vmem:[#allocation2 + $0x598] sm:$0xff]
        %v3284 = vld [vmem:[#allocation2 + $0x5a0] sm:$0xff]
        %v3285 = vld [vmem:[#allocation2 + $0x5a8] sm:$0xff]
        %v3286 = vld [vmem:[#allocation2 + $0x5b0] sm:$0xff]
        %v3287 = vld [vmem:[#allocation2 + $0x5b8] sm:$0xff]
        %v3288 = vld [vmem:[#allocation2 + $0x5c0] sm:$0xff]
        %v3289 = vld [vmem:[#allocation2 + $0x5c8] sm:$0xff]
        %v3290 = vld [vmem:[#allocation2 + $0x5d0] sm:$0xff]
        %v3291 = vld [vmem:[#allocation2 + $0x5d8] sm:$0xff]
        %v3292 = vld [vmem:[#allocation2 + $0x5e0] sm:$0xff]
        %v3293 = vld [vmem:[#allocation2 + $0x5e8] sm:$0xff]
        %v3294 = vld [vmem:[#allocation2 + $0x5f0] sm:$0xff]
        %v3295 = vld [vmem:[#allocation2 + $0x5f8] sm:$0xff]
        %v3296 = vld [vmem:[#allocation2 + $0x600] sm:$0xff]
        %v3297 = vld [vmem:[#allocation2 + $0x608] sm:$0xff]
        %v3298 = vld [vmem:[#allocation2 + $0x610] sm:$0xff]
        %v3299 = vld [vmem:[#allocation2 + $0x618] sm:$0xff]
        %v3300 = vld [vmem:[#allocation2 + $0x620] sm:$0xff]
        %v3301 = vld [vmem:[#allocation2 + $0x628] sm:$0xff]
        %v3302 = vld [vmem:[#allocation2 + $0x630] sm:$0xff]
        %v3303 = vld [vmem:[#allocation2 + $0x638] sm:$0xff]
        %v3305 = vsel %vm2127, %v3263, 0
        %3307 = vmatprep.subr.mxu0 0.0
        %3308 = vmatpush1.msra.mxu0 0.0
        %3309 = vmatprep.subr.mxu0 0.0
        %3310 = vmatpush1.msra.mxu0 0.0
        %3311 = vmatprep.subr.mxu0 0.0
        %3312 = vmatpush1.msra.mxu0 0.0
        %3313 = vmatprep.subr.mxu0 0.0
        %3314 = vmatpush1.msra.mxu0 0.0
        %3315 = vmatprep.subr.mxu0 0.0
        %3316 = vmatpush1.msra.mxu0 0.0
        %3317 = vmatprep.subr.mxu0 0.0
        %3318 = vmatpush1.msra.mxu0 0.0
        %3319 = vmatprep.subr.mxu0 %v3301
        %3320 = vmatpush1.msra.mxu0 %v3300
        %3321 = vmatprep.subr.mxu0 %v3297
        %3322 = vmatpush1.msra.mxu0 %v3296
        %3323 = vmatprep.subr.mxu0 %v3293
        %3324 = vmatpush1.msra.mxu0 %v3292
        %3325 = vmatprep.subr.mxu0 %v3289
        %3326 = vmatpush1.msra.mxu0 %v3288
        %3327 = vmatprep.subr.mxu0 %v3285
        %3328 = vmatpush1.msra.mxu0 %v3284
        %3329 = vmatprep.subr.mxu0 %v3281
        %3330 = vmatpush1.msra.mxu0 %v3280
        %3331 = vmatprep.subr.mxu0 %v3277
        %3332 = vmatpush1.msra.mxu0 %v3276
        %3333 = vmatprep.subr.mxu0 %v3273
        %3334 = vmatpush1.msra.mxu0 %v3272
        %3335 = vmatprep.subr.mxu0 %v3269
        %3336 = vmatpush1.msra.mxu0 %v3268
        %3337 = vmatprep.subr.mxu0 %v3265
        %3338 = vmatpush1.msra.mxu0 %v3264
        %3339 = vmatprep.subr.mxu0 0.0
        %3340 = vmatpush2.msra.mxu0 0.0
        %3341 = vmatprep.subr.mxu0 0.0
        %3342 = vmatpush2.msra.mxu0 0.0
        %3343 = vmatprep.subr.mxu0 0.0
        %3344 = vmatpush2.msra.mxu0 0.0
        %3345 = vmatprep.subr.mxu0 0.0
        %3346 = vmatpush2.msra.mxu0 0.0
        %3347 = vmatprep.subr.mxu0 0.0
        %3348 = vmatpush2.msra.mxu0 0.0
        %3349 = vmatprep.subr.mxu0 0.0
        %3350 = vmatpush2.msra.mxu0 0.0
        %3351 = vmatprep.subr.mxu0 0.0
        %3352 = vmatpush2.msra.mxu0 0.0
        %3353 = vmatprep.subr.mxu0 0.0
        %3354 = vmatpush2.msra.mxu0 0.0
        %3355 = vmatprep.subr.mxu0 0.0
        %3356 = vmatpush2.msra.mxu0 0.0
        %3357 = vmatprep.subr.mxu0 0.0
        %3358 = vmatpush2.msra.mxu0 0.0
        %3359 = vmatprep.subr.mxu0 0.0
        %3360 = vmatpush2.msra.mxu0 0.0
        %3361 = vmatprep.subr.mxu0 0.0
        %3362 = vmatpush2.msra.mxu0 0.0
        %3363 = vmatprep.subr.mxu0 0.0
        %3364 = vmatpush2.msra.mxu0 0.0
        %3365 = vmatprep.subr.mxu0 0.0
        %3366 = vmatpush2.msra.mxu0 0.0
        %3367 = vmatprep.subr.mxu0 0.0
        %3368 = vmatpush2.msra.mxu0 0.0
        %3369 = vmatprep.subr.mxu0 0.0
        %3370 = vmatpush2.msra.mxu0 0.0
        %3371 = vmatprep.mubr.f32.mxu0 0.0
        %3372 = vmatmul.mubr.f32.gmra.mxu0 %v3305
        %v3373 = vpop.f32.mrf.mxu0
        %v3374 = vadd.f32 0.0, %v3373
        %v3375 = vpop.f32.mrf.mxu0
        %v3376 = vadd.f32 0.0, %v3375
        %3377 = vdwg.mxu0
        %3378 = vmatprep.subr.mxu0 0.0
        %3379 = vmatpush1.msra.mxu0 0.0
        %3380 = vmatprep.subr.mxu0 0.0
        %3381 = vmatpush1.msra.mxu0 0.0
        %3382 = vmatprep.subr.mxu0 0.0
        %3383 = vmatpush1.msra.mxu0 0.0
        %3384 = vmatprep.subr.mxu0 0.0
        %3385 = vmatpush1.msra.mxu0 0.0
        %3386 = vmatprep.subr.mxu0 0.0
        %3387 = vmatpush1.msra.mxu0 0.0
        %3388 = vmatprep.subr.mxu0 0.0
        %3389 = vmatpush1.msra.mxu0 0.0
        %3390 = vmatprep.subr.mxu0 %v3303
        %3391 = vmatpush1.msra.mxu0 %v3302
        %3392 = vmatprep.subr.mxu0 %v3299
        %3393 = vmatpush1.msra.mxu0 %v3298
        %3394 = vmatprep.subr.mxu0 %v3295
        %3395 = vmatpush1.msra.mxu0 %v3294
        %3396 = vmatprep.subr.mxu0 %v3291
        %3397 = vmatpush1.msra.mxu0 %v3290
        %3398 = vmatprep.subr.mxu0 %v3287
        %3399 = vmatpush1.msra.mxu0 %v3286
        %3400 = vmatprep.subr.mxu0 %v3283
        %3401 = vmatpush1.msra.mxu0 %v3282
        %3402 = vmatprep.subr.mxu0 %v3279
        %3403 = vmatpush1.msra.mxu0 %v3278
        %3404 = vmatprep.subr.mxu0 %v3275
        %3405 = vmatpush1.msra.mxu0 %v3274
        %3406 = vmatprep.subr.mxu0 %v3271
        %3407 = vmatpush1.msra.mxu0 %v3270
        %3408 = vmatprep.subr.mxu0 %v3267
        %3409 = vmatpush1.msra.mxu0 %v3266
        %3410 = vmatprep.subr.mxu0 0.0
        %3411 = vmatpush2.msra.mxu0 0.0
        %3412 = vmatprep.subr.mxu0 0.0
        %3413 = vmatpush2.msra.mxu0 0.0
        %3414 = vmatprep.subr.mxu0 0.0
        %3415 = vmatpush2.msra.mxu0 0.0
        %3416 = vmatprep.subr.mxu0 0.0
        %3417 = vmatpush2.msra.mxu0 0.0
        %3418 = vmatprep.subr.mxu0 0.0
        %3419 = vmatpush2.msra.mxu0 0.0
        %3420 = vmatprep.subr.mxu0 0.0
        %3421 = vmatpush2.msra.mxu0 0.0
        %3422 = vmatprep.subr.mxu0 0.0
        %3423 = vmatpush2.msra.mxu0 0.0
        %3424 = vmatprep.subr.mxu0 0.0
        %3425 = vmatpush2.msra.mxu0 0.0
        %3426 = vmatprep.subr.mxu0 0.0
        %3427 = vmatpush2.msra.mxu0 0.0
        %3428 = vmatprep.subr.mxu0 0.0
        %3429 = vmatpush2.msra.mxu0 0.0
        %3430 = vmatprep.subr.mxu0 0.0
        %3431 = vmatpush2.msra.mxu0 0.0
        %3432 = vmatprep.subr.mxu0 0.0
        %3433 = vmatpush2.msra.mxu0 0.0
        %3434 = vmatprep.subr.mxu0 0.0
        %3435 = vmatpush2.msra.mxu0 0.0
        %3436 = vmatprep.subr.mxu0 0.0
        %3437 = vmatpush2.msra.mxu0 0.0
        %3438 = vmatprep.subr.mxu0 0.0
        %3439 = vmatpush2.msra.mxu0 0.0
        %3440 = vmatprep.subr.mxu0 0.0
        %3441 = vmatpush2.msra.mxu0 0.0
        %3442 = vmatprep.mubr.f32.mxu0 0.0
        %3443 = vmatmul.mubr.f32.gmra.mxu0 %v3305
        %v3444 = vpop.f32.mrf.mxu0
        %v3445 = vadd.f32 0.0, %v3444
        %v3446 = vpop.f32.mrf.mxu0
        %v3447 = vadd.f32 0.0, %v3446
        %3448 = vdwg.mxu0
        %v3449 = vadd.f32 %v3096, %v3374
        %v3450 = vadd.f32 %v3097, %v3376
        %v3451 = vadd.f32 %v3098, %v3445
        %v3452 = vadd.f32 %v3099, %v3447
        %v3453 = vld [vmem:[%s4] sm:$0xff]
        %3455 = vset.pattern.permute.xlu0 0
        %3456 = vperm.xlu0 %3455, %v3453
        %v3457 = vpop.permute.xlu0 %3456
        %v3459 = vadd.f32 %v3449, %v3457
        %v3460 = vadd.f32 %v3450, %v3457
        %v3461 = vadd.f32 %v3451, %v3457
        %v3462 = vadd.f32 %v3452, %v3457
        %v3463 = vrot.slane %v3459, 4
        %v3464 = vmax.f32 %v3459, %v3463
        %v3465 = vrot.slane %v3464, 2
        %v3466 = vmax.f32 %v3464, %v3465
        %v3467 = vrot.slane %v3466, 1
        %v3468 = vmax.f32 %v3466, %v3467
        %v3469 = vrot.slane %v3460, 4
        %v3470 = vmax.f32 %v3460, %v3469
        %v3471 = vrot.slane %v3470, 2
        %v3472 = vmax.f32 %v3470, %v3471
        %v3473 = vrot.slane %v3472, 1
        %v3474 = vmax.f32 %v3472, %v3473
        %v3475 = vrot.slane %v3461, 4
        %v3476 = vmax.f32 %v3461, %v3475
        %v3477 = vrot.slane %v3476, 2
        %v3478 = vmax.f32 %v3476, %v3477
        %v3479 = vrot.slane %v3478, 1
        %v3480 = vmax.f32 %v3478, %v3479
        %v3481 = vrot.slane %v3462, 4
        %v3482 = vmax.f32 %v3462, %v3481
        %v3483 = vrot.slane %v3482, 2
        %v3484 = vmax.f32 %v3482, %v3483
        %v3485 = vrot.slane %v3484, 1
        %v3486 = vmax.f32 %v3484, %v3485
        %v3487 = vsub.f32 %v3459, %v3468
        %v3488 = vsub.f32 %v3460, %v3474
        %v3489 = vsub.f32 %v3461, %v3480
        %v3490 = vsub.f32 %v3462, %v3486
        %v3491 = vmul.f32 %v3487, 1.442695
        %v3492 = vpow.pop %v3491
        %v3493 = vmul.f32 %v3488, 1.442695
        %v3494 = vpow.pop %v3493
        %v3495 = vmul.f32 %v3489, 1.442695
        %v3496 = vpow.pop %v3495
        %v3497 = vmul.f32 %v3490, 1.442695
        %v3498 = vpow.pop %v3497
        %v3499 = vrot.slane %v3492, 4
        %v3500 = vadd.f32 %v3492, %v3499
        %v3501 = vrot.slane %v3500, 2
        %v3502 = vadd.f32 %v3500, %v3501
        %v3503 = vrot.slane %v3502, 1
        %v3504 = vadd.f32 %v3502, %v3503
        %v3505 = vrot.slane %v3494, 4
        %v3506 = vadd.f32 %v3494, %v3505
        %v3507 = vrot.slane %v3506, 2
        %v3508 = vadd.f32 %v3506, %v3507
        %v3509 = vrot.slane %v3508, 1
        %v3510 = vadd.f32 %v3508, %v3509
        %v3511 = vrot.slane %v3496, 4
        %v3512 = vadd.f32 %v3496, %v3511
        %v3513 = vrot.slane %v3512, 2
        %v3514 = vadd.f32 %v3512, %v3513
        %v3515 = vrot.slane %v3514, 1
        %v3516 = vadd.f32 %v3514, %v3515
        %v3517 = vrot.slane %v3498, 4
        %v3518 = vadd.f32 %v3498, %v3517
        %v3519 = vrot.slane %v3518, 2
        %v3520 = vadd.f32 %v3518, %v3519
        %v3521 = vrot.slane %v3520, 1
        %v3522 = vadd.f32 %v3520, %v3521
        %v3523 = vrcp.pop %v3504
        %v3524 = vmul.f32 %v3492, %v3523
        %v3525 = vrcp.pop %v3510
        %v3526 = vmul.f32 %v3494, %v3525
        %v3527 = vrcp.pop %v3516
        %v3528 = vmul.f32 %v3496, %v3527
        %v3529 = vrcp.pop %v3522
        %v3530 = vmul.f32 %v3498, %v3529
        %3531 = vst [vmem:[%s296] sm:$0xff] %v3524
        %3532 = vst [vmem:[%s296 + $0x8] sm:$0xff] %v3526
        %3533 = vst [vmem:[%s296 + $0x10] sm:$0xff] %v3528
        %3534 = vst [vmem:[%s296 + $0x18] sm:$0xff] %v3530
        %s3535 = sand.u32 %s163, 1
        %s3536 = scalar_lea.sflag [#allocation5], %s3535
        %s3537 = sand.u32 %s163, 1
        %s3538 = smul.addr %s3537, 32
        %s3539 = scalar_lea.vmem [#allocation9], %s3538
        // Predicated region
        $region57: #{tpu_custom_call.1} parent=43 // pred_check
          %p3540 = pneg %p173
        $region58: #{tpu_custom_call.1} parent=43 // pred_check_branch
          %3542 = sbr.rel (%p3540) target = $region60
        $region59: #{tpu_custom_call.1} parent=43 // pred_region
          %s3543 = smul.u32 4, %s24
          %s3545 = ssub.s32 512, 512
          %3546 = vsyncadd %s3536, %s3545
          %s3547 = smul.addr %s3543, 128
          %s3548 = scalar_lea.hbm %s6, %s3547
          %s3550 = sshll.u32 %s3539, 4
          %s3551 = int_to_ptr.vmem [resolvable:$true] %s3550
          %3553 = dma.vmem_to_hbm [thread:$0]  %s3551, 512, %s3548, %s3536
        $region60: #{tpu_custom_call.1} parent=43 // pred_fallthru
          _
      $region44: #{tpu_custom_call.1} parent=5 // pred_fallthru
        _
      %p3554 = scmp.le.s32.totalorder 2, %s19
      // Predicated region
      $region61: #{tpu_custom_call.1} parent=5 // pred_check
        %p3555 = pneg %p3554
      $region62: #{tpu_custom_call.1} parent=5 // pred_check_branch
        %3557 = sbr.rel (%p3555) target = $region64
      $region63: #{tpu_custom_call.1} parent=5 // pred_region
        %s3558 = ssub.s32 %s19, 2
        // Predicated region
        $region65: #{tpu_custom_call.1} parent=63 // pred_check
          %p3559 = pneg %p179
        $region66: #{tpu_custom_call.1} parent=63 // pred_check_branch
          %3561 = sbr.rel (%p3559) target = $region68
        $region67: #{tpu_custom_call.1} parent=63 // pred_region
          %s3562 = sand.u32 %s164, 1
          %s3563 = scalar_lea.sflag [#allocation5], %s3562
          %s3564 = sand.u32 %s164, 1
          %s3565 = smul.addr %s3564, 32
          %s3566 = scalar_lea.vmem [#allocation9], %s3565
          %3567 = dma.done %s3563, 512
        $region68: #{tpu_custom_call.1} parent=63 // pred_fallthru
          _
      $region64: #{tpu_custom_call.1} parent=5 // pred_fallthru
        _
    $region6: #{tpu_custom_call.1} parent=1 // loop_footer
      %s23 = sadd.s32 1, %s19
    $region7: #{tpu_custom_call.1} parent=1 // loop_footer_branch
      %18 = sbr.rel target = $region3
    $region8: #{tpu_custom_call.1} parent=1 // loop_exit
      _
    %3568 = vsyncpa [#allocation4], 1
    %s3569 = scalar_lea.sflag [#allocation4], 1
    %3570 = vsyncpa %s3569, 1
    %3571 = vsyncpa [#allocation7], 1
    %3572 = vsyncpa [#allocation5], 1
    %s3573 = scalar_lea.sflag [#allocation5], 1
    %3574 = vsyncpa %s3573, 1

</llo_original>
